<compile_context>
chip_gen: v7x
topology: tpu7x:2x2x1
jax: 0.10.0
libtpu: 0.0.40
codegen_flags: <defaults>
</compile_context>

<pallas_src>
import functools

import jax
import jax.numpy as jnp
import numpy as np
from jax.experimental import pallas as pl
from jax.experimental.pallas import tpu as pltpu


# ----------------------------- configuration -----------------------------
SEQ_LEN = 8          # args.seq_length
NUM_NODES = 8        # len(look_up) == args.maxNumPeds
RNN = 32             # args.rnn_size
EMB = 32             # args.embedding_size
GRID = 4             # args.grid_size
G2 = GRID * GRID
IN_SZ = 2            # args.input_size
OUT_SZ = 5           # args.output_size
OUT_PAD = 128        # lane-dense padded output width (sliced back host-side)


# ------------------------------- kernel ----------------------------------
def _social_kernel(s, n, e, r, g2, o_pad,
                   d_ref, w_ref, hc0_ref,        # inputs
                   out_ref, hc_ref,              # outputs
                   gx_ref, hhist_ref):           # VMEM scratch
    f32 = jnp.float32
    gn = g2 * n          # 128: grid block width inside the data slab
    r4 = 4 * r           # 128: gate width

    # ---- one-time unpack of the packed weight slab ----
    wi = w_ref[2 * r + 4:2 * r + 6, 0:e]          # (IN, E)
    bi = w_ref[2 * r + 2:2 * r + 3, 0:e]          # (1, E)
    bt = w_ref[2 * r + 3:2 * r + 4, 0:e]          # (1, E)
    wx = w_ref[r:2 * r, r4:2 * r4]                # (E, 4R)
    bg = w_ref[2 * r:2 * r + 1, 0:r4]             # (1, 4R)

    # ---- hoisted, non-recurrent work (whole sequence at once) ----
    x_all = d_ref[:, gn:gn + 2]                                      # (S*N, IN)
    ie_all = jnp.maximum(
        jnp.dot(x_all, wi, preferred_element_type=f32) + bi, 0.0)    # (S*N, E)
    gx_ref[...] = jnp.dot(ie_all, wx, preferred_element_type=f32) + bg
    bt_b = jnp.broadcast_to(bt, (n, e))                              # hoisted bias

    h = hc0_ref[0:n, :]                                              # (N, R)
    c = hc0_ref[n:2 * n, :]                                          # (N, R)

    # ---- time recurrence, fully unrolled in one kernel invocation ----
    for f in range(s):
        row0 = f * n
        # fused h matmul: [h@Wt' | h@Whh'] in one (N,R)@(R,G2*E+4R) push
        hcat = jnp.dot(h, w_ref[0:r, :], preferred_element_type=f32)  # (N, 640)
        hpart = hcat[:, g2 * e:]                                      # (N,4R), aligned
        # social relayout: hw (N, G2*E) -> (G2*N, E), g-major rows
        hw2 = jnp.concatenate(
            [hcat[:, g * e:(g + 1) * e] for g in range(g2)], axis=0)  # (G2*N, E)
        te = jnp.maximum(
            jnp.dot(d_ref[row0:row0 + n, 0:gn], hw2,
                    preferred_element_type=f32) + bt_b, 0.0)          # (N, E)

        # LSTMCell gates (columns pre-permuted to [i,f,o,g] host-side)
        gates = (gx_ref[row0:row0 + n, :] + hpart
                 + jnp.dot(te, w_ref[r:2 * r, 0:r4],
                           preferred_element_type=f32))               # (N, 4R)
        sig = jax.nn.sigmoid(gates)                  # full-vreg EUP pass
        tng = jnp.tanh(gates)                        # full-vreg EUP pass
        i_g = sig[:, 0:r]
        f_g = sig[:, r:2 * r]
        o_g = sig[:, 2 * r:3 * r]
        g_g = tng[:, 3 * r:r4]

        c_new = f_g * c + i_g * g_g
        h_new = o_g * jnp.tanh(c_new)
        hhist_ref[row0:row0 + n, :] = h_new          # history slab (scratch)

        m_f = d_ref[row0:row0 + n, gn + 2:gn + 3] > 0.0
        h = jnp.where(m_f, h_new, h)
        c = jnp.where(m_f, c_new, c)

    # ---- epilogue: output layer off the recurrent path, lane-dense store ----
    wo = w_ref[r:2 * r, 2 * r4:2 * r4 + o_pad]       # (R, O_PAD)
    bo = w_ref[2 * r + 1:2 * r + 2, 0:o_pad]         # (1, O_PAD)
    out_pre = (jnp.dot(hhist_ref[...], wo, preferred_element_type=f32) + bo)
    mask_all = d_ref[:, gn + 2:gn + 3] > 0.0
    out_ref[...] = jnp.where(mask_all, out_pre, 0.0)
    hc_ref[0:n, :] = h
    hc_ref[n:2 * n, :] = c


# ------------------------------- wrapper ----------------------------------
@jax.jit
def social_model_forward(x, grids, mask, h0, c0, params):
    """x: (S,N,IN); grids: (S,N,N,G2); mask: (S,N,1); h0,c0: (N,R)."""
    Wi, bi, Wt, bt, Wih, bih, Whh, bhh, Wo, bo = params   # PyTorch layouts
    S, N, _ = x.shape
    R, E, O, OP = RNN, EMB, OUT_SZ, OUT_PAD

    # gate-column permutation: PyTorch order [i,f,g,o] -> [i,f,o,g]
    perm = np.concatenate([np.arange(0, 2 * R),
                           np.arange(3 * R, 4 * R),
                           np.arange(2 * R, 3 * R)])

    # ---- host-side weight plumbing (free): transpose / permute / pack ----
    wih_t, whh_t = Wih.T, Whh.T                    # (2E,4R), (R,4R)
    wx = wih_t[:E][:, perm]                        # (E, 4R) input-emb -> gates
    wrec_te = wih_t[E:][:, perm]                   # (E, 4R) tensor-emb -> gates
    wrec_hh = whh_t[:, perm]                       # (R, 4R) h -> gates
    bg_vec = (bih + bhh)[perm]                     # (4R,)  pre-summed bias
    # Wt'(r, g*E+e) = Wt(e, g*R+r)
    wt_flat = Wt.reshape(E, G2, R).transpose(2, 1, 0).reshape(R, G2 * E)
    wfused = jnp.concatenate([wt_flat, wrec_hh], axis=1)   # (R, G2*E + 4R)
    slab_w = G2 * E + 4 * R                                # 640

    # weight slab (2R+8, 640): [wfused ; wrec_te|wx|wo_pad ; biases/wi]
    row_b = jnp.zeros((R, slab_w), jnp.float32)
    row_b = row_b.at[:, 0:4 * R].set(wrec_te)
    row_b = row_b.at[:, 4 * R:8 * R].set(wx)
    row_b = row_b.at[:, 8 * R:8 * R + O].set(Wo.T)          # padded to OP=128
    row_c = jnp.zeros((8, slab_w), jnp.float32)
    row_c = row_c.at[0, 0:4 * R].set(bg_vec)
    row_c = row_c.at[1, 0:O].set(bo)
    row_c = row_c.at[2, 0:E].set(bi)
    row_c = row_c.at[3, 0:E].set(bt)
    row_c = row_c.at[4:6, 0:E].set(Wi.T)
    w_slab = jnp.concatenate([wfused, row_b, row_c], axis=0)   # (2R+8, 640)

    # data slab (S*N, G2*N + 8): [grids | x | mask | 0]
    # grids'(f*N+n, g*N+m) = grids(f, n, m, g)
    grids_flat = grids.transpose(0, 1, 3, 2).reshape(S * N, G2 * N)
    d_slab = jnp.zeros((S * N, G2 * N + 8), jnp.float32)
    d_slab = d_slab.at[:, 0:G2 * N].set(grids_flat)
    d_slab = d_slab.at[:, G2 * N:G2 * N + IN_SZ].set(x.reshape(S * N, IN_SZ))
    d_slab = d_slab.at[:, G2 * N + 2:G2 * N + 3].set(mask.reshape(S * N, 1))

    hc0 = jnp.concatenate([h0, c0], axis=0)                    # (2N, R)

    kernel = functools.partial(_social_kernel, S, N, E, R, G2, OP)

    out_pad, hc_fin = pl.pallas_call(
        kernel,
        out_shape=(jax.ShapeDtypeStruct((S * N, OP), jnp.float32),
                   jax.ShapeDtypeStruct((2 * N, R), jnp.float32)),
        scratch_shapes=[pltpu.VMEM((S * N, 4 * R), jnp.float32),   # gates_x slab
                        pltpu.VMEM((S * N, R), jnp.float32)],      # h history slab
        cost_estimate=pl.CostEstimate(flops=4_800_000,
                                      transcendentals=20_000,
                                      bytes_accessed=260_000),
    )(d_slab, w_slab, hc0)

    outs = out_pad[:, :O].reshape(S, N, O)
    return outs, hc_fin[:N], hc_fin[N:]


# --------------------------- pure-JAX reference ----------------------------
def reference_forward(x, grids, mask, h0, c0, params):
    Wi, bi, Wt, bt, Wih, bih, Whh, bhh, Wo, bo = params
    S, N, _ = x.shape
    h, c = h0, c0
    outs = []
    for f in range(S):
        social = jnp.einsum('nmg,mr->ngr', grids[f], h).reshape(N, G2 * RNN)
        ie = jax.nn.relu(x[f] @ Wi.T + bi)
        te = jax.nn.relu(social @ Wt.T + bt)
        cat = jnp.concatenate([ie, te], axis=1)
        gates = cat @ Wih.T + bih + h @ Whh.T + bhh
        i_, f_, g_, o_ = jnp.split(gates, 4, axis=1)
        i_, f_, o_ = jax.nn.sigmoid(i_), jax.nn.sigmoid(f_), jax.nn.sigmoid(o_)
        g_ = jnp.tanh(g_)
        c_new = f_ * c + i_ * g_
        h_new = o_ * jnp.tanh(c_new)
        out = h_new @ Wo.T + bo
        m = mask[f] > 0.0
        outs.append(jnp.where(m, out, 0.0))
        h = jnp.where(m, h_new, h)
        c = jnp.where(m, c_new, c)
    return jnp.stack(outs), h, c


# --------------------------------- main ------------------------------------
if __name__ == "__main__":
    key = jax.random.PRNGKey(0)
    ks = jax.random.split(key, 16)
    s = 0.1

    # parameters (PyTorch layouts: Linear weight is (out, in))
    Wi = jax.random.normal(ks[0], (EMB, IN_SZ), jnp.float32) * s
    bi = jax.random.normal(ks[1], (EMB,), jnp.float32) * s
    Wt = jax.random.normal(ks[2], (EMB, G2 * RNN), jnp.float32) * s
    bt = jax.random.normal(ks[3], (EMB,), jnp.float32) * s
    Wih = jax.random.normal(ks[4], (4 * RNN, 2 * EMB), jnp.float32) * s
    bih = jax.random.normal(ks[5], (4 * RNN,), jnp.float32) * s
    Whh = jax.random.normal(ks[6], (4 * RNN, RNN), jnp.float32) * s
    bhh = jax.random.normal(ks[7], (4 * RNN,), jnp.float32) * s
    Wo = jax.random.normal(ks[8], (OUT_SZ, RNN), jnp.float32) * s
    bo = jax.random.normal(ks[9], (OUT_SZ,), jnp.float32) * s
    params = (Wi, bi, Wt, bt, Wih, bih, Whh, bhh, Wo, bo)

    # inputs
    x = jax.random.normal(ks[10], (SEQ_LEN, NUM_NODES, IN_SZ), jnp.float32)
    grids = (jax.random.uniform(ks[11], (SEQ_LEN, NUM_NODES, NUM_NODES, G2))
             > 0.7).astype(jnp.float32)                       # grid masks
    h0 = jax.random.normal(ks[12], (NUM_NODES, RNN), jnp.float32) * s
    c0 = jax.random.normal(ks[13], (NUM_NODES, RNN), jnp.float32) * s
    mask = jnp.ones((SEQ_LEN, NUM_NODES, 1), jnp.float32)     # all peds present

    outs, h_fin, c_fin = social_model_forward(x, grids, mask, h0, c0, params)
    jax.block_until_ready((outs, h_fin, c_fin))

    ref_outs, ref_h, ref_c = reference_forward(x, grids, mask, h0, c0, params)
    np.testing.assert_allclose(np.asarray(outs), np.asarray(ref_outs),
                               rtol=1e-4, atol=1e-5)
    np.testing.assert_allclose(np.asarray(h_fin), np.asarray(ref_h),
                               rtol=1e-4, atol=1e-5)
    np.testing.assert_allclose(np.asarray(c_fin), np.asarray(ref_c),
                               rtol=1e-4, atol=1e-5)

    print("KERNEL_OK")
</pallas_src>

<mosaic_0001>
module attributes {stable_mosaic.version = 11 : i64} {
  func.func @_social_kernel(%arg0: memref<64x136xf32, #tpu.memory_space<vmem>>, %arg1: memref<72x640xf32, #tpu.memory_space<vmem>>, %arg2: memref<16x32xf32, #tpu.memory_space<vmem>>, %arg3: memref<64x128xf32, #tpu.memory_space<vmem>>, %arg4: memref<16x32xf32, #tpu.memory_space<vmem>>, %arg5: memref<64x128xf32, #tpu.memory_space<vmem>>, %arg6: memref<64x32xf32, #tpu.memory_space<vmem>>) attributes {dimension_semantics = [], scalar_prefetch = 0 : i64, scratch_operands = 2 : i64, tpu.core_type = #tpu.core_type<tc>} {
    %c68 = arith.constant 68 : index
    %c0 = arith.constant 0 : index
    %0 = vector.load %arg1[%c68, %c0] : memref<72x640xf32, #tpu.memory_space<vmem>>, vector<2x32xf32>
    %c66 = arith.constant 66 : index
    %c0_0 = arith.constant 0 : index
    %1 = vector.load %arg1[%c66, %c0_0] : memref<72x640xf32, #tpu.memory_space<vmem>>, vector<1x32xf32>
    %c67 = arith.constant 67 : index
    %c0_1 = arith.constant 0 : index
    %2 = vector.load %arg1[%c67, %c0_1] : memref<72x640xf32, #tpu.memory_space<vmem>>, vector<1x32xf32>
    %c32 = arith.constant 32 : index
    %c128 = arith.constant 128 : index
    %3 = vector.load %arg1[%c32, %c128] : memref<72x640xf32, #tpu.memory_space<vmem>>, vector<32x128xf32>
    %c64 = arith.constant 64 : index
    %c0_2 = arith.constant 0 : index
    %4 = vector.load %arg1[%c64, %c0_2] : memref<72x640xf32, #tpu.memory_space<vmem>>, vector<1x128xf32>
    %c0_3 = arith.constant 0 : index
    %c128_4 = arith.constant 128 : index
    %5 = vector.load %arg0[%c0_3, %c128_4] : memref<64x136xf32, #tpu.memory_space<vmem>>, vector<64x2xf32>
    %cst = arith.constant dense<0.000000e+00> : vector<64x32xf32>
    %6 = tpu.matmul %5, %0, %cst {dimension_numbers = #tpu.dot_dimension_numbers<[1], [0], [0], [1], [0, 0, 1, 1], [], []>} : vector<64x2xf32>, vector<2x32xf32>, vector<64x32xf32> -> vector<64x32xf32>
    %7 = vector.broadcast %1 : vector<1x32xf32> to vector<64x32xf32>
    %8 = arith.addf %6, %7 : vector<64x32xf32>
    %cst_5 = arith.constant 0.000000e+00 : f32
    %9 = vector.broadcast %cst_5 : f32 to vector<64x32xf32>
    %10 = arith.maximumf %8, %9 : vector<64x32xf32>
    %cst_6 = arith.constant dense<0.000000e+00> : vector<64x128xf32>
    %11 = tpu.matmul %10, %3, %cst_6 {dimension_numbers = #tpu.dot_dimension_numbers<[1], [0], [0], [1], [0, 0, 1, 1], [], []>} : vector<64x32xf32>, vector<32x128xf32>, vector<64x128xf32> -> vector<64x128xf32>
    %12 = vector.broadcast %4 : vector<1x128xf32> to vector<64x128xf32>
    %13 = arith.addf %11, %12 : vector<64x128xf32>
    %c0_7 = arith.constant 0 : index
    %c0_8 = arith.constant 0 : index
    %14 = vector.load %arg5[%c0_7, %c0_8] : memref<64x128xf32, #tpu.memory_space<vmem>>, vector<64x128xf32>
    tpu.vector_store %arg5[%c0_7, %c0_8], %13 {strides = array<i32>} : memref<64x128xf32, #tpu.memory_space<vmem>>, vector<64x128xf32>,
    %15 = vector.shape_cast %2 : vector<1x32xf32> to vector<1x32xf32>
    %16 = vector.broadcast %15 : vector<1x32xf32> to vector<8x32xf32>
    %c0_9 = arith.constant 0 : index
    %c0_10 = arith.constant 0 : index
    %17 = vector.load %arg2[%c0_9, %c0_10] : memref<16x32xf32, #tpu.memory_space<vmem>>, vector<8x32xf32>
    %c8 = arith.constant 8 : index
    %c0_11 = arith.constant 0 : index
    %18 = vector.load %arg2[%c8, %c0_11] : memref<16x32xf32, #tpu.memory_space<vmem>>, vector<8x32xf32>
    %c0_12 = arith.constant 0 : index
    %c0_13 = arith.constant 0 : index
    %19 = vector.load %arg1[%c0_12, %c0_13] : memref<72x640xf32, #tpu.memory_space<vmem>>, vector<32x640xf32>
    %cst_14 = arith.constant dense<0.000000e+00> : vector<8x640xf32>
    %20 = tpu.matmul %17, %19, %cst_14 {dimension_numbers = #tpu.dot_dimension_numbers<[1], [0], [0], [1], [0, 0, 1, 1], [], []>} : vector<8x32xf32>, vector<32x640xf32>, vector<8x640xf32> -> vector<8x640xf32>
    %21 = vector.extract_strided_slice %20 {offsets = [0, 512], sizes = [8, 128], strides = [1, 1]} : vector<8x640xf32> to vector<8x128xf32>
    %22 = vector.extract_strided_slice %20 {offsets = [0, 0], sizes = [8, 32], strides = [1, 1]} : vector<8x640xf32> to vector<8x32xf32>
    %23 = vector.extract_strided_slice %20 {offsets = [0, 32], sizes = [8, 32], strides = [1, 1]} : vector<8x640xf32> to vector<8x32xf32>
    %24 = vector.extract_strided_slice %20 {offsets = [0, 64], sizes = [8, 32], strides = [1, 1]} : vector<8x640xf32> to vector<8x32xf32>
    %25 = vector.extract_strided_slice %20 {offsets = [0, 96], sizes = [8, 32], strides = [1, 1]} : vector<8x640xf32> to vector<8x32xf32>
    %26 = vector.extract_strided_slice %20 {offsets = [0, 128], sizes = [8, 32], strides = [1, 1]} : vector<8x640xf32> to vector<8x32xf32>
    %27 = vector.extract_strided_slice %20 {offsets = [0, 160], sizes = [8, 32], strides = [1, 1]} : vector<8x640xf32> to vector<8x32xf32>
    %28 = vector.extract_strided_slice %20 {offsets = [0, 192], sizes = [8, 32], strides = [1, 1]} : vector<8x640xf32> to vector<8x32xf32>
    %29 = vector.extract_strided_slice %20 {offsets = [0, 224], sizes = [8, 32], strides = [1, 1]} : vector<8x640xf32> to vector<8x32xf32>
    %30 = vector.extract_strided_slice %20 {offsets = [0, 256], sizes = [8, 32], strides = [1, 1]} : vector<8x640xf32> to vector<8x32xf32>
    %31 = vector.extract_strided_slice %20 {offsets = [0, 288], sizes = [8, 32], strides = [1, 1]} : vector<8x640xf32> to vector<8x32xf32>
    %32 = vector.extract_strided_slice %20 {offsets = [0, 320], sizes = [8, 32], strides = [1, 1]} : vector<8x640xf32> to vector<8x32xf32>
    %33 = vector.extract_strided_slice %20 {offsets = [0, 352], sizes = [8, 32], strides = [1, 1]} : vector<8x640xf32> to vector<8x32xf32>
    %34 = vector.extract_strided_slice %20 {offsets = [0, 384], sizes = [8, 32], strides = [1, 1]} : vector<8x640xf32> to vector<8x32xf32>
    %35 = vector.extract_strided_slice %20 {offsets = [0, 416], sizes = [8, 32], strides = [1, 1]} : vector<8x640xf32> to vector<8x32xf32>
    %36 = vector.extract_strided_slice %20 {offsets = [0, 448], sizes = [8, 32], strides = [1, 1]} : vector<8x640xf32> to vector<8x32xf32>
    %37 = vector.extract_strided_slice %20 {offsets = [0, 480], sizes = [8, 32], strides = [1, 1]} : vector<8x640xf32> to vector<8x32xf32>
    %38 = tpu.concatenate %22, %23, %24, %25, %26, %27, %28, %29, %30, %31, %32, %33, %34, %35, %36, %37 in 0 : vector<8x32xf32>, vector<8x32xf32>, vector<8x32xf32>, vector<8x32xf32>, vector<8x32xf32>, vector<8x32xf32>, vector<8x32xf32>, vector<8x32xf32>, vector<8x32xf32>, vector<8x32xf32>, vector<8x32xf32>, vector<8x32xf32>, vector<8x32xf32>, vector<8x32xf32>, vector<8x32xf32>, vector<8x32xf32> -> vector<128x32xf32>
    %c0_15 = arith.constant 0 : index
    %c0_16 = arith.constant 0 : index
    %39 = vector.load %arg0[%c0_15, %c0_16] : memref<64x136xf32, #tpu.memory_space<vmem>>, vector<8x128xf32>
    %cst_17 = arith.constant dense<0.000000e+00> : vector<8x32xf32>
    %40 = tpu.matmul %39, %38, %cst_17 {dimension_numbers = #tpu.dot_dimension_numbers<[1], [0], [0], [1], [0, 0, 1, 1], [], []>} : vector<8x128xf32>, vector<128x32xf32>, vector<8x32xf32> -> vector<8x32xf32>
    %41 = arith.addf %40, %16 : vector<8x32xf32>
    %cst_18 = arith.constant 0.000000e+00 : f32
    %42 = vector.broadcast %cst_18 : f32 to vector<8x32xf32>
    %43 = arith.maximumf %41, %42 : vector<8x32xf32>
    %c0_19 = arith.constant 0 : index
    %c0_20 = arith.constant 0 : index
    %44 = vector.load %arg5[%c0_19, %c0_20] : memref<64x128xf32, #tpu.memory_space<vmem>>, vector<8x128xf32>
    %45 = arith.addf %44, %21 : vector<8x128xf32>
    %c32_21 = arith.constant 32 : index
    %c0_22 = arith.constant 0 : index
    %46 = vector.load %arg1[%c32_21, %c0_22] : memref<72x640xf32, #tpu.memory_space<vmem>>, vector<32x128xf32>
    %cst_23 = arith.constant dense<0.000000e+00> : vector<8x128xf32>
    %47 = tpu.matmul %43, %46, %cst_23 {dimension_numbers = #tpu.dot_dimension_numbers<[1], [0], [0], [1], [0, 0, 1, 1], [], []>} : vector<8x32xf32>, vector<32x128xf32>, vector<8x128xf32> -> vector<8x128xf32>
    %48 = arith.addf %45, %47 : vector<8x128xf32>
    %49 = arith.negf %48 : vector<8x128xf32>
    %50 = math.exp %49 : vector<8x128xf32>
    %cst_24 = arith.constant 1.000000e+00 : f32
    %51 = vector.broadcast %cst_24 : f32 to vector<8x128xf32>
    %52 = arith.addf %51, %50 : vector<8x128xf32>
    %53 = arith.divf %51, %52 : vector<8x128xf32>
    %54 = math.tanh %48 : vector<8x128xf32>
    %55 = vector.extract_strided_slice %53 {offsets = [0, 0], sizes = [8, 32], strides = [1, 1]} : vector<8x128xf32> to vector<8x32xf32>
    %56 = vector.extract_strided_slice %53 {offsets = [0, 32], sizes = [8, 32], strides = [1, 1]} : vector<8x128xf32> to vector<8x32xf32>
    %57 = vector.extract_strided_slice %53 {offsets = [0, 64], sizes = [8, 32], strides = [1, 1]} : vector<8x128xf32> to vector<8x32xf32>
    %58 = vector.extract_strided_slice %54 {offsets = [0, 96], sizes = [8, 32], strides = [1, 1]} : vector<8x128xf32> to vector<8x32xf32>
    %59 = arith.mulf %56, %18 : vector<8x32xf32>
    %60 = arith.mulf %55, %58 : vector<8x32xf32>
    %61 = arith.addf %59, %60 : vector<8x32xf32>
    %62 = math.tanh %61 : vector<8x32xf32>
    %63 = arith.mulf %57, %62 : vector<8x32xf32>
    %c0_25 = arith.constant 0 : index
    %c0_26 = arith.constant 0 : index
    %64 = vector.load %arg6[%c0_25, %c0_26] : memref<64x32xf32, #tpu.memory_space<vmem>>, vector<8x32xf32>
    tpu.vector_store %arg6[%c0_25, %c0_26], %63 {strides = array<i32>} : memref<64x32xf32, #tpu.memory_space<vmem>>, vector<8x32xf32>,
    %c0_27 = arith.constant 0 : index
    %c130 = arith.constant 130 : index
    %65 = vector.load %arg0[%c0_27, %c130] : memref<64x136xf32, #tpu.memory_space<vmem>>, vector<8x1xf32>
    %cst_28 = arith.constant 0.000000e+00 : f32
    %66 = vector.broadcast %cst_28 : f32 to vector<8x1xf32>
    %67 = arith.cmpf ogt, %65, %66 : vector<8x1xf32>
    %68 = vector.shape_cast %67 : vector<8x1xi1> to vector<8x1xi1>
    %69 = vector.broadcast %68 : vector<8x1xi1> to vector<8x32xi1>
    %70 = arith.select %69, %63, %17 : vector<8x32xi1>, vector<8x32xf32>
    %71 = vector.shape_cast %67 : vector<8x1xi1> to vector<8x1xi1>
    %72 = vector.broadcast %71 : vector<8x1xi1> to vector<8x32xi1>
    %73 = arith.select %72, %61, %18 : vector<8x32xi1>, vector<8x32xf32>
    %c0_29 = arith.constant 0 : index
    %c0_30 = arith.constant 0 : index
    %74 = vector.load %arg1[%c0_29, %c0_30] : memref<72x640xf32, #tpu.memory_space<vmem>>, vector<32x640xf32>
    %cst_31 = arith.constant dense<0.000000e+00> : vector<8x640xf32>
    %75 = tpu.matmul %70, %74, %cst_31 {dimension_numbers = #tpu.dot_dimension_numbers<[1], [0], [0], [1], [0, 0, 1, 1], [], []>} : vector<8x32xf32>, vector<32x640xf32>, vector<8x640xf32> -> vector<8x640xf32>
    %76 = vector.extract_strided_slice %75 {offsets = [0, 512], sizes = [8, 128], strides = [1, 1]} : vector<8x640xf32> to vector<8x128xf32>
    %77 = vector.extract_strided_slice %75 {offsets = [0, 0], sizes = [8, 32], strides = [1, 1]} : vector<8x640xf32> to vector<8x32xf32>
    %78 = vector.extract_strided_slice %75 {offsets = [0, 32], sizes = [8, 32], strides = [1, 1]} : vector<8x640xf32> to vector<8x32xf32>
    %79 = vector.extract_strided_slice %75 {offsets = [0, 64], sizes = [8, 32], strides = [1, 1]} : vector<8x640xf32> to vector<8x32xf32>
    %80 = vector.extract_strided_slice %75 {offsets = [0, 96], sizes = [8, 32], strides = [1, 1]} : vector<8x640xf32> to vector<8x32xf32>
    %81 = vector.extract_strided_slice %75 {offsets = [0, 128], sizes = [8, 32], strides = [1, 1]} : vector<8x640xf32> to vector<8x32xf32>
    %82 = vector.extract_strided_slice %75 {offsets = [0, 160], sizes = [8, 32], strides = [1, 1]} : vector<8x640xf32> to vector<8x32xf32>
    %83 = vector.extract_strided_slice %75 {offsets = [0, 192], sizes = [8, 32], strides = [1, 1]} : vector<8x640xf32> to vector<8x32xf32>
    %84 = vector.extract_strided_slice %75 {offsets = [0, 224], sizes = [8, 32], strides = [1, 1]} : vector<8x640xf32> to vector<8x32xf32>
    %85 = vector.extract_strided_slice %75 {offsets = [0, 256], sizes = [8, 32], strides = [1, 1]} : vector<8x640xf32> to vector<8x32xf32>
    %86 = vector.extract_strided_slice %75 {offsets = [0, 288], sizes = [8, 32], strides = [1, 1]} : vector<8x640xf32> to vector<8x32xf32>
    %87 = vector.extract_strided_slice %75 {offsets = [0, 320], sizes = [8, 32], strides = [1, 1]} : vector<8x640xf32> to vector<8x32xf32>
    %88 = vector.extract_strided_slice %75 {offsets = [0, 352], sizes = [8, 32], strides = [1, 1]} : vector<8x640xf32> to vector<8x32xf32>
    %89 = vector.extract_strided_slice %75 {offsets = [0, 384], sizes = [8, 32], strides = [1, 1]} : vector<8x640xf32> to vector<8x32xf32>
    %90 = vector.extract_strided_slice %75 {offsets = [0, 416], sizes = [8, 32], strides = [1, 1]} : vector<8x640xf32> to vector<8x32xf32>
    %91 = vector.extract_strided_slice %75 {offsets = [0, 448], sizes = [8, 32], strides = [1, 1]} : vector<8x640xf32> to vector<8x32xf32>
    %92 = vector.extract_strided_slice %75 {offsets = [0, 480], sizes = [8, 32], strides = [1, 1]} : vector<8x640xf32> to vector<8x32xf32>
    %93 = tpu.concatenate %77, %78, %79, %80, %81, %82, %83, %84, %85, %86, %87, %88, %89, %90, %91, %92 in 0 : vector<8x32xf32>, vector<8x32xf32>, vector<8x32xf32>, vector<8x32xf32>, vector<8x32xf32>, vector<8x32xf32>, vector<8x32xf32>, vector<8x32xf32>, vector<8x32xf32>, vector<8x32xf32>, vector<8x32xf32>, vector<8x32xf32>, vector<8x32xf32>, vector<8x32xf32>, vector<8x32xf32>, vector<8x32xf32> -> vector<128x32xf32>
    %c8_32 = arith.constant 8 : index
    %c0_33 = arith.constant 0 : index
    %94 = vector.load %arg0[%c8_32, %c0_33] : memref<64x136xf32, #tpu.memory_space<vmem>>, vector<8x128xf32>
    %cst_34 = arith.constant dense<0.000000e+00> : vector<8x32xf32>
    %95 = tpu.matmul %94, %93, %cst_34 {dimension_numbers = #tpu.dot_dimension_numbers<[1], [0], [0], [1], [0, 0, 1, 1], [], []>} : vector<8x128xf32>, vector<128x32xf32>, vector<8x32xf32> -> vector<8x32xf32>
    %96 = arith.addf %95, %16 : vector<8x32xf32>
    %cst_35 = arith.constant 0.000000e+00 : f32
    %97 = vector.broadcast %cst_35 : f32 to vector<8x32xf32>
    %98 = arith.maximumf %96, %97 : vector<8x32xf32>
    %c8_36 = arith.constant 8 : index
    %c0_37 = arith.constant 0 : index
    %99 = vector.load %arg5[%c8_36, %c0_37] : memref<64x128xf32, #tpu.memory_space<vmem>>, vector<8x128xf32>
    %100 = arith.addf %99, %76 : vector<8x128xf32>
    %c32_38 = arith.constant 32 : index
    %c0_39 = arith.constant 0 : index
    %101 = vector.load %arg1[%c32_38, %c0_39] : memref<72x640xf32, #tpu.memory_space<vmem>>, vector<32x128xf32>
    %cst_40 = arith.constant dense<0.000000e+00> : vector<8x128xf32>
    %102 = tpu.matmul %98, %101, %cst_40 {dimension_numbers = #tpu.dot_dimension_numbers<[1], [0], [0], [1], [0, 0, 1, 1], [], []>} : vector<8x32xf32>, vector<32x128xf32>, vector<8x128xf32> -> vector<8x128xf32>
    %103 = arith.addf %100, %102 : vector<8x128xf32>
    %104 = arith.negf %103 : vector<8x128xf32>
    %105 = math.exp %104 : vector<8x128xf32>
    %cst_41 = arith.constant 1.000000e+00 : f32
    %106 = vector.broadcast %cst_41 : f32 to vector<8x128xf32>
    %107 = arith.addf %106, %105 : vector<8x128xf32>
    %108 = arith.divf %106, %107 : vector<8x128xf32>
    %109 = math.tanh %103 : vector<8x128xf32>
    %110 = vector.extract_strided_slice %108 {offsets = [0, 0], sizes = [8, 32], strides = [1, 1]} : vector<8x128xf32> to vector<8x32xf32>
    %111 = vector.extract_strided_slice %108 {offsets = [0, 32], sizes = [8, 32], strides = [1, 1]} : vector<8x128xf32> to vector<8x32xf32>
    %112 = vector.extract_strided_slice %108 {offsets = [0, 64], sizes = [8, 32], strides = [1, 1]} : vector<8x128xf32> to vector<8x32xf32>
    %113 = vector.extract_strided_slice %109 {offsets = [0, 96], sizes = [8, 32], strides = [1, 1]} : vector<8x128xf32> to vector<8x32xf32>
    %114 = arith.mulf %111, %73 : vector<8x32xf32>
    %115 = arith.mulf %110, %113 : vector<8x32xf32>
    %116 = arith.addf %114, %115 : vector<8x32xf32>
    %117 = math.tanh %116 : vector<8x32xf32>
    %118 = arith.mulf %112, %117 : vector<8x32xf32>
    %c8_42 = arith.constant 8 : index
    %c0_43 = arith.constant 0 : index
    %119 = vector.load %arg6[%c8_42, %c0_43] : memref<64x32xf32, #tpu.memory_space<vmem>>, vector<8x32xf32>
    tpu.vector_store %arg6[%c8_42, %c0_43], %118 {strides = array<i32>} : memref<64x32xf32, #tpu.memory_space<vmem>>, vector<8x32xf32>,
    %c8_44 = arith.constant 8 : index
    %c130_45 = arith.constant 130 : index
    %120 = vector.load %arg0[%c8_44, %c130_45] : memref<64x136xf32, #tpu.memory_space<vmem>>, vector<8x1xf32>
    %cst_46 = arith.constant 0.000000e+00 : f32
    %121 = vector.broadcast %cst_46 : f32 to vector<8x1xf32>
    %122 = arith.cmpf ogt, %120, %121 : vector<8x1xf32>
    %123 = vector.shape_cast %122 : vector<8x1xi1> to vector<8x1xi1>
    %124 = vector.broadcast %123 : vector<8x1xi1> to vector<8x32xi1>
    %125 = arith.select %124, %118, %70 : vector<8x32xi1>, vector<8x32xf32>
    %126 = vector.shape_cast %122 : vector<8x1xi1> to vector<8x1xi1>
    %127 = vector.broadcast %126 : vector<8x1xi1> to vector<8x32xi1>
    %128 = arith.select %127, %116, %73 : vector<8x32xi1>, vector<8x32xf32>
    %c0_47 = arith.constant 0 : index
    %c0_48 = arith.constant 0 : index
    %129 = vector.load %arg1[%c0_47, %c0_48] : memref<72x640xf32, #tpu.memory_space<vmem>>, vector<32x640xf32>
    %cst_49 = arith.constant dense<0.000000e+00> : vector<8x640xf32>
    %130 = tpu.matmul %125, %129, %cst_49 {dimension_numbers = #tpu.dot_dimension_numbers<[1], [0], [0], [1], [0, 0, 1, 1], [], []>} : vector<8x32xf32>, vector<32x640xf32>, vector<8x640xf32> -> vector<8x640xf32>
    %131 = vector.extract_strided_slice %130 {offsets = [0, 512], sizes = [8, 128], strides = [1, 1]} : vector<8x640xf32> to vector<8x128xf32>
    %132 = vector.extract_strided_slice %130 {offsets = [0, 0], sizes = [8, 32], strides = [1, 1]} : vector<8x640xf32> to vector<8x32xf32>
    %133 = vector.extract_strided_slice %130 {offsets = [0, 32], sizes = [8, 32], strides = [1, 1]} : vector<8x640xf32> to vector<8x32xf32>
    %134 = vector.extract_strided_slice %130 {offsets = [0, 64], sizes = [8, 32], strides = [1, 1]} : vector<8x640xf32> to vector<8x32xf32>
    %135 = vector.extract_strided_slice %130 {offsets = [0, 96], sizes = [8, 32], strides = [1, 1]} : vector<8x640xf32> to vector<8x32xf32>
    %136 = vector.extract_strided_slice %130 {offsets = [0, 128], sizes = [8, 32], strides = [1, 1]} : vector<8x640xf32> to vector<8x32xf32>
    %137 = vector.extract_strided_slice %130 {offsets = [0, 160], sizes = [8, 32], strides = [1, 1]} : vector<8x640xf32> to vector<8x32xf32>
    %138 = vector.extract_strided_slice %130 {offsets = [0, 192], sizes = [8, 32], strides = [1, 1]} : vector<8x640xf32> to vector<8x32xf32>
    %139 = vector.extract_strided_slice %130 {offsets = [0, 224], sizes = [8, 32], strides = [1, 1]} : vector<8x640xf32> to vector<8x32xf32>
    %140 = vector.extract_strided_slice %130 {offsets = [0, 256], sizes = [8, 32], strides = [1, 1]} : vector<8x640xf32> to vector<8x32xf32>
    %141 = vector.extract_strided_slice %130 {offsets = [0, 288], sizes = [8, 32], strides = [1, 1]} : vector<8x640xf32> to vector<8x32xf32>
    %142 = vector.extract_strided_slice %130 {offsets = [0, 320], sizes = [8, 32], strides = [1, 1]} : vector<8x640xf32> to vector<8x32xf32>
    %143 = vector.extract_strided_slice %130 {offsets = [0, 352], sizes = [8, 32], strides = [1, 1]} : vector<8x640xf32> to vector<8x32xf32>
    %144 = vector.extract_strided_slice %130 {offsets = [0, 384], sizes = [8, 32], strides = [1, 1]} : vector<8x640xf32> to vector<8x32xf32>
    %145 = vector.extract_strided_slice %130 {offsets = [0, 416], sizes = [8, 32], strides = [1, 1]} : vector<8x640xf32> to vector<8x32xf32>
    %146 = vector.extract_strided_slice %130 {offsets = [0, 448], sizes = [8, 32], strides = [1, 1]} : vector<8x640xf32> to vector<8x32xf32>
    %147 = vector.extract_strided_slice %130 {offsets = [0, 480], sizes = [8, 32], strides = [1, 1]} : vector<8x640xf32> to vector<8x32xf32>
    %148 = tpu.concatenate %132, %133, %134, %135, %136, %137, %138, %139, %140, %141, %142, %143, %144, %145, %146, %147 in 0 : vector<8x32xf32>, vector<8x32xf32>, vector<8x32xf32>, vector<8x32xf32>, vector<8x32xf32>, vector<8x32xf32>, vector<8x32xf32>, vector<8x32xf32>, vector<8x32xf32>, vector<8x32xf32>, vector<8x32xf32>, vector<8x32xf32>, vector<8x32xf32>, vector<8x32xf32>, vector<8x32xf32>, vector<8x32xf32> -> vector<128x32xf32>
    %c16 = arith.constant 16 : index
    %c0_50 = arith.constant 0 : index
    %149 = vector.load %arg0[%c16, %c0_50] : memref<64x136xf32, #tpu.memory_space<vmem>>, vector<8x128xf32>
    %cst_51 = arith.constant dense<0.000000e+00> : vector<8x32xf32>
    %150 = tpu.matmul %149, %148, %cst_51 {dimension_numbers = #tpu.dot_dimension_numbers<[1], [0], [0], [1], [0, 0, 1, 1], [], []>} : vector<8x128xf32>, vector<128x32xf32>, vector<8x32xf32> -> vector<8x32xf32>
    %151 = arith.addf %150, %16 : vector<8x32xf32>
    %cst_52 = arith.constant 0.000000e+00 : f32
    %152 = vector.broadcast %cst_52 : f32 to vector<8x32xf32>
    %153 = arith.maximumf %151, %152 : vector<8x32xf32>
    %c16_53 = arith.constant 16 : index
    %c0_54 = arith.constant 0 : index
    %154 = vector.load %arg5[%c16_53, %c0_54] : memref<64x128xf32, #tpu.memory_space<vmem>>, vector<8x128xf32>
    %155 = arith.addf %154, %131 : vector<8x128xf32>
    %c32_55 = arith.constant 32 : index
    %c0_56 = arith.constant 0 : index
    %156 = vector.load %arg1[%c32_55, %c0_56] : memref<72x640xf32, #tpu.memory_space<vmem>>, vector<32x128xf32>
    %cst_57 = arith.constant dense<0.000000e+00> : vector<8x128xf32>
    %157 = tpu.matmul %153, %156, %cst_57 {dimension_numbers = #tpu.dot_dimension_numbers<[1], [0], [0], [1], [0, 0, 1, 1], [], []>} : vector<8x32xf32>, vector<32x128xf32>, vector<8x128xf32> -> vector<8x128xf32>
    %158 = arith.addf %155, %157 : vector<8x128xf32>
    %159 = arith.negf %158 : vector<8x128xf32>
    %160 = math.exp %159 : vector<8x128xf32>
    %cst_58 = arith.constant 1.000000e+00 : f32
    %161 = vector.broadcast %cst_58 : f32 to vector<8x128xf32>
    %162 = arith.addf %161, %160 : vector<8x128xf32>
    %163 = arith.divf %161, %162 : vector<8x128xf32>
    %164 = math.tanh %158 : vector<8x128xf32>
    %165 = vector.extract_strided_slice %163 {offsets = [0, 0], sizes = [8, 32], strides = [1, 1]} : vector<8x128xf32> to vector<8x32xf32>
    %166 = vector.extract_strided_slice %163 {offsets = [0, 32], sizes = [8, 32], strides = [1, 1]} : vector<8x128xf32> to vector<8x32xf32>
    %167 = vector.extract_strided_slice %163 {offsets = [0, 64], sizes = [8, 32], strides = [1, 1]} : vector<8x128xf32> to vector<8x32xf32>
    %168 = vector.extract_strided_slice %164 {offsets = [0, 96], sizes = [8, 32], strides = [1, 1]} : vector<8x128xf32> to vector<8x32xf32>
    %169 = arith.mulf %166, %128 : vector<8x32xf32>
    %170 = arith.mulf %165, %168 : vector<8x32xf32>
    %171 = arith.addf %169, %170 : vector<8x32xf32>
    %172 = math.tanh %171 : vector<8x32xf32>
    %173 = arith.mulf %167, %172 : vector<8x32xf32>
    %c16_59 = arith.constant 16 : index
    %c0_60 = arith.constant 0 : index
    %174 = vector.load %arg6[%c16_59, %c0_60] : memref<64x32xf32, #tpu.memory_space<vmem>>, vector<8x32xf32>
    tpu.vector_store %arg6[%c16_59, %c0_60], %173 {strides = array<i32>} : memref<64x32xf32, #tpu.memory_space<vmem>>, vector<8x32xf32>,
    %c16_61 = arith.constant 16 : index
    %c130_62 = arith.constant 130 : index
    %175 = vector.load %arg0[%c16_61, %c130_62] : memref<64x136xf32, #tpu.memory_space<vmem>>, vector<8x1xf32>
    %cst_63 = arith.constant 0.000000e+00 : f32
    %176 = vector.broadcast %cst_63 : f32 to vector<8x1xf32>
    %177 = arith.cmpf ogt, %175, %176 : vector<8x1xf32>
    %178 = vector.shape_cast %177 : vector<8x1xi1> to vector<8x1xi1>
    %179 = vector.broadcast %178 : vector<8x1xi1> to vector<8x32xi1>
    %180 = arith.select %179, %173, %125 : vector<8x32xi1>, vector<8x32xf32>
    %181 = vector.shape_cast %177 : vector<8x1xi1> to vector<8x1xi1>
    %182 = vector.broadcast %181 : vector<8x1xi1> to vector<8x32xi1>
    %183 = arith.select %182, %171, %128 : vector<8x32xi1>, vector<8x32xf32>
    %c0_64 = arith.constant 0 : index
    %c0_65 = arith.constant 0 : index
    %184 = vector.load %arg1[%c0_64, %c0_65] : memref<72x640xf32, #tpu.memory_space<vmem>>, vector<32x640xf32>
    %cst_66 = arith.constant dense<0.000000e+00> : vector<8x640xf32>
    %185 = tpu.matmul %180, %184, %cst_66 {dimension_numbers = #tpu.dot_dimension_numbers<[1], [0], [0], [1], [0, 0, 1, 1], [], []>} : vector<8x32xf32>, vector<32x640xf32>, vector<8x640xf32> -> vector<8x640xf32>
    %186 = vector.extract_strided_slice %185 {offsets = [0, 512], sizes = [8, 128], strides = [1, 1]} : vector<8x640xf32> to vector<8x128xf32>
    %187 = vector.extract_strided_slice %185 {offsets = [0, 0], sizes = [8, 32], strides = [1, 1]} : vector<8x640xf32> to vector<8x32xf32>
    %188 = vector.extract_strided_slice %185 {offsets = [0, 32], sizes = [8, 32], strides = [1, 1]} : vector<8x640xf32> to vector<8x32xf32>
    %189 = vector.extract_strided_slice %185 {offsets = [0, 64], sizes = [8, 32], strides = [1, 1]} : vector<8x640xf32> to vector<8x32xf32>
    %190 = vector.extract_strided_slice %185 {offsets = [0, 96], sizes = [8, 32], strides = [1, 1]} : vector<8x640xf32> to vector<8x32xf32>
    %191 = vector.extract_strided_slice %185 {offsets = [0, 128], sizes = [8, 32], strides = [1, 1]} : vector<8x640xf32> to vector<8x32xf32>
    %192 = vector.extract_strided_slice %185 {offsets = [0, 160], sizes = [8, 32], strides = [1, 1]} : vector<8x640xf32> to vector<8x32xf32>
    %193 = vector.extract_strided_slice %185 {offsets = [0, 192], sizes = [8, 32], strides = [1, 1]} : vector<8x640xf32> to vector<8x32xf32>
    %194 = vector.extract_strided_slice %185 {offsets = [0, 224], sizes = [8, 32], strides = [1, 1]} : vector<8x640xf32> to vector<8x32xf32>
    %195 = vector.extract_strided_slice %185 {offsets = [0, 256], sizes = [8, 32], strides = [1, 1]} : vector<8x640xf32> to vector<8x32xf32>
    %196 = vector.extract_strided_slice %185 {offsets = [0, 288], sizes = [8, 32], strides = [1, 1]} : vector<8x640xf32> to vector<8x32xf32>
    %197 = vector.extract_strided_slice %185 {offsets = [0, 320], sizes = [8, 32], strides = [1, 1]} : vector<8x640xf32> to vector<8x32xf32>
    %198 = vector.extract_strided_slice %185 {offsets = [0, 352], sizes = [8, 32], strides = [1, 1]} : vector<8x640xf32> to vector<8x32xf32>
    %199 = vector.extract_strided_slice %185 {offsets = [0, 384], sizes = [8, 32], strides = [1, 1]} : vector<8x640xf32> to vector<8x32xf32>
    %200 = vector.extract_strided_slice %185 {offsets = [0, 416], sizes = [8, 32], strides = [1, 1]} : vector<8x640xf32> to vector<8x32xf32>
    %201 = vector.extract_strided_slice %185 {offsets = [0, 448], sizes = [8, 32], strides = [1, 1]} : vector<8x640xf32> to vector<8x32xf32>
    %202 = vector.extract_strided_slice %185 {offsets = [0, 480], sizes = [8, 32], strides = [1, 1]} : vector<8x640xf32> to vector<8x32xf32>
    %203 = tpu.concatenate %187, %188, %189, %190, %191, %192, %193, %194, %195, %196, %197, %198, %199, %200, %201, %202 in 0 : vector<8x32xf32>, vector<8x32xf32>, vector<8x32xf32>, vector<8x32xf32>, vector<8x32xf32>, vector<8x32xf32>, vector<8x32xf32>, vector<8x32xf32>, vector<8x32xf32>, vector<8x32xf32>, vector<8x32xf32>, vector<8x32xf32>, vector<8x32xf32>, vector<8x32xf32>, vector<8x32xf32>, vector<8x32xf32> -> vector<128x32xf32>
    %c24 = arith.constant 24 : index
    %c0_67 = arith.constant 0 : index
    %204 = vector.load %arg0[%c24, %c0_67] : memref<64x136xf32, #tpu.memory_space<vmem>>, vector<8x128xf32>
    %cst_68 = arith.constant dense<0.000000e+00> : vector<8x32xf32>
    %205 = tpu.matmul %204, %203, %cst_68 {dimension_numbers = #tpu.dot_dimension_numbers<[1], [0], [0], [1], [0, 0, 1, 1], [], []>} : vector<8x128xf32>, vector<128x32xf32>, vector<8x32xf32> -> vector<8x32xf32>
    %206 = arith.addf %205, %16 : vector<8x32xf32>
    %cst_69 = arith.constant 0.000000e+00 : f32
    %207 = vector.broadcast %cst_69 : f32 to vector<8x32xf32>
    %208 = arith.maximumf %206, %207 : vector<8x32xf32>
    %c24_70 = arith.constant 24 : index
    %c0_71 = arith.constant 0 : index
    %209 = vector.load %arg5[%c24_70, %c0_71] : memref<64x128xf32, #tpu.memory_space<vmem>>, vector<8x128xf32>
    %210 = arith.addf %209, %186 : vector<8x128xf32>
    %c32_72 = arith.constant 32 : index
    %c0_73 = arith.constant 0 : index
    %211 = vector.load %arg1[%c32_72, %c0_73] : memref<72x640xf32, #tpu.memory_space<vmem>>, vector<32x128xf32>
    %cst_74 = arith.constant dense<0.000000e+00> : vector<8x128xf32>
    %212 = tpu.matmul %208, %211, %cst_74 {dimension_numbers = #tpu.dot_dimension_numbers<[1], [0], [0], [1], [0, 0, 1, 1], [], []>} : vector<8x32xf32>, vector<32x128xf32>, vector<8x128xf32> -> vector<8x128xf32>
    %213 = arith.addf %210, %212 : vector<8x128xf32>
    %214 = arith.negf %213 : vector<8x128xf32>
    %215 = math.exp %214 : vector<8x128xf32>
    %cst_75 = arith.constant 1.000000e+00 : f32
    %216 = vector.broadcast %cst_75 : f32 to vector<8x128xf32>
    %217 = arith.addf %216, %215 : vector<8x128xf32>
    %218 = arith.divf %216, %217 : vector<8x128xf32>
    %219 = math.tanh %213 : vector<8x128xf32>
    %220 = vector.extract_strided_slice %218 {offsets = [0, 0], sizes = [8, 32], strides = [1, 1]} : vector<8x128xf32> to vector<8x32xf32>
    %221 = vector.extract_strided_slice %218 {offsets = [0, 32], sizes = [8, 32], strides = [1, 1]} : vector<8x128xf32> to vector<8x32xf32>
    %222 = vector.extract_strided_slice %218 {offsets = [0, 64], sizes = [8, 32], strides = [1, 1]} : vector<8x128xf32> to vector<8x32xf32>
    %223 = vector.extract_strided_slice %219 {offsets = [0, 96], sizes = [8, 32], strides = [1, 1]} : vector<8x128xf32> to vector<8x32xf32>
    %224 = arith.mulf %221, %183 : vector<8x32xf32>
    %225 = arith.mulf %220, %223 : vector<8x32xf32>
    %226 = arith.addf %224, %225 : vector<8x32xf32>
    %227 = math.tanh %226 : vector<8x32xf32>
    %228 = arith.mulf %222, %227 : vector<8x32xf32>
    %c24_76 = arith.constant 24 : index
    %c0_77 = arith.constant 0 : index
    %229 = vector.load %arg6[%c24_76, %c0_77] : memref<64x32xf32, #tpu.memory_space<vmem>>, vector<8x32xf32>
    tpu.vector_store %arg6[%c24_76, %c0_77], %228 {strides = array<i32>} : memref<64x32xf32, #tpu.memory_space<vmem>>, vector<8x32xf32>,
    %c24_78 = arith.constant 24 : index
    %c130_79 = arith.constant 130 : index
    %230 = vector.load %arg0[%c24_78, %c130_79] : memref<64x136xf32, #tpu.memory_space<vmem>>, vector<8x1xf32>
    %cst_80 = arith.constant 0.000000e+00 : f32
    %231 = vector.broadcast %cst_80 : f32 to vector<8x1xf32>
    %232 = arith.cmpf ogt, %230, %231 : vector<8x1xf32>
    %233 = vector.shape_cast %232 : vector<8x1xi1> to vector<8x1xi1>
    %234 = vector.broadcast %233 : vector<8x1xi1> to vector<8x32xi1>
    %235 = arith.select %234, %228, %180 : vector<8x32xi1>, vector<8x32xf32>
    %236 = vector.shape_cast %232 : vector<8x1xi1> to vector<8x1xi1>
    %237 = vector.broadcast %236 : vector<8x1xi1> to vector<8x32xi1>
    %238 = arith.select %237, %226, %183 : vector<8x32xi1>, vector<8x32xf32>
    %c0_81 = arith.constant 0 : index
    %c0_82 = arith.constant 0 : index
    %239 = vector.load %arg1[%c0_81, %c0_82] : memref<72x640xf32, #tpu.memory_space<vmem>>, vector<32x640xf32>
    %cst_83 = arith.constant dense<0.000000e+00> : vector<8x640xf32>
    %240 = tpu.matmul %235, %239, %cst_83 {dimension_numbers = #tpu.dot_dimension_numbers<[1], [0], [0], [1], [0, 0, 1, 1], [], []>} : vector<8x32xf32>, vector<32x640xf32>, vector<8x640xf32> -> vector<8x640xf32>
    %241 = vector.extract_strided_slice %240 {offsets = [0, 512], sizes = [8, 128], strides = [1, 1]} : vector<8x640xf32> to vector<8x128xf32>
    %242 = vector.extract_strided_slice %240 {offsets = [0, 0], sizes = [8, 32], strides = [1, 1]} : vector<8x640xf32> to vector<8x32xf32>
    %243 = vector.extract_strided_slice %240 {offsets = [0, 32], sizes = [8, 32], strides = [1, 1]} : vector<8x640xf32> to vector<8x32xf32>
    %244 = vector.extract_strided_slice %240 {offsets = [0, 64], sizes = [8, 32], strides = [1, 1]} : vector<8x640xf32> to vector<8x32xf32>
    %245 = vector.extract_strided_slice %240 {offsets = [0, 96], sizes = [8, 32], strides = [1, 1]} : vector<8x640xf32> to vector<8x32xf32>
    %246 = vector.extract_strided_slice %240 {offsets = [0, 128], sizes = [8, 32], strides = [1, 1]} : vector<8x640xf32> to vector<8x32xf32>
    %247 = vector.extract_strided_slice %240 {offsets = [0, 160], sizes = [8, 32], strides = [1, 1]} : vector<8x640xf32> to vector<8x32xf32>
    %248 = vector.extract_strided_slice %240 {offsets = [0, 192], sizes = [8, 32], strides = [1, 1]} : vector<8x640xf32> to vector<8x32xf32>
    %249 = vector.extract_strided_slice %240 {offsets = [0, 224], sizes = [8, 32], strides = [1, 1]} : vector<8x640xf32> to vector<8x32xf32>
    %250 = vector.extract_strided_slice %240 {offsets = [0, 256], sizes = [8, 32], strides = [1, 1]} : vector<8x640xf32> to vector<8x32xf32>
    %251 = vector.extract_strided_slice %240 {offsets = [0, 288], sizes = [8, 32], strides = [1, 1]} : vector<8x640xf32> to vector<8x32xf32>
    %252 = vector.extract_strided_slice %240 {offsets = [0, 320], sizes = [8, 32], strides = [1, 1]} : vector<8x640xf32> to vector<8x32xf32>
    %253 = vector.extract_strided_slice %240 {offsets = [0, 352], sizes = [8, 32], strides = [1, 1]} : vector<8x640xf32> to vector<8x32xf32>
    %254 = vector.extract_strided_slice %240 {offsets = [0, 384], sizes = [8, 32], strides = [1, 1]} : vector<8x640xf32> to vector<8x32xf32>
    %255 = vector.extract_strided_slice %240 {offsets = [0, 416], sizes = [8, 32], strides = [1, 1]} : vector<8x640xf32> to vector<8x32xf32>
    %256 = vector.extract_strided_slice %240 {offsets = [0, 448], sizes = [8, 32], strides = [1, 1]} : vector<8x640xf32> to vector<8x32xf32>
    %257 = vector.extract_strided_slice %240 {offsets = [0, 480], sizes = [8, 32], strides = [1, 1]} : vector<8x640xf32> to vector<8x32xf32>
    %258 = tpu.concatenate %242, %243, %244, %245, %246, %247, %248, %249, %250, %251, %252, %253, %254, %255, %256, %257 in 0 : vector<8x32xf32>, vector<8x32xf32>, vector<8x32xf32>, vector<8x32xf32>, vector<8x32xf32>, vector<8x32xf32>, vector<8x32xf32>, vector<8x32xf32>, vector<8x32xf32>, vector<8x32xf32>, vector<8x32xf32>, vector<8x32xf32>, vector<8x32xf32>, vector<8x32xf32>, vector<8x32xf32>, vector<8x32xf32> -> vector<128x32xf32>
    %c32_84 = arith.constant 32 : index
    %c0_85 = arith.constant 0 : index
    %259 = vector.load %arg0[%c32_84, %c0_85] : memref<64x136xf32, #tpu.memory_space<vmem>>, vector<8x128xf32>
    %cst_86 = arith.constant dense<0.000000e+00> : vector<8x32xf32>
    %260 = tpu.matmul %259, %258, %cst_86 {dimension_numbers = #tpu.dot_dimension_numbers<[1], [0], [0], [1], [0, 0, 1, 1], [], []>} : vector<8x128xf32>, vector<128x32xf32>, vector<8x32xf32> -> vector<8x32xf32>
    %261 = arith.addf %260, %16 : vector<8x32xf32>
    %cst_87 = arith.constant 0.000000e+00 : f32
    %262 = vector.broadcast %cst_87 : f32 to vector<8x32xf32>
    %263 = arith.maximumf %261, %262 : vector<8x32xf32>
    %c32_88 = arith.constant 32 : index
    %c0_89 = arith.constant 0 : index
    %264 = vector.load %arg5[%c32_88, %c0_89] : memref<64x128xf32, #tpu.memory_space<vmem>>, vector<8x128xf32>
    %265 = arith.addf %264, %241 : vector<8x128xf32>
    %c32_90 = arith.constant 32 : index
    %c0_91 = arith.constant 0 : index
    %266 = vector.load %arg1[%c32_90, %c0_91] : memref<72x640xf32, #tpu.memory_space<vmem>>, vector<32x128xf32>
    %cst_92 = arith.constant dense<0.000000e+00> : vector<8x128xf32>
    %267 = tpu.matmul %263, %266, %cst_92 {dimension_numbers = #tpu.dot_dimension_numbers<[1], [0], [0], [1], [0, 0, 1, 1], [], []>} : vector<8x32xf32>, vector<32x128xf32>, vector<8x128xf32> -> vector<8x128xf32>
    %268 = arith.addf %265, %267 : vector<8x128xf32>
    %269 = arith.negf %268 : vector<8x128xf32>
    %270 = math.exp %269 : vector<8x128xf32>
    %cst_93 = arith.constant 1.000000e+00 : f32
    %271 = vector.broadcast %cst_93 : f32 to vector<8x128xf32>
    %272 = arith.addf %271, %270 : vector<8x128xf32>
    %273 = arith.divf %271, %272 : vector<8x128xf32>
    %274 = math.tanh %268 : vector<8x128xf32>
    %275 = vector.extract_strided_slice %273 {offsets = [0, 0], sizes = [8, 32], strides = [1, 1]} : vector<8x128xf32> to vector<8x32xf32>
    %276 = vector.extract_strided_slice %273 {offsets = [0, 32], sizes = [8, 32], strides = [1, 1]} : vector<8x128xf32> to vector<8x32xf32>
    %277 = vector.extract_strided_slice %273 {offsets = [0, 64], sizes = [8, 32], strides = [1, 1]} : vector<8x128xf32> to vector<8x32xf32>
    %278 = vector.extract_strided_slice %274 {offsets = [0, 96], sizes = [8, 32], strides = [1, 1]} : vector<8x128xf32> to vector<8x32xf32>
    %279 = arith.mulf %276, %238 : vector<8x32xf32>
    %280 = arith.mulf %275, %278 : vector<8x32xf32>
    %281 = arith.addf %279, %280 : vector<8x32xf32>
    %282 = math.tanh %281 : vector<8x32xf32>
    %283 = arith.mulf %277, %282 : vector<8x32xf32>
    %c32_94 = arith.constant 32 : index
    %c0_95 = arith.constant 0 : index
    %284 = vector.load %arg6[%c32_94, %c0_95] : memref<64x32xf32, #tpu.memory_space<vmem>>, vector<8x32xf32>
    tpu.vector_store %arg6[%c32_94, %c0_95], %283 {strides = array<i32>} : memref<64x32xf32, #tpu.memory_space<vmem>>, vector<8x32xf32>,
    %c32_96 = arith.constant 32 : index
    %c130_97 = arith.constant 130 : index
    %285 = vector.load %arg0[%c32_96, %c130_97] : memref<64x136xf32, #tpu.memory_space<vmem>>, vector<8x1xf32>
    %cst_98 = arith.constant 0.000000e+00 : f32
    %286 = vector.broadcast %cst_98 : f32 to vector<8x1xf32>
    %287 = arith.cmpf ogt, %285, %286 : vector<8x1xf32>
    %288 = vector.shape_cast %287 : vector<8x1xi1> to vector<8x1xi1>
    %289 = vector.broadcast %288 : vector<8x1xi1> to vector<8x32xi1>
    %290 = arith.select %289, %283, %235 : vector<8x32xi1>, vector<8x32xf32>
    %291 = vector.shape_cast %287 : vector<8x1xi1> to vector<8x1xi1>
    %292 = vector.broadcast %291 : vector<8x1xi1> to vector<8x32xi1>
    %293 = arith.select %292, %281, %238 : vector<8x32xi1>, vector<8x32xf32>
    %c0_99 = arith.constant 0 : index
    %c0_100 = arith.constant 0 : index
    %294 = vector.load %arg1[%c0_99, %c0_100] : memref<72x640xf32, #tpu.memory_space<vmem>>, vector<32x640xf32>
    %cst_101 = arith.constant dense<0.000000e+00> : vector<8x640xf32>
    %295 = tpu.matmul %290, %294, %cst_101 {dimension_numbers = #tpu.dot_dimension_numbers<[1], [0], [0], [1], [0, 0, 1, 1], [], []>} : vector<8x32xf32>, vector<32x640xf32>, vector<8x640xf32> -> vector<8x640xf32>
    %296 = vector.extract_strided_slice %295 {offsets = [0, 512], sizes = [8, 128], strides = [1, 1]} : vector<8x640xf32> to vector<8x128xf32>
    %297 = vector.extract_strided_slice %295 {offsets = [0, 0], sizes = [8, 32], strides = [1, 1]} : vector<8x640xf32> to vector<8x32xf32>
    %298 = vector.extract_strided_slice %295 {offsets = [0, 32], sizes = [8, 32], strides = [1, 1]} : vector<8x640xf32> to vector<8x32xf32>
    %299 = vector.extract_strided_slice %295 {offsets = [0, 64], sizes = [8, 32], strides = [1, 1]} : vector<8x640xf32> to vector<8x32xf32>
    %300 = vector.extract_strided_slice %295 {offsets = [0, 96], sizes = [8, 32], strides = [1, 1]} : vector<8x640xf32> to vector<8x32xf32>
    %301 = vector.extract_strided_slice %295 {offsets = [0, 128], sizes = [8, 32], strides = [1, 1]} : vector<8x640xf32> to vector<8x32xf32>
    %302 = vector.extract_strided_slice %295 {offsets = [0, 160], sizes = [8, 32], strides = [1, 1]} : vector<8x640xf32> to vector<8x32xf32>
    %303 = vector.extract_strided_slice %295 {offsets = [0, 192], sizes = [8, 32], strides = [1, 1]} : vector<8x640xf32> to vector<8x32xf32>
    %304 = vector.extract_strided_slice %295 {offsets = [0, 224], sizes = [8, 32], strides = [1, 1]} : vector<8x640xf32> to vector<8x32xf32>
    %305 = vector.extract_strided_slice %295 {offsets = [0, 256], sizes = [8, 32], strides = [1, 1]} : vector<8x640xf32> to vector<8x32xf32>
    %306 = vector.extract_strided_slice %295 {offsets = [0, 288], sizes = [8, 32], strides = [1, 1]} : vector<8x640xf32> to vector<8x32xf32>
    %307 = vector.extract_strided_slice %295 {offsets = [0, 320], sizes = [8, 32], strides = [1, 1]} : vector<8x640xf32> to vector<8x32xf32>
    %308 = vector.extract_strided_slice %295 {offsets = [0, 352], sizes = [8, 32], strides = [1, 1]} : vector<8x640xf32> to vector<8x32xf32>
    %309 = vector.extract_strided_slice %295 {offsets = [0, 384], sizes = [8, 32], strides = [1, 1]} : vector<8x640xf32> to vector<8x32xf32>
    %310 = vector.extract_strided_slice %295 {offsets = [0, 416], sizes = [8, 32], strides = [1, 1]} : vector<8x640xf32> to vector<8x32xf32>
    %311 = vector.extract_strided_slice %295 {offsets = [0, 448], sizes = [8, 32], strides = [1, 1]} : vector<8x640xf32> to vector<8x32xf32>
    %312 = vector.extract_strided_slice %295 {offsets = [0, 480], sizes = [8, 32], strides = [1, 1]} : vector<8x640xf32> to vector<8x32xf32>
    %313 = tpu.concatenate %297, %298, %299, %300, %301, %302, %303, %304, %305, %306, %307, %308, %309, %310, %311, %312 in 0 : vector<8x32xf32>, vector<8x32xf32>, vector<8x32xf32>, vector<8x32xf32>, vector<8x32xf32>, vector<8x32xf32>, vector<8x32xf32>, vector<8x32xf32>, vector<8x32xf32>, vector<8x32xf32>, vector<8x32xf32>, vector<8x32xf32>, vector<8x32xf32>, vector<8x32xf32>, vector<8x32xf32>, vector<8x32xf32> -> vector<128x32xf32>
    %c40 = arith.constant 40 : index
    %c0_102 = arith.constant 0 : index
    %314 = vector.load %arg0[%c40, %c0_102] : memref<64x136xf32, #tpu.memory_space<vmem>>, vector<8x128xf32>
    %cst_103 = arith.constant dense<0.000000e+00> : vector<8x32xf32>
    %315 = tpu.matmul %314, %313, %cst_103 {dimension_numbers = #tpu.dot_dimension_numbers<[1], [0], [0], [1], [0, 0, 1, 1], [], []>} : vector<8x128xf32>, vector<128x32xf32>, vector<8x32xf32> -> vector<8x32xf32>
    %316 = arith.addf %315, %16 : vector<8x32xf32>
    %cst_104 = arith.constant 0.000000e+00 : f32
    %317 = vector.broadcast %cst_104 : f32 to vector<8x32xf32>
    %318 = arith.maximumf %316, %317 : vector<8x32xf32>
    %c40_105 = arith.constant 40 : index
    %c0_106 = arith.constant 0 : index
    %319 = vector.load %arg5[%c40_105, %c0_106] : memref<64x128xf32, #tpu.memory_space<vmem>>, vector<8x128xf32>
    %320 = arith.addf %319, %296 : vector<8x128xf32>
    %c32_107 = arith.constant 32 : index
    %c0_108 = arith.constant 0 : index
    %321 = vector.load %arg1[%c32_107, %c0_108] : memref<72x640xf32, #tpu.memory_space<vmem>>, vector<32x128xf32>
    %cst_109 = arith.constant dense<0.000000e+00> : vector<8x128xf32>
    %322 = tpu.matmul %318, %321, %cst_109 {dimension_numbers = #tpu.dot_dimension_numbers<[1], [0], [0], [1], [0, 0, 1, 1], [], []>} : vector<8x32xf32>, vector<32x128xf32>, vector<8x128xf32> -> vector<8x128xf32>
    %323 = arith.addf %320, %322 : vector<8x128xf32>
    %324 = arith.negf %323 : vector<8x128xf32>
    %325 = math.exp %324 : vector<8x128xf32>
    %cst_110 = arith.constant 1.000000e+00 : f32
    %326 = vector.broadcast %cst_110 : f32 to vector<8x128xf32>
    %327 = arith.addf %326, %325 : vector<8x128xf32>
    %328 = arith.divf %326, %327 : vector<8x128xf32>
    %329 = math.tanh %323 : vector<8x128xf32>
    %330 = vector.extract_strided_slice %328 {offsets = [0, 0], sizes = [8, 32], strides = [1, 1]} : vector<8x128xf32> to vector<8x32xf32>
    %331 = vector.extract_strided_slice %328 {offsets = [0, 32], sizes = [8, 32], strides = [1, 1]} : vector<8x128xf32> to vector<8x32xf32>
    %332 = vector.extract_strided_slice %328 {offsets = [0, 64], sizes = [8, 32], strides = [1, 1]} : vector<8x128xf32> to vector<8x32xf32>
    %333 = vector.extract_strided_slice %329 {offsets = [0, 96], sizes = [8, 32], strides = [1, 1]} : vector<8x128xf32> to vector<8x32xf32>
    %334 = arith.mulf %331, %293 : vector<8x32xf32>
    %335 = arith.mulf %330, %333 : vector<8x32xf32>
    %336 = arith.addf %334, %335 : vector<8x32xf32>
    %337 = math.tanh %336 : vector<8x32xf32>
    %338 = arith.mulf %332, %337 : vector<8x32xf32>
    %c40_111 = arith.constant 40 : index
    %c0_112 = arith.constant 0 : index
    %339 = vector.load %arg6[%c40_111, %c0_112] : memref<64x32xf32, #tpu.memory_space<vmem>>, vector<8x32xf32>
    tpu.vector_store %arg6[%c40_111, %c0_112], %338 {strides = array<i32>} : memref<64x32xf32, #tpu.memory_space<vmem>>, vector<8x32xf32>,
    %c40_113 = arith.constant 40 : index
    %c130_114 = arith.constant 130 : index
    %340 = vector.load %arg0[%c40_113, %c130_114] : memref<64x136xf32, #tpu.memory_space<vmem>>, vector<8x1xf32>
    %cst_115 = arith.constant 0.000000e+00 : f32
    %341 = vector.broadcast %cst_115 : f32 to vector<8x1xf32>
    %342 = arith.cmpf ogt, %340, %341 : vector<8x1xf32>
    %343 = vector.shape_cast %342 : vector<8x1xi1> to vector<8x1xi1>
    %344 = vector.broadcast %343 : vector<8x1xi1> to vector<8x32xi1>
    %345 = arith.select %344, %338, %290 : vector<8x32xi1>, vector<8x32xf32>
    %346 = vector.shape_cast %342 : vector<8x1xi1> to vector<8x1xi1>
    %347 = vector.broadcast %346 : vector<8x1xi1> to vector<8x32xi1>
    %348 = arith.select %347, %336, %293 : vector<8x32xi1>, vector<8x32xf32>
    %c0_116 = arith.constant 0 : index
    %c0_117 = arith.constant 0 : index
    %349 = vector.load %arg1[%c0_116, %c0_117] : memref<72x640xf32, #tpu.memory_space<vmem>>, vector<32x640xf32>
    %cst_118 = arith.constant dense<0.000000e+00> : vector<8x640xf32>
    %350 = tpu.matmul %345, %349, %cst_118 {dimension_numbers = #tpu.dot_dimension_numbers<[1], [0], [0], [1], [0, 0, 1, 1], [], []>} : vector<8x32xf32>, vector<32x640xf32>, vector<8x640xf32> -> vector<8x640xf32>
    %351 = vector.extract_strided_slice %350 {offsets = [0, 512], sizes = [8, 128], strides = [1, 1]} : vector<8x640xf32> to vector<8x128xf32>
    %352 = vector.extract_strided_slice %350 {offsets = [0, 0], sizes = [8, 32], strides = [1, 1]} : vector<8x640xf32> to vector<8x32xf32>
    %353 = vector.extract_strided_slice %350 {offsets = [0, 32], sizes = [8, 32], strides = [1, 1]} : vector<8x640xf32> to vector<8x32xf32>
    %354 = vector.extract_strided_slice %350 {offsets = [0, 64], sizes = [8, 32], strides = [1, 1]} : vector<8x640xf32> to vector<8x32xf32>
    %355 = vector.extract_strided_slice %350 {offsets = [0, 96], sizes = [8, 32], strides = [1, 1]} : vector<8x640xf32> to vector<8x32xf32>
    %356 = vector.extract_strided_slice %350 {offsets = [0, 128], sizes = [8, 32], strides = [1, 1]} : vector<8x640xf32> to vector<8x32xf32>
    %357 = vector.extract_strided_slice %350 {offsets = [0, 160], sizes = [8, 32], strides = [1, 1]} : vector<8x640xf32> to vector<8x32xf32>
    %358 = vector.extract_strided_slice %350 {offsets = [0, 192], sizes = [8, 32], strides = [1, 1]} : vector<8x640xf32> to vector<8x32xf32>
    %359 = vector.extract_strided_slice %350 {offsets = [0, 224], sizes = [8, 32], strides = [1, 1]} : vector<8x640xf32> to vector<8x32xf32>
    %360 = vector.extract_strided_slice %350 {offsets = [0, 256], sizes = [8, 32], strides = [1, 1]} : vector<8x640xf32> to vector<8x32xf32>
    %361 = vector.extract_strided_slice %350 {offsets = [0, 288], sizes = [8, 32], strides = [1, 1]} : vector<8x640xf32> to vector<8x32xf32>
    %362 = vector.extract_strided_slice %350 {offsets = [0, 320], sizes = [8, 32], strides = [1, 1]} : vector<8x640xf32> to vector<8x32xf32>
    %363 = vector.extract_strided_slice %350 {offsets = [0, 352], sizes = [8, 32], strides = [1, 1]} : vector<8x640xf32> to vector<8x32xf32>
    %364 = vector.extract_strided_slice %350 {offsets = [0, 384], sizes = [8, 32], strides = [1, 1]} : vector<8x640xf32> to vector<8x32xf32>
    %365 = vector.extract_strided_slice %350 {offsets = [0, 416], sizes = [8, 32], strides = [1, 1]} : vector<8x640xf32> to vector<8x32xf32>
    %366 = vector.extract_strided_slice %350 {offsets = [0, 448], sizes = [8, 32], strides = [1, 1]} : vector<8x640xf32> to vector<8x32xf32>
    %367 = vector.extract_strided_slice %350 {offsets = [0, 480], sizes = [8, 32], strides = [1, 1]} : vector<8x640xf32> to vector<8x32xf32>
    %368 = tpu.concatenate %352, %353, %354, %355, %356, %357, %358, %359, %360, %361, %362, %363, %364, %365, %366, %367 in 0 : vector<8x32xf32>, vector<8x32xf32>, vector<8x32xf32>, vector<8x32xf32>, vector<8x32xf32>, vector<8x32xf32>, vector<8x32xf32>, vector<8x32xf32>, vector<8x32xf32>, vector<8x32xf32>, vector<8x32xf32>, vector<8x32xf32>, vector<8x32xf32>, vector<8x32xf32>, vector<8x32xf32>, vector<8x32xf32> -> vector<128x32xf32>
    %c48 = arith.constant 48 : index
    %c0_119 = arith.constant 0 : index
    %369 = vector.load %arg0[%c48, %c0_119] : memref<64x136xf32, #tpu.memory_space<vmem>>, vector<8x128xf32>
    %cst_120 = arith.constant dense<0.000000e+00> : vector<8x32xf32>
    %370 = tpu.matmul %369, %368, %cst_120 {dimension_numbers = #tpu.dot_dimension_numbers<[1], [0], [0], [1], [0, 0, 1, 1], [], []>} : vector<8x128xf32>, vector<128x32xf32>, vector<8x32xf32> -> vector<8x32xf32>
    %371 = arith.addf %370, %16 : vector<8x32xf32>
    %cst_121 = arith.constant 0.000000e+00 : f32
    %372 = vector.broadcast %cst_121 : f32 to vector<8x32xf32>
    %373 = arith.maximumf %371, %372 : vector<8x32xf32>
    %c48_122 = arith.constant 48 : index
    %c0_123 = arith.constant 0 : index
    %374 = vector.load %arg5[%c48_122, %c0_123] : memref<64x128xf32, #tpu.memory_space<vmem>>, vector<8x128xf32>
    %375 = arith.addf %374, %351 : vector<8x128xf32>
    %c32_124 = arith.constant 32 : index
    %c0_125 = arith.constant 0 : index
    %376 = vector.load %arg1[%c32_124, %c0_125] : memref<72x640xf32, #tpu.memory_space<vmem>>, vector<32x128xf32>
    %cst_126 = arith.constant dense<0.000000e+00> : vector<8x128xf32>
    %377 = tpu.matmul %373, %376, %cst_126 {dimension_numbers = #tpu.dot_dimension_numbers<[1], [0], [0], [1], [0, 0, 1, 1], [], []>} : vector<8x32xf32>, vector<32x128xf32>, vector<8x128xf32> -> vector<8x128xf32>
    %378 = arith.addf %375, %377 : vector<8x128xf32>
    %379 = arith.negf %378 : vector<8x128xf32>
    %380 = math.exp %379 : vector<8x128xf32>
    %cst_127 = arith.constant 1.000000e+00 : f32
    %381 = vector.broadcast %cst_127 : f32 to vector<8x128xf32>
    %382 = arith.addf %381, %380 : vector<8x128xf32>
    %383 = arith.divf %381, %382 : vector<8x128xf32>
    %384 = math.tanh %378 : vector<8x128xf32>
    %385 = vector.extract_strided_slice %383 {offsets = [0, 0], sizes = [8, 32], strides = [1, 1]} : vector<8x128xf32> to vector<8x32xf32>
    %386 = vector.extract_strided_slice %383 {offsets = [0, 32], sizes = [8, 32], strides = [1, 1]} : vector<8x128xf32> to vector<8x32xf32>
    %387 = vector.extract_strided_slice %383 {offsets = [0, 64], sizes = [8, 32], strides = [1, 1]} : vector<8x128xf32> to vector<8x32xf32>
    %388 = vector.extract_strided_slice %384 {offsets = [0, 96], sizes = [8, 32], strides = [1, 1]} : vector<8x128xf32> to vector<8x32xf32>
    %389 = arith.mulf %386, %348 : vector<8x32xf32>
    %390 = arith.mulf %385, %388 : vector<8x32xf32>
    %391 = arith.addf %389, %390 : vector<8x32xf32>
    %392 = math.tanh %391 : vector<8x32xf32>
    %393 = arith.mulf %387, %392 : vector<8x32xf32>
    %c48_128 = arith.constant 48 : index
    %c0_129 = arith.constant 0 : index
    %394 = vector.load %arg6[%c48_128, %c0_129] : memref<64x32xf32, #tpu.memory_space<vmem>>, vector<8x32xf32>
    tpu.vector_store %arg6[%c48_128, %c0_129], %393 {strides = array<i32>} : memref<64x32xf32, #tpu.memory_space<vmem>>, vector<8x32xf32>,
    %c48_130 = arith.constant 48 : index
    %c130_131 = arith.constant 130 : index
    %395 = vector.load %arg0[%c48_130, %c130_131] : memref<64x136xf32, #tpu.memory_space<vmem>>, vector<8x1xf32>
    %cst_132 = arith.constant 0.000000e+00 : f32
    %396 = vector.broadcast %cst_132 : f32 to vector<8x1xf32>
    %397 = arith.cmpf ogt, %395, %396 : vector<8x1xf32>
    %398 = vector.shape_cast %397 : vector<8x1xi1> to vector<8x1xi1>
    %399 = vector.broadcast %398 : vector<8x1xi1> to vector<8x32xi1>
    %400 = arith.select %399, %393, %345 : vector<8x32xi1>, vector<8x32xf32>
    %401 = vector.shape_cast %397 : vector<8x1xi1> to vector<8x1xi1>
    %402 = vector.broadcast %401 : vector<8x1xi1> to vector<8x32xi1>
    %403 = arith.select %402, %391, %348 : vector<8x32xi1>, vector<8x32xf32>
    %c0_133 = arith.constant 0 : index
    %c0_134 = arith.constant 0 : index
    %404 = vector.load %arg1[%c0_133, %c0_134] : memref<72x640xf32, #tpu.memory_space<vmem>>, vector<32x640xf32>
    %cst_135 = arith.constant dense<0.000000e+00> : vector<8x640xf32>
    %405 = tpu.matmul %400, %404, %cst_135 {dimension_numbers = #tpu.dot_dimension_numbers<[1], [0], [0], [1], [0, 0, 1, 1], [], []>} : vector<8x32xf32>, vector<32x640xf32>, vector<8x640xf32> -> vector<8x640xf32>
    %406 = vector.extract_strided_slice %405 {offsets = [0, 512], sizes = [8, 128], strides = [1, 1]} : vector<8x640xf32> to vector<8x128xf32>
    %407 = vector.extract_strided_slice %405 {offsets = [0, 0], sizes = [8, 32], strides = [1, 1]} : vector<8x640xf32> to vector<8x32xf32>
    %408 = vector.extract_strided_slice %405 {offsets = [0, 32], sizes = [8, 32], strides = [1, 1]} : vector<8x640xf32> to vector<8x32xf32>
    %409 = vector.extract_strided_slice %405 {offsets = [0, 64], sizes = [8, 32], strides = [1, 1]} : vector<8x640xf32> to vector<8x32xf32>
    %410 = vector.extract_strided_slice %405 {offsets = [0, 96], sizes = [8, 32], strides = [1, 1]} : vector<8x640xf32> to vector<8x32xf32>
    %411 = vector.extract_strided_slice %405 {offsets = [0, 128], sizes = [8, 32], strides = [1, 1]} : vector<8x640xf32> to vector<8x32xf32>
    %412 = vector.extract_strided_slice %405 {offsets = [0, 160], sizes = [8, 32], strides = [1, 1]} : vector<8x640xf32> to vector<8x32xf32>
    %413 = vector.extract_strided_slice %405 {offsets = [0, 192], sizes = [8, 32], strides = [1, 1]} : vector<8x640xf32> to vector<8x32xf32>
    %414 = vector.extract_strided_slice %405 {offsets = [0, 224], sizes = [8, 32], strides = [1, 1]} : vector<8x640xf32> to vector<8x32xf32>
    %415 = vector.extract_strided_slice %405 {offsets = [0, 256], sizes = [8, 32], strides = [1, 1]} : vector<8x640xf32> to vector<8x32xf32>
    %416 = vector.extract_strided_slice %405 {offsets = [0, 288], sizes = [8, 32], strides = [1, 1]} : vector<8x640xf32> to vector<8x32xf32>
    %417 = vector.extract_strided_slice %405 {offsets = [0, 320], sizes = [8, 32], strides = [1, 1]} : vector<8x640xf32> to vector<8x32xf32>
    %418 = vector.extract_strided_slice %405 {offsets = [0, 352], sizes = [8, 32], strides = [1, 1]} : vector<8x640xf32> to vector<8x32xf32>
    %419 = vector.extract_strided_slice %405 {offsets = [0, 384], sizes = [8, 32], strides = [1, 1]} : vector<8x640xf32> to vector<8x32xf32>
    %420 = vector.extract_strided_slice %405 {offsets = [0, 416], sizes = [8, 32], strides = [1, 1]} : vector<8x640xf32> to vector<8x32xf32>
    %421 = vector.extract_strided_slice %405 {offsets = [0, 448], sizes = [8, 32], strides = [1, 1]} : vector<8x640xf32> to vector<8x32xf32>
    %422 = vector.extract_strided_slice %405 {offsets = [0, 480], sizes = [8, 32], strides = [1, 1]} : vector<8x640xf32> to vector<8x32xf32>
    %423 = tpu.concatenate %407, %408, %409, %410, %411, %412, %413, %414, %415, %416, %417, %418, %419, %420, %421, %422 in 0 : vector<8x32xf32>, vector<8x32xf32>, vector<8x32xf32>, vector<8x32xf32>, vector<8x32xf32>, vector<8x32xf32>, vector<8x32xf32>, vector<8x32xf32>, vector<8x32xf32>, vector<8x32xf32>, vector<8x32xf32>, vector<8x32xf32>, vector<8x32xf32>, vector<8x32xf32>, vector<8x32xf32>, vector<8x32xf32> -> vector<128x32xf32>
    %c56 = arith.constant 56 : index
    %c0_136 = arith.constant 0 : index
    %424 = vector.load %arg0[%c56, %c0_136] : memref<64x136xf32, #tpu.memory_space<vmem>>, vector<8x128xf32>
    %cst_137 = arith.constant dense<0.000000e+00> : vector<8x32xf32>
    %425 = tpu.matmul %424, %423, %cst_137 {dimension_numbers = #tpu.dot_dimension_numbers<[1], [0], [0], [1], [0, 0, 1, 1], [], []>} : vector<8x128xf32>, vector<128x32xf32>, vector<8x32xf32> -> vector<8x32xf32>
    %426 = arith.addf %425, %16 : vector<8x32xf32>
    %cst_138 = arith.constant 0.000000e+00 : f32
    %427 = vector.broadcast %cst_138 : f32 to vector<8x32xf32>
    %428 = arith.maximumf %426, %427 : vector<8x32xf32>
    %c56_139 = arith.constant 56 : index
    %c0_140 = arith.constant 0 : index
    %429 = vector.load %arg5[%c56_139, %c0_140] : memref<64x128xf32, #tpu.memory_space<vmem>>, vector<8x128xf32>
    %430 = arith.addf %429, %406 : vector<8x128xf32>
    %c32_141 = arith.constant 32 : index
    %c0_142 = arith.constant 0 : index
    %431 = vector.load %arg1[%c32_141, %c0_142] : memref<72x640xf32, #tpu.memory_space<vmem>>, vector<32x128xf32>
    %cst_143 = arith.constant dense<0.000000e+00> : vector<8x128xf32>
    %432 = tpu.matmul %428, %431, %cst_143 {dimension_numbers = #tpu.dot_dimension_numbers<[1], [0], [0], [1], [0, 0, 1, 1], [], []>} : vector<8x32xf32>, vector<32x128xf32>, vector<8x128xf32> -> vector<8x128xf32>
    %433 = arith.addf %430, %432 : vector<8x128xf32>
    %434 = arith.negf %433 : vector<8x128xf32>
    %435 = math.exp %434 : vector<8x128xf32>
    %cst_144 = arith.constant 1.000000e+00 : f32
    %436 = vector.broadcast %cst_144 : f32 to vector<8x128xf32>
    %437 = arith.addf %436, %435 : vector<8x128xf32>
    %438 = arith.divf %436, %437 : vector<8x128xf32>
    %439 = math.tanh %433 : vector<8x128xf32>
    %440 = vector.extract_strided_slice %438 {offsets = [0, 0], sizes = [8, 32], strides = [1, 1]} : vector<8x128xf32> to vector<8x32xf32>
    %441 = vector.extract_strided_slice %438 {offsets = [0, 32], sizes = [8, 32], strides = [1, 1]} : vector<8x128xf32> to vector<8x32xf32>
    %442 = vector.extract_strided_slice %438 {offsets = [0, 64], sizes = [8, 32], strides = [1, 1]} : vector<8x128xf32> to vector<8x32xf32>
    %443 = vector.extract_strided_slice %439 {offsets = [0, 96], sizes = [8, 32], strides = [1, 1]} : vector<8x128xf32> to vector<8x32xf32>
    %444 = arith.mulf %441, %403 : vector<8x32xf32>
    %445 = arith.mulf %440, %443 : vector<8x32xf32>
    %446 = arith.addf %444, %445 : vector<8x32xf32>
    %447 = math.tanh %446 : vector<8x32xf32>
    %448 = arith.mulf %442, %447 : vector<8x32xf32>
    %c56_145 = arith.constant 56 : index
    %c0_146 = arith.constant 0 : index
    %449 = vector.load %arg6[%c56_145, %c0_146] : memref<64x32xf32, #tpu.memory_space<vmem>>, vector<8x32xf32>
    tpu.vector_store %arg6[%c56_145, %c0_146], %448 {strides = array<i32>} : memref<64x32xf32, #tpu.memory_space<vmem>>, vector<8x32xf32>,
    %c56_147 = arith.constant 56 : index
    %c130_148 = arith.constant 130 : index
    %450 = vector.load %arg0[%c56_147, %c130_148] : memref<64x136xf32, #tpu.memory_space<vmem>>, vector<8x1xf32>
    %cst_149 = arith.constant 0.000000e+00 : f32
    %451 = vector.broadcast %cst_149 : f32 to vector<8x1xf32>
    %452 = arith.cmpf ogt, %450, %451 : vector<8x1xf32>
    %453 = vector.shape_cast %452 : vector<8x1xi1> to vector<8x1xi1>
    %454 = vector.broadcast %453 : vector<8x1xi1> to vector<8x32xi1>
    %455 = arith.select %454, %448, %400 : vector<8x32xi1>, vector<8x32xf32>
    %456 = vector.shape_cast %452 : vector<8x1xi1> to vector<8x1xi1>
    %457 = vector.broadcast %456 : vector<8x1xi1> to vector<8x32xi1>
    %458 = arith.select %457, %446, %403 : vector<8x32xi1>, vector<8x32xf32>
    %c32_150 = arith.constant 32 : index
    %c256 = arith.constant 256 : index
    %459 = vector.load %arg1[%c32_150, %c256] : memref<72x640xf32, #tpu.memory_space<vmem>>, vector<32x128xf32>
    %c65 = arith.constant 65 : index
    %c0_151 = arith.constant 0 : index
    %460 = vector.load %arg1[%c65, %c0_151] : memref<72x640xf32, #tpu.memory_space<vmem>>, vector<1x128xf32>
    %c0_152 = arith.constant 0 : index
    %c0_153 = arith.constant 0 : index
    %461 = vector.load %arg6[%c0_152, %c0_153] : memref<64x32xf32, #tpu.memory_space<vmem>>, vector<64x32xf32>
    %cst_154 = arith.constant dense<0.000000e+00> : vector<64x128xf32>
    %462 = tpu.matmul %461, %459, %cst_154 {dimension_numbers = #tpu.dot_dimension_numbers<[1], [0], [0], [1], [0, 0, 1, 1], [], []>} : vector<64x32xf32>, vector<32x128xf32>, vector<64x128xf32> -> vector<64x128xf32>
    %463 = vector.broadcast %460 : vector<1x128xf32> to vector<64x128xf32>
    %464 = arith.addf %462, %463 : vector<64x128xf32>
    %c0_155 = arith.constant 0 : index
    %c130_156 = arith.constant 130 : index
    %465 = vector.load %arg0[%c0_155, %c130_156] : memref<64x136xf32, #tpu.memory_space<vmem>>, vector<64x1xf32>
    %cst_157 = arith.constant 0.000000e+00 : f32
    %466 = vector.broadcast %cst_157 : f32 to vector<64x1xf32>
    %467 = arith.cmpf ogt, %465, %466 : vector<64x1xf32>
    %cst_158 = arith.constant 0.000000e+00 : f32
    %468 = vector.shape_cast %467 : vector<64x1xi1> to vector<64x1xi1>
    %469 = vector.broadcast %468 : vector<64x1xi1> to vector<64x128xi1>
    %470 = vector.broadcast %cst_158 : f32 to vector<64x128xf32>
    %471 = arith.select %469, %464, %470 : vector<64x128xi1>, vector<64x128xf32>
    %c0_159 = arith.constant 0 : index
    %c0_160 = arith.constant 0 : index
    %472 = vector.load %arg3[%c0_159, %c0_160] : memref<64x128xf32, #tpu.memory_space<vmem>>, vector<64x128xf32>
    tpu.vector_store %arg3[%c0_159, %c0_160], %471 {strides = array<i32>} : memref<64x128xf32, #tpu.memory_space<vmem>>, vector<64x128xf32>,
    %c0_161 = arith.constant 0 : index
    %c0_162 = arith.constant 0 : index
    %473 = vector.load %arg4[%c0_161, %c0_162] : memref<16x32xf32, #tpu.memory_space<vmem>>, vector<8x32xf32>
    tpu.vector_store %arg4[%c0_161, %c0_162], %455 {strides = array<i32>} : memref<16x32xf32, #tpu.memory_space<vmem>>, vector<8x32xf32>,
    %c8_163 = arith.constant 8 : index
    %c0_164 = arith.constant 0 : index
    %474 = vector.load %arg4[%c8_163, %c0_164] : memref<16x32xf32, #tpu.memory_space<vmem>>, vector<8x32xf32>
    tpu.vector_store %arg4[%c8_163, %c0_164], %458 {strides = array<i32>} : memref<16x32xf32, #tpu.memory_space<vmem>>, vector<8x32xf32>,
    return
  }
}

</mosaic_0001>

<llo_original>
// kernel: social_model_forward.1
$region0: #{social_model_forward.1}
  #allocation0 [shape = 'u32[]', space=smem, size = 0x4, offset = 0x4, fixed_abs, tag = 'smem constant byte address 0x4 - core index']
  #allocation1 [shape = 'u32[144,128]{1,0:T(1,128)}', space=vmem, size = 0x12000, scoped, tag = 'internal scratch']
  #allocation2 [shape = 'f32[64,128]{1,0:T(8,128)}', space=vmem, size = 0x8000, scoped, tag = 'scratch operand']
  #allocation3 [shape = 'f32[64,32]{1,0:T(8,128)}', space=vmem, size = 0x8000, scoped, tag = 'scratch operand']
  %s0 = inlined_call_operand.vmem [shape: f32[64,136], index: 0, kind: input, shape index: {}]
  %s1 = inlined_call_operand.vmem [shape: f32[72,640], index: 1, kind: input, shape index: {}]
  %s2 = inlined_call_operand.vmem [shape: f32[16,32], index: 2, kind: input, shape index: {}]
  %s3 = inlined_call_operand.vmem [shape: f32[64,128], index: 3, kind: output, shape index: {0}]
  %s4 = inlined_call_operand.vmem [shape: f32[16,32], index: 4, kind: output, shape index: {1}]
  %5 = xla_tuple %s3, %s4
  %s6 = sld [smem:[#allocation0]]
  $region30: #{social_model_forward.1} parent=0
    _
  %s8 = ssub.s32 1, %s6
  %s9 = scalar_select 0, %s8, %s6
  // Predicated region
  $region2: #{social_model_forward.1} parent=0 // pred_check
    _
  $region3: #{social_model_forward.1} parent=0 // pred_check_branch
    %11 = sbr.rel (0) target = $region5
  $region4: #{social_model_forward.1} parent=0 // pred_region
    _
  $region5: #{social_model_forward.1} parent=0 // pred_fallthru
    _
  // Predicated region
  $region6: #{social_model_forward.1} parent=0 // pred_check
    _
  $region7: #{social_model_forward.1} parent=0 // pred_check_branch
    %13 = sbr.rel (0) target = $region9
  $region8: #{social_model_forward.1} parent=0 // pred_region
    _
  $region9: #{social_model_forward.1} parent=0 // pred_fallthru
    _
  // Predicated region
  $region10: #{social_model_forward.1} parent=0 // pred_check
    _
  $region11: #{social_model_forward.1} parent=0 // pred_check_branch
    %15 = sbr.rel (0) target = $region13
  $region12: #{social_model_forward.1} parent=0 // pred_region
    _
  $region13: #{social_model_forward.1} parent=0 // pred_fallthru
    _
  %v16 = vld [vmem:[%s1 + $0x140] sm:$0x30]
  %v17 = vld [vmem:[%s1 + $0x142] ss:$0 sm:$0xff]
  %v18 = vld [vmem:[%s1 + $0x143] ss:$0 sm:$0xff]
  %v19 = vld [vmem:[%s1 + $0xa8] sm:$0xff]
  %v20 = vld [vmem:[%s1 + $0xd0] sm:$0xff]
  %v21 = vld [vmem:[%s1 + $0xf8] sm:$0xff]
  %v22 = vld [vmem:[%s1 + $0x120] sm:$0xff]
  %v23 = vld [vmem:[%s1 + $0x140] ss:$0 sm:$0xff]
  %v24 = vld [vmem:[%s0 + $0x8] sm:$0xff]
  %v25 = vld [vmem:[%s0 + $0x18] sm:$0xff]
  %v26 = vld [vmem:[%s0 + $0x28] sm:$0xff]
  %v27 = vld [vmem:[%s0 + $0x38] sm:$0xff]
  %v28 = vld [vmem:[%s0 + $0x48] sm:$0xff]
  %v29 = vld [vmem:[%s0 + $0x58] sm:$0xff]
  %v30 = vld [vmem:[%s0 + $0x68] sm:$0xff]
  %v31 = vld [vmem:[%s0 + $0x78] sm:$0xff]
  %v33 = vrot.slane %v16, 4
  %vm34 = vcmask 15360
  %v36 = vsel %vm34, %v24, 0
  %v39 = vsel %vm34, %v25, 0
  %v42 = vsel %vm34, %v26, 0
  %v45 = vsel %vm34, %v27, 0
  %v48 = vsel %vm34, %v28, 0
  %v51 = vsel %vm34, %v29, 0
  %v54 = vsel %vm34, %v30, 0
  %v57 = vsel %vm34, %v31, 0
  %vm59 = vcmask 1041408
  %v60 = vsel %vm59, %v33, 0
  %62 = vmatprep.subr.mxu0 0.0
  %63 = vmatpush1.msra.mxu0 %v60
  %64 = vmatprep.subr.mxu0 0.0
  %65 = vmatpush1.msra.mxu0 0.0
  %66 = vmatprep.subr.mxu0 0.0
  %67 = vmatpush1.msra.mxu0 0.0
  %68 = vmatprep.subr.mxu0 0.0
  %69 = vmatpush1.msra.mxu0 0.0
  %70 = vmatprep.subr.mxu0 0.0
  %71 = vmatpush1.msra.mxu0 0.0
  %72 = vmatprep.subr.mxu0 0.0
  %73 = vmatpush1.msra.mxu0 0.0
  %74 = vmatprep.subr.mxu0 0.0
  %75 = vmatpush1.msra.mxu0 0.0
  %76 = vmatprep.subr.mxu0 0.0
  %77 = vmatpush1.msra.mxu0 0.0
  %78 = vmatprep.subr.mxu0 0.0
  %79 = vmatpush1.msra.mxu0 0.0
  %80 = vmatprep.subr.mxu0 0.0
  %81 = vmatpush1.msra.mxu0 0.0
  %82 = vmatprep.subr.mxu0 0.0
  %83 = vmatpush1.msra.mxu0 0.0
  %84 = vmatprep.subr.mxu0 0.0
  %85 = vmatpush1.msra.mxu0 0.0
  %86 = vmatprep.subr.mxu0 0.0
  %87 = vmatpush1.msra.mxu0 0.0
  %88 = vmatprep.subr.mxu0 0.0
  %89 = vmatpush1.msra.mxu0 0.0
  %90 = vmatprep.subr.mxu0 0.0
  %91 = vmatpush1.msra.mxu0 0.0
  %92 = vmatprep.subr.mxu0 0.0
  %93 = vmatpush1.msra.mxu0 0.0
  %94 = vmatprep.subr.mxu0 0.0
  %95 = vmatpush1.msra.mxu0 0.0
  %96 = vmatprep.subr.mxu0 0.0
  %97 = vmatpush1.msra.mxu0 0.0
  %98 = vmatprep.subr.mxu0 0.0
  %99 = vmatpush1.msra.mxu0 0.0
  %100 = vmatprep.subr.mxu0 0.0
  %101 = vmatpush1.msra.mxu0 0.0
  %102 = vmatprep.subr.mxu0 0.0
  %103 = vmatpush1.msra.mxu0 0.0
  %104 = vmatprep.subr.mxu0 0.0
  %105 = vmatpush1.msra.mxu0 0.0
  %106 = vmatprep.subr.mxu0 0.0
  %107 = vmatpush1.msra.mxu0 0.0
  %108 = vmatprep.subr.mxu0 0.0
  %109 = vmatpush1.msra.mxu0 0.0
  %110 = vmatprep.subr.mxu0 0.0
  %111 = vmatpush1.msra.mxu0 0.0
  %112 = vmatprep.subr.mxu0 0.0
  %113 = vmatpush1.msra.mxu0 0.0
  %114 = vmatprep.subr.mxu0 0.0
  %115 = vmatpush1.msra.mxu0 0.0
  %116 = vmatprep.subr.mxu0 0.0
  %117 = vmatpush1.msra.mxu0 0.0
  %118 = vmatprep.subr.mxu0 0.0
  %119 = vmatpush1.msra.mxu0 0.0
  %120 = vmatprep.subr.mxu0 0.0
  %121 = vmatpush1.msra.mxu0 0.0
  %122 = vmatprep.subr.mxu0 0.0
  %123 = vmatpush1.msra.mxu0 0.0
  %124 = vmatprep.subr.mxu0 0.0
  %125 = vmatpush1.msra.mxu0 0.0
  %126 = vmatprep.mubr.f32.mxu0 0.0
  %127 = vmatmul.mubr.f32.gmra.mrb[0].mxu0 %v36
  %v128 = vpop.f32.mrb[0].mxu0
  %v129 = vadd.f32 %v17, %v128
  %v130 = vpop.f32.mrb[0].mxu0
  %131 = vmatprep.mubr.f32.mxu0 0.0
  %132 = vmatmul.mubr.f32.gmra.mrb[0].mxu0 %v39
  %v133 = vpop.f32.mrb[0].mxu0
  %v134 = vadd.f32 %v17, %v133
  %v135 = vpop.f32.mrb[0].mxu0
  %136 = vmatprep.mubr.f32.mxu0 0.0
  %137 = vmatmul.mubr.f32.gmra.mrb[0].mxu0 %v42
  %v138 = vpop.f32.mrb[0].mxu0
  %v139 = vadd.f32 %v17, %v138
  %v140 = vpop.f32.mrb[0].mxu0
  %141 = vmatprep.mubr.f32.mxu0 0.0
  %142 = vmatmul.mubr.f32.gmra.mrb[0].mxu0 %v45
  %v143 = vpop.f32.mrb[0].mxu0
  %v144 = vadd.f32 %v17, %v143
  %v145 = vpop.f32.mrb[0].mxu0
  %146 = vmatprep.mubr.f32.mxu0 0.0
  %147 = vmatmul.mubr.f32.gmra.mrb[0].mxu0 %v48
  %v148 = vpop.f32.mrb[0].mxu0
  %v149 = vadd.f32 %v17, %v148
  %v150 = vpop.f32.mrb[0].mxu0
  %151 = vmatprep.mubr.f32.mxu0 0.0
  %152 = vmatmul.mubr.f32.gmra.mrb[0].mxu0 %v51
  %v153 = vpop.f32.mrb[0].mxu0
  %v154 = vadd.f32 %v17, %v153
  %v155 = vpop.f32.mrb[0].mxu0
  %156 = vmatprep.mubr.f32.mxu0 0.0
  %157 = vmatmul.mubr.f32.gmra.mrb[0].mxu0 %v54
  %v158 = vpop.f32.mrb[0].mxu0
  %v159 = vadd.f32 %v17, %v158
  %v160 = vpop.f32.mrb[0].mxu0
  %161 = vmatprep.mubr.f32.mxu0 0.0
  %162 = vmatmul.mubr.f32.gmra.mrb[0].mxu0 %v57
  %v163 = vpop.f32.mrb[0].mxu0
  %v164 = vadd.f32 %v17, %v163
  %v165 = vpop.f32.mrb[0].mxu0
  %166 = vdwg.mxu0
  %v167 = vmax.f32 %v129, 0.0
  %v168 = vmax.f32 %v134, 0.0
  %v169 = vmax.f32 %v139, 0.0
  %v170 = vmax.f32 %v144, 0.0
  %v171 = vmax.f32 %v149, 0.0
  %v172 = vmax.f32 %v154, 0.0
  %v173 = vmax.f32 %v159, 0.0
  %v174 = vmax.f32 %v164, 0.0
  %vm175 = vcmask 261120
  %v177 = vsel %vm175, %v167, 0
  %v180 = vsel %vm175, %v168, 0
  %v183 = vsel %vm175, %v169, 0
  %v186 = vsel %vm175, %v170, 0
  %v189 = vsel %vm175, %v171, 0
  %v192 = vsel %vm175, %v172, 0
  %v195 = vsel %vm175, %v173, 0
  %v198 = vsel %vm175, %v174, 0
  %200 = vmatprep.subr.mxu0 0.0
  %201 = vmatpush1.msra.mxu0 %v19
  %202 = vmatprep.subr.mxu0 0.0
  %203 = vmatpush1.msra.mxu0 %v20
  %204 = vmatprep.subr.mxu0 0.0
  %205 = vmatpush1.msra.mxu0 %v21
  %206 = vmatprep.subr.mxu0 0.0
  %207 = vmatpush1.msra.mxu0 %v22
  %208 = vmatprep.subr.mxu0 0.0
  %209 = vmatpush1.msra.mxu0 0.0
  %210 = vmatprep.subr.mxu0 0.0
  %211 = vmatpush1.msra.mxu0 0.0
  %212 = vmatprep.subr.mxu0 0.0
  %213 = vmatpush1.msra.mxu0 0.0
  %214 = vmatprep.subr.mxu0 0.0
  %215 = vmatpush1.msra.mxu0 0.0
  %216 = vmatprep.subr.mxu0 0.0
  %217 = vmatpush1.msra.mxu0 0.0
  %218 = vmatprep.subr.mxu0 0.0
  %219 = vmatpush1.msra.mxu0 0.0
  %220 = vmatprep.subr.mxu0 0.0
  %221 = vmatpush1.msra.mxu0 0.0
  %222 = vmatprep.subr.mxu0 0.0
  %223 = vmatpush1.msra.mxu0 0.0
  %224 = vmatprep.subr.mxu0 0.0
  %225 = vmatpush1.msra.mxu0 0.0
  %226 = vmatprep.subr.mxu0 0.0
  %227 = vmatpush1.msra.mxu0 0.0
  %228 = vmatprep.subr.mxu0 0.0
  %229 = vmatpush1.msra.mxu0 0.0
  %230 = vmatprep.subr.mxu0 0.0
  %231 = vmatpush1.msra.mxu0 0.0
  %232 = vmatprep.subr.mxu0 0.0
  %233 = vmatpush1.msra.mxu0 0.0
  %234 = vmatprep.subr.mxu0 0.0
  %235 = vmatpush1.msra.mxu0 0.0
  %236 = vmatprep.subr.mxu0 0.0
  %237 = vmatpush1.msra.mxu0 0.0
  %238 = vmatprep.subr.mxu0 0.0
  %239 = vmatpush1.msra.mxu0 0.0
  %240 = vmatprep.subr.mxu0 0.0
  %241 = vmatpush1.msra.mxu0 0.0
  %242 = vmatprep.subr.mxu0 0.0
  %243 = vmatpush1.msra.mxu0 0.0
  %244 = vmatprep.subr.mxu0 0.0
  %245 = vmatpush1.msra.mxu0 0.0
  %246 = vmatprep.subr.mxu0 0.0
  %247 = vmatpush1.msra.mxu0 0.0
  %248 = vmatprep.subr.mxu0 0.0
  %249 = vmatpush1.msra.mxu0 0.0
  %250 = vmatprep.subr.mxu0 0.0
  %251 = vmatpush1.msra.mxu0 0.0
  %252 = vmatprep.subr.mxu0 0.0
  %253 = vmatpush1.msra.mxu0 0.0
  %254 = vmatprep.subr.mxu0 0.0
  %255 = vmatpush1.msra.mxu0 0.0
  %256 = vmatprep.subr.mxu0 0.0
  %257 = vmatpush1.msra.mxu0 0.0
  %258 = vmatprep.subr.mxu0 0.0
  %259 = vmatpush1.msra.mxu0 0.0
  %260 = vmatprep.subr.mxu0 0.0
  %261 = vmatpush1.msra.mxu0 0.0
  %262 = vmatprep.subr.mxu0 0.0
  %263 = vmatpush1.msra.mxu0 0.0
  %264 = vmatprep.mubr.f32.mxu0 0.0
  %265 = vmatmul.mubr.f32.gmra.mrb[0].mxu0 %v177
  %v266 = vpop.f32.mrb[0].mxu0
  %v267 = vadd.f32 %v23, %v266
  %v268 = vpop.f32.mrb[0].mxu0
  %269 = vmatprep.mubr.f32.mxu0 0.0
  %270 = vmatmul.mubr.f32.gmra.mrb[0].mxu0 %v180
  %v271 = vpop.f32.mrb[0].mxu0
  %v272 = vadd.f32 %v23, %v271
  %v273 = vpop.f32.mrb[0].mxu0
  %274 = vmatprep.mubr.f32.mxu0 0.0
  %275 = vmatmul.mubr.f32.gmra.mrb[0].mxu0 %v183
  %v276 = vpop.f32.mrb[0].mxu0
  %v277 = vadd.f32 %v23, %v276
  %v278 = vpop.f32.mrb[0].mxu0
  %279 = vmatprep.mubr.f32.mxu0 0.0
  %280 = vmatmul.mubr.f32.gmra.mrb[0].mxu0 %v186
  %v281 = vpop.f32.mrb[0].mxu0
  %v282 = vadd.f32 %v23, %v281
  %v283 = vpop.f32.mrb[0].mxu0
  %284 = vmatprep.mubr.f32.mxu0 0.0
  %285 = vmatmul.mubr.f32.gmra.mrb[0].mxu0 %v189
  %v286 = vpop.f32.mrb[0].mxu0
  %v287 = vadd.f32 %v23, %v286
  %v288 = vpop.f32.mrb[0].mxu0
  %289 = vmatprep.mubr.f32.mxu0 0.0
  %290 = vmatmul.mubr.f32.gmra.mrb[0].mxu0 %v192
  %v291 = vpop.f32.mrb[0].mxu0
  %v292 = vadd.f32 %v23, %v291
  %v293 = vpop.f32.mrb[0].mxu0
  %294 = vmatprep.mubr.f32.mxu0 0.0
  %295 = vmatmul.mubr.f32.gmra.mrb[0].mxu0 %v195
  %v296 = vpop.f32.mrb[0].mxu0
  %v297 = vadd.f32 %v23, %v296
  %v298 = vpop.f32.mrb[0].mxu0
  %299 = vmatprep.mubr.f32.mxu0 0.0
  %300 = vmatmul.mubr.f32.gmra.mrb[0].mxu0 %v198
  %v301 = vpop.f32.mrb[0].mxu0
  %v302 = vadd.f32 %v23, %v301
  %v303 = vpop.f32.mrb[0].mxu0
  %304 = vdwg.mxu0
  %305 = vst [vmem:[#allocation2] sm:$0xff] %v267
  %306 = vst [vmem:[#allocation2 + $0x8] sm:$0xff] %v272
  %307 = vst [vmem:[#allocation2 + $0x10] sm:$0xff] %v277
  %308 = vst [vmem:[#allocation2 + $0x18] sm:$0xff] %v282
  %309 = vst [vmem:[#allocation2 + $0x20] sm:$0xff] %v287
  %310 = vst [vmem:[#allocation2 + $0x28] sm:$0xff] %v292
  %311 = vst [vmem:[#allocation2 + $0x30] sm:$0xff] %v297
  %312 = vst [vmem:[#allocation2 + $0x38] sm:$0xff] %v302
  %v313 = vld [vmem:[%s2] sm:$0xff]
  %v314 = vld [vmem:[%s2 + $0x8] sm:$0xff]
  %v315 = vld [vmem:[%s1] sm:$0xff]
  %v316 = vld [vmem:[%s1 + $0x8] sm:$0xff]
  %v317 = vld [vmem:[%s1 + $0x10] sm:$0xff]
  %v318 = vld [vmem:[%s1 + $0x18] sm:$0xff]
  %v319 = vld [vmem:[%s1 + $0x20] sm:$0xff]
  %v320 = vld [vmem:[%s1 + $0x28] sm:$0xff]
  %v321 = vld [vmem:[%s1 + $0x30] sm:$0xff]
  %v322 = vld [vmem:[%s1 + $0x38] sm:$0xff]
  %v323 = vld [vmem:[%s1 + $0x40] sm:$0xff]
  %v324 = vld [vmem:[%s1 + $0x48] sm:$0xff]
  %v325 = vld [vmem:[%s1 + $0x50] sm:$0xff]
  %v326 = vld [vmem:[%s1 + $0x58] sm:$0xff]
  %v327 = vld [vmem:[%s1 + $0x60] sm:$0xff]
  %v328 = vld [vmem:[%s1 + $0x68] sm:$0xff]
  %v329 = vld [vmem:[%s1 + $0x70] sm:$0xff]
  %v330 = vld [vmem:[%s1 + $0x78] sm:$0xff]
  %v331 = vld [vmem:[%s1 + $0x80] sm:$0xff]
  %v332 = vld [vmem:[%s1 + $0x88] sm:$0xff]
  %v333 = vld [vmem:[%s1 + $0x90] sm:$0xff]
  %v334 = vld [vmem:[%s1 + $0x98] sm:$0xff]
  %v336 = vsel %vm175, %v313, 0
  %338 = vmatprep.subr.mxu0 %v316
  %339 = vmatpush1.msra.mxu0 %v315
  %340 = vmatprep.subr.mxu0 %v321
  %341 = vmatpush1.msra.mxu0 %v320
  %342 = vmatprep.subr.mxu0 %v326
  %343 = vmatpush1.msra.mxu0 %v325
  %344 = vmatprep.subr.mxu0 %v331
  %345 = vmatpush1.msra.mxu0 %v330
  %346 = vmatprep.subr.mxu0 0.0
  %347 = vmatpush1.msra.mxu0 0.0
  %348 = vmatprep.subr.mxu0 0.0
  %349 = vmatpush1.msra.mxu0 0.0
  %350 = vmatprep.subr.mxu0 0.0
  %351 = vmatpush1.msra.mxu0 0.0
  %352 = vmatprep.subr.mxu0 0.0
  %353 = vmatpush1.msra.mxu0 0.0
  %354 = vmatprep.subr.mxu0 0.0
  %355 = vmatpush1.msra.mxu0 0.0
  %356 = vmatprep.subr.mxu0 0.0
  %357 = vmatpush1.msra.mxu0 0.0
  %358 = vmatprep.subr.mxu0 0.0
  %359 = vmatpush1.msra.mxu0 0.0
  %360 = vmatprep.subr.mxu0 0.0
  %361 = vmatpush1.msra.mxu0 0.0
  %362 = vmatprep.subr.mxu0 0.0
  %363 = vmatpush1.msra.mxu0 0.0
  %364 = vmatprep.subr.mxu0 0.0
  %365 = vmatpush1.msra.mxu0 0.0
  %366 = vmatprep.subr.mxu0 0.0
  %367 = vmatpush1.msra.mxu0 0.0
  %368 = vmatprep.subr.mxu0 0.0
  %369 = vmatpush1.msra.mxu0 0.0
  %370 = vmatprep.subr.mxu0 0.0
  %371 = vmatpush1.msra.mxu0 0.0
  %372 = vmatprep.subr.mxu0 0.0
  %373 = vmatpush1.msra.mxu0 0.0
  %374 = vmatprep.subr.mxu0 0.0
  %375 = vmatpush1.msra.mxu0 0.0
  %376 = vmatprep.subr.mxu0 0.0
  %377 = vmatpush1.msra.mxu0 0.0
  %378 = vmatprep.subr.mxu0 0.0
  %379 = vmatpush1.msra.mxu0 0.0
  %380 = vmatprep.subr.mxu0 0.0
  %381 = vmatpush1.msra.mxu0 0.0
  %382 = vmatprep.subr.mxu0 0.0
  %383 = vmatpush1.msra.mxu0 0.0
  %384 = vmatprep.subr.mxu0 0.0
  %385 = vmatpush1.msra.mxu0 0.0
  %386 = vmatprep.subr.mxu0 0.0
  %387 = vmatpush1.msra.mxu0 0.0
  %388 = vmatprep.subr.mxu0 0.0
  %389 = vmatpush1.msra.mxu0 0.0
  %390 = vmatprep.subr.mxu0 0.0
  %391 = vmatpush1.msra.mxu0 0.0
  %392 = vmatprep.subr.mxu0 0.0
  %393 = vmatpush1.msra.mxu0 0.0
  %394 = vmatprep.subr.mxu0 0.0
  %395 = vmatpush1.msra.mxu0 0.0
  %396 = vmatprep.subr.mxu0 0.0
  %397 = vmatpush1.msra.mxu0 0.0
  %398 = vmatprep.subr.mxu0 0.0
  %399 = vmatpush1.msra.mxu0 0.0
  %400 = vmatprep.subr.mxu0 0.0
  %401 = vmatpush1.msra.mxu0 0.0
  %402 = vmatprep.mubr.f32.mxu0 0.0
  %403 = vmatmul.mubr.f32.gmra.mrb[0].mxu0 %v336
  %v404 = vpop.f32.mrb[0].mxu0
  %v405 = vadd.f32 0.0, %v404
  %v406 = vpop.f32.mrb[0].mxu0
  %v407 = vadd.f32 0.0, %v406
  %408 = vdwg.mxu0
  %409 = vmatprep.subr.mxu0 %v318
  %410 = vmatpush1.msra.mxu0 %v317
  %411 = vmatprep.subr.mxu0 %v323
  %412 = vmatpush1.msra.mxu0 %v322
  %413 = vmatprep.subr.mxu0 %v328
  %414 = vmatpush1.msra.mxu0 %v327
  %415 = vmatprep.subr.mxu0 %v333
  %416 = vmatpush1.msra.mxu0 %v332
  %417 = vmatprep.subr.mxu0 0.0
  %418 = vmatpush1.msra.mxu0 0.0
  %419 = vmatprep.subr.mxu0 0.0
  %420 = vmatpush1.msra.mxu0 0.0
  %421 = vmatprep.subr.mxu0 0.0
  %422 = vmatpush1.msra.mxu0 0.0
  %423 = vmatprep.subr.mxu0 0.0
  %424 = vmatpush1.msra.mxu0 0.0
  %425 = vmatprep.subr.mxu0 0.0
  %426 = vmatpush1.msra.mxu0 0.0
  %427 = vmatprep.subr.mxu0 0.0
  %428 = vmatpush1.msra.mxu0 0.0
  %429 = vmatprep.subr.mxu0 0.0
  %430 = vmatpush1.msra.mxu0 0.0
  %431 = vmatprep.subr.mxu0 0.0
  %432 = vmatpush1.msra.mxu0 0.0
  %433 = vmatprep.subr.mxu0 0.0
  %434 = vmatpush1.msra.mxu0 0.0
  %435 = vmatprep.subr.mxu0 0.0
  %436 = vmatpush1.msra.mxu0 0.0
  %437 = vmatprep.subr.mxu0 0.0
  %438 = vmatpush1.msra.mxu0 0.0
  %439 = vmatprep.subr.mxu0 0.0
  %440 = vmatpush1.msra.mxu0 0.0
  %441 = vmatprep.subr.mxu0 0.0
  %442 = vmatpush1.msra.mxu0 0.0
  %443 = vmatprep.subr.mxu0 0.0
  %444 = vmatpush1.msra.mxu0 0.0
  %445 = vmatprep.subr.mxu0 0.0
  %446 = vmatpush1.msra.mxu0 0.0
  %447 = vmatprep.subr.mxu0 0.0
  %448 = vmatpush1.msra.mxu0 0.0
  %449 = vmatprep.subr.mxu0 0.0
  %450 = vmatpush1.msra.mxu0 0.0
  %451 = vmatprep.subr.mxu0 0.0
  %452 = vmatpush1.msra.mxu0 0.0
  %453 = vmatprep.subr.mxu0 0.0
  %454 = vmatpush1.msra.mxu0 0.0
  %455 = vmatprep.subr.mxu0 0.0
  %456 = vmatpush1.msra.mxu0 0.0
  %457 = vmatprep.subr.mxu0 0.0
  %458 = vmatpush1.msra.mxu0 0.0
  %459 = vmatprep.subr.mxu0 0.0
  %460 = vmatpush1.msra.mxu0 0.0
  %461 = vmatprep.subr.mxu0 0.0
  %462 = vmatpush1.msra.mxu0 0.0
  %463 = vmatprep.subr.mxu0 0.0
  %464 = vmatpush1.msra.mxu0 0.0
  %465 = vmatprep.subr.mxu0 0.0
  %466 = vmatpush1.msra.mxu0 0.0
  %467 = vmatprep.subr.mxu0 0.0
  %468 = vmatpush1.msra.mxu0 0.0
  %469 = vmatprep.subr.mxu0 0.0
  %470 = vmatpush1.msra.mxu0 0.0
  %471 = vmatprep.subr.mxu0 0.0
  %472 = vmatpush1.msra.mxu0 0.0
  %473 = vmatprep.mubr.f32.mxu0 0.0
  %474 = vmatmul.mubr.f32.gmra.mrb[0].mxu0 %v336
  %v475 = vpop.f32.mrb[0].mxu0
  %v476 = vadd.f32 0.0, %v475
  %v477 = vpop.f32.mrb[0].mxu0
  %v478 = vadd.f32 0.0, %v477
  %479 = vdwg.mxu0
  %480 = vmatprep.subr.mxu0 0.0
  %481 = vmatpush1.msra.mxu0 %v319
  %482 = vmatprep.subr.mxu0 0.0
  %483 = vmatpush1.msra.mxu0 %v324
  %484 = vmatprep.subr.mxu0 0.0
  %485 = vmatpush1.msra.mxu0 %v329
  %486 = vmatprep.subr.mxu0 0.0
  %487 = vmatpush1.msra.mxu0 %v334
  %488 = vmatprep.subr.mxu0 0.0
  %489 = vmatpush1.msra.mxu0 0.0
  %490 = vmatprep.subr.mxu0 0.0
  %491 = vmatpush1.msra.mxu0 0.0
  %492 = vmatprep.subr.mxu0 0.0
  %493 = vmatpush1.msra.mxu0 0.0
  %494 = vmatprep.subr.mxu0 0.0
  %495 = vmatpush1.msra.mxu0 0.0
  %496 = vmatprep.subr.mxu0 0.0
  %497 = vmatpush1.msra.mxu0 0.0
  %498 = vmatprep.subr.mxu0 0.0
  %499 = vmatpush1.msra.mxu0 0.0
  %500 = vmatprep.subr.mxu0 0.0
  %501 = vmatpush1.msra.mxu0 0.0
  %502 = vmatprep.subr.mxu0 0.0
  %503 = vmatpush1.msra.mxu0 0.0
  %504 = vmatprep.subr.mxu0 0.0
  %505 = vmatpush1.msra.mxu0 0.0
  %506 = vmatprep.subr.mxu0 0.0
  %507 = vmatpush1.msra.mxu0 0.0
  %508 = vmatprep.subr.mxu0 0.0
  %509 = vmatpush1.msra.mxu0 0.0
  %510 = vmatprep.subr.mxu0 0.0
  %511 = vmatpush1.msra.mxu0 0.0
  %512 = vmatprep.subr.mxu0 0.0
  %513 = vmatpush1.msra.mxu0 0.0
  %514 = vmatprep.subr.mxu0 0.0
  %515 = vmatpush1.msra.mxu0 0.0
  %516 = vmatprep.subr.mxu0 0.0
  %517 = vmatpush1.msra.mxu0 0.0
  %518 = vmatprep.subr.mxu0 0.0
  %519 = vmatpush1.msra.mxu0 0.0
  %520 = vmatprep.subr.mxu0 0.0
  %521 = vmatpush1.msra.mxu0 0.0
  %522 = vmatprep.subr.mxu0 0.0
  %523 = vmatpush1.msra.mxu0 0.0
  %524 = vmatprep.subr.mxu0 0.0
  %525 = vmatpush1.msra.mxu0 0.0
  %526 = vmatprep.subr.mxu0 0.0
  %527 = vmatpush1.msra.mxu0 0.0
  %528 = vmatprep.subr.mxu0 0.0
  %529 = vmatpush1.msra.mxu0 0.0
  %530 = vmatprep.subr.mxu0 0.0
  %531 = vmatpush1.msra.mxu0 0.0
  %532 = vmatprep.subr.mxu0 0.0
  %533 = vmatpush1.msra.mxu0 0.0
  %534 = vmatprep.subr.mxu0 0.0
  %535 = vmatpush1.msra.mxu0 0.0
  %536 = vmatprep.subr.mxu0 0.0
  %537 = vmatpush1.msra.mxu0 0.0
  %538 = vmatprep.subr.mxu0 0.0
  %539 = vmatpush1.msra.mxu0 0.0
  %540 = vmatprep.subr.mxu0 0.0
  %541 = vmatpush1.msra.mxu0 0.0
  %542 = vmatprep.subr.mxu0 0.0
  %543 = vmatpush1.msra.mxu0 0.0
  %544 = vmatprep.mubr.f32.mxu0 0.0
  %545 = vmatmul.mubr.f32.gmra.mrb[0].mxu0 %v336
  %v546 = vpop.f32.mrb[0].mxu0
  %v547 = vadd.f32 0.0, %v546
  %v548 = vpop.f32.mrb[0].mxu0
  %549 = vdwg.mxu0
  %551 = vrot.lane.b32.xlu0 %v405, 96
  %v552 = vpop.permute.xlu0 %551
  %554 = vrot.lane.b32.xlu0 %v405, 64
  %v555 = vpop.permute.xlu0 %554
  %557 = vrot.lane.b32.xlu0 %v405, 32
  %v558 = vpop.permute.xlu0 %557
  %561 = vrot.lane.b32.xlu0 %v407, 96
  %v562 = vpop.permute.xlu0 %561
  %564 = vrot.lane.b32.xlu0 %v407, 64
  %v565 = vpop.permute.xlu0 %564
  %567 = vrot.lane.b32.xlu0 %v407, 32
  %v568 = vpop.permute.xlu0 %567
  %571 = vrot.lane.b32.xlu0 %v476, 96
  %v572 = vpop.permute.xlu0 %571
  %574 = vrot.lane.b32.xlu0 %v476, 64
  %v575 = vpop.permute.xlu0 %574
  %577 = vrot.lane.b32.xlu0 %v476, 32
  %v578 = vpop.permute.xlu0 %577
  %581 = vrot.lane.b32.xlu0 %v478, 96
  %v582 = vpop.permute.xlu0 %581
  %584 = vrot.lane.b32.xlu0 %v478, 64
  %v585 = vpop.permute.xlu0 %584
  %587 = vrot.lane.b32.xlu0 %v478, 32
  %v588 = vpop.permute.xlu0 %587
  %v590 = vld [vmem:[%s0] sm:$0xff]
  %591 = vmatprep.subr.mxu0 0.0
  %592 = vmatpush1.msra.mxu0 %v405
  %593 = vmatprep.subr.mxu0 0.0
  %594 = vmatpush1.msra.mxu0 %v552
  %595 = vmatprep.subr.mxu0 0.0
  %596 = vmatpush1.msra.mxu0 %v555
  %597 = vmatprep.subr.mxu0 0.0
  %598 = vmatpush1.msra.mxu0 %v558
  %599 = vmatprep.subr.mxu0 0.0
  %600 = vmatpush1.msra.mxu0 %v407
  %601 = vmatprep.subr.mxu0 0.0
  %602 = vmatpush1.msra.mxu0 %v562
  %603 = vmatprep.subr.mxu0 0.0
  %604 = vmatpush1.msra.mxu0 %v565
  %605 = vmatprep.subr.mxu0 0.0
  %606 = vmatpush1.msra.mxu0 %v568
  %607 = vmatprep.subr.mxu0 0.0
  %608 = vmatpush1.msra.mxu0 %v476
  %609 = vmatprep.subr.mxu0 0.0
  %610 = vmatpush1.msra.mxu0 %v572
  %611 = vmatprep.subr.mxu0 0.0
  %612 = vmatpush1.msra.mxu0 %v575
  %613 = vmatprep.subr.mxu0 0.0
  %614 = vmatpush1.msra.mxu0 %v578
  %615 = vmatprep.subr.mxu0 0.0
  %616 = vmatpush1.msra.mxu0 %v478
  %617 = vmatprep.subr.mxu0 0.0
  %618 = vmatpush1.msra.mxu0 %v582
  %619 = vmatprep.subr.mxu0 0.0
  %620 = vmatpush1.msra.mxu0 %v585
  %621 = vmatprep.subr.mxu0 0.0
  %622 = vmatpush1.msra.mxu0 %v588
  %623 = vmatprep.subr.mxu0 0.0
  %624 = vmatpush1.msra.mxu0 0.0
  %625 = vmatprep.subr.mxu0 0.0
  %626 = vmatpush1.msra.mxu0 0.0
  %627 = vmatprep.subr.mxu0 0.0
  %628 = vmatpush1.msra.mxu0 0.0
  %629 = vmatprep.subr.mxu0 0.0
  %630 = vmatpush1.msra.mxu0 0.0
  %631 = vmatprep.subr.mxu0 0.0
  %632 = vmatpush1.msra.mxu0 0.0
  %633 = vmatprep.subr.mxu0 0.0
  %634 = vmatpush1.msra.mxu0 0.0
  %635 = vmatprep.subr.mxu0 0.0
  %636 = vmatpush1.msra.mxu0 0.0
  %637 = vmatprep.subr.mxu0 0.0
  %638 = vmatpush1.msra.mxu0 0.0
  %639 = vmatprep.subr.mxu0 0.0
  %640 = vmatpush1.msra.mxu0 0.0
  %641 = vmatprep.subr.mxu0 0.0
  %642 = vmatpush1.msra.mxu0 0.0
  %643 = vmatprep.subr.mxu0 0.0
  %644 = vmatpush1.msra.mxu0 0.0
  %645 = vmatprep.subr.mxu0 0.0
  %646 = vmatpush1.msra.mxu0 0.0
  %647 = vmatprep.subr.mxu0 0.0
  %648 = vmatpush1.msra.mxu0 0.0
  %649 = vmatprep.subr.mxu0 0.0
  %650 = vmatpush1.msra.mxu0 0.0
  %651 = vmatprep.subr.mxu0 0.0
  %652 = vmatpush1.msra.mxu0 0.0
  %653 = vmatprep.subr.mxu0 0.0
  %654 = vmatpush1.msra.mxu0 0.0
  %655 = vmatprep.mubr.f32.mxu0 0.0
  %656 = vmatmul.mubr.f32.gmra.mrb[0].mxu0 %v590
  %v657 = vpop.f32.mrb[0].mxu0
  %v658 = vadd.f32 %v18, %v657
  %v659 = vpop.f32.mrb[0].mxu0
  %660 = vdwg.mxu0
  %v661 = vmax.f32 %v658, 0.0
  %v662 = vld [vmem:[#allocation2] sm:$0xff]
  %v663 = vadd.f32 %v662, %v547
  %v664 = vld [vmem:[%s1 + $0xa0] sm:$0xff]
  %v665 = vld [vmem:[%s1 + $0xc8] sm:$0xff]
  %v666 = vld [vmem:[%s1 + $0xf0] sm:$0xff]
  %v667 = vld [vmem:[%s1 + $0x118] sm:$0xff]
  %v669 = vsel %vm175, %v661, 0
  %671 = vmatprep.subr.mxu0 0.0
  %672 = vmatpush1.msra.mxu0 %v664
  %673 = vmatprep.subr.mxu0 0.0
  %674 = vmatpush1.msra.mxu0 %v665
  %675 = vmatprep.subr.mxu0 0.0
  %676 = vmatpush1.msra.mxu0 %v666
  %677 = vmatprep.subr.mxu0 0.0
  %678 = vmatpush1.msra.mxu0 %v667
  %679 = vmatprep.subr.mxu0 0.0
  %680 = vmatpush1.msra.mxu0 0.0
  %681 = vmatprep.subr.mxu0 0.0
  %682 = vmatpush1.msra.mxu0 0.0
  %683 = vmatprep.subr.mxu0 0.0
  %684 = vmatpush1.msra.mxu0 0.0
  %685 = vmatprep.subr.mxu0 0.0
  %686 = vmatpush1.msra.mxu0 0.0
  %687 = vmatprep.subr.mxu0 0.0
  %688 = vmatpush1.msra.mxu0 0.0
  %689 = vmatprep.subr.mxu0 0.0
  %690 = vmatpush1.msra.mxu0 0.0
  %691 = vmatprep.subr.mxu0 0.0
  %692 = vmatpush1.msra.mxu0 0.0
  %693 = vmatprep.subr.mxu0 0.0
  %694 = vmatpush1.msra.mxu0 0.0
  %695 = vmatprep.subr.mxu0 0.0
  %696 = vmatpush1.msra.mxu0 0.0
  %697 = vmatprep.subr.mxu0 0.0
  %698 = vmatpush1.msra.mxu0 0.0
  %699 = vmatprep.subr.mxu0 0.0
  %700 = vmatpush1.msra.mxu0 0.0
  %701 = vmatprep.subr.mxu0 0.0
  %702 = vmatpush1.msra.mxu0 0.0
  %703 = vmatprep.subr.mxu0 0.0
  %704 = vmatpush1.msra.mxu0 0.0
  %705 = vmatprep.subr.mxu0 0.0
  %706 = vmatpush1.msra.mxu0 0.0
  %707 = vmatprep.subr.mxu0 0.0
  %708 = vmatpush1.msra.mxu0 0.0
  %709 = vmatprep.subr.mxu0 0.0
  %710 = vmatpush1.msra.mxu0 0.0
  %711 = vmatprep.subr.mxu0 0.0
  %712 = vmatpush1.msra.mxu0 0.0
  %713 = vmatprep.subr.mxu0 0.0
  %714 = vmatpush1.msra.mxu0 0.0
  %715 = vmatprep.subr.mxu0 0.0
  %716 = vmatpush1.msra.mxu0 0.0
  %717 = vmatprep.subr.mxu0 0.0
  %718 = vmatpush1.msra.mxu0 0.0
  %719 = vmatprep.subr.mxu0 0.0
  %720 = vmatpush1.msra.mxu0 0.0
  %721 = vmatprep.subr.mxu0 0.0
  %722 = vmatpush1.msra.mxu0 0.0
  %723 = vmatprep.subr.mxu0 0.0
  %724 = vmatpush1.msra.mxu0 0.0
  %725 = vmatprep.subr.mxu0 0.0
  %726 = vmatpush1.msra.mxu0 0.0
  %727 = vmatprep.subr.mxu0 0.0
  %728 = vmatpush1.msra.mxu0 0.0
  %729 = vmatprep.subr.mxu0 0.0
  %730 = vmatpush1.msra.mxu0 0.0
  %731 = vmatprep.subr.mxu0 0.0
  %732 = vmatpush1.msra.mxu0 0.0
  %733 = vmatprep.subr.mxu0 0.0
  %734 = vmatpush1.msra.mxu0 0.0
  %735 = vmatprep.mubr.f32.mxu0 0.0
  %736 = vmatmul.mubr.f32.gmra.mrb[0].mxu0 %v669
  %v737 = vpop.f32.mrb[0].mxu0
  %v738 = vadd.f32 0.0, %v737
  %v739 = vpop.f32.mrb[0].mxu0
  %740 = vdwg.mxu0
  %v741 = vadd.f32 %v663, %v738
  %v742 = vxor.u32 %v741, 2147483648
  %v743 = vmul.f32 %v742, 1.442695
  %v744 = vpow.pop %v743
  %v745 = vadd.f32 %v744, 1.0
  %v746 = vrcp.pop %v745
  %v747 = vmul.f32 1.0, %v746
  %v748 = vtanh.pop %v741
  %750 = vrot.lane.b32.xlu0 %v314, 32
  %v751 = vpop.permute.xlu0 %750
  %v753 = vmul.f32 %v747, %v751
  %755 = vrot.lane.b32.xlu0 %v748, 32
  %v756 = vpop.permute.xlu0 %755
  %v758 = vmul.f32 %v747, %v756
  %760 = vrot.lane.b32.xlu0 %v758, 32
  %v761 = vpop.permute.xlu0 %760
  %v763 = vadd.f32 %v753, %v761
  %v764 = vtanh.pop %v763
  %766 = vrot.lane.b32.xlu0 %v764, 32
  %v767 = vpop.permute.xlu0 %766
  %v769 = vmul.f32 %v747, %v767
  %771 = vrot.lane.b32.xlu0 %v769, 64
  %v772 = vpop.permute.xlu0 %771
  %774 = vst.msk [vmem:[#allocation3] sm:$0xff] %vm175, %v772
  %v775 = vld [vmem:[%s0 + $0x8] sm:$0xff]
  %vm776 = vcmp.gt.f32.partialorder %v775, 0.0
  %v777 = vsel %vm776, 1, 0
  %778 = vset.pattern.permute.xlu0 2
  %779 = vperm.xlu0 %778, %v777
  %v780 = vpop.permute.xlu0 %779
  %vm781 = vcmp.eq.s32.totalorder %v780, 1
  %782 = vrot.lane.b32.xlu0 %v313, 64
  %v783 = vpop.permute.xlu0 %782
  %v785 = vsel %vm781, %v769, %v783
  %v786 = vsel %vm781, %v763, %v751
  %v787 = vld [vmem:[%s1] sm:$0xff]
  %v788 = vld [vmem:[%s1 + $0x8] sm:$0xff]
  %v789 = vld [vmem:[%s1 + $0x10] sm:$0xff]
  %v790 = vld [vmem:[%s1 + $0x18] sm:$0xff]
  %v791 = vld [vmem:[%s1 + $0x20] sm:$0xff]
  %v792 = vld [vmem:[%s1 + $0x28] sm:$0xff]
  %v793 = vld [vmem:[%s1 + $0x30] sm:$0xff]
  %v794 = vld [vmem:[%s1 + $0x38] sm:$0xff]
  %v795 = vld [vmem:[%s1 + $0x40] sm:$0xff]
  %v796 = vld [vmem:[%s1 + $0x48] sm:$0xff]
  %v797 = vld [vmem:[%s1 + $0x50] sm:$0xff]
  %v798 = vld [vmem:[%s1 + $0x58] sm:$0xff]
  %v799 = vld [vmem:[%s1 + $0x60] sm:$0xff]
  %v800 = vld [vmem:[%s1 + $0x68] sm:$0xff]
  %v801 = vld [vmem:[%s1 + $0x70] sm:$0xff]
  %v802 = vld [vmem:[%s1 + $0x78] sm:$0xff]
  %v803 = vld [vmem:[%s1 + $0x80] sm:$0xff]
  %v804 = vld [vmem:[%s1 + $0x88] sm:$0xff]
  %v805 = vld [vmem:[%s1 + $0x90] sm:$0xff]
  %v806 = vld [vmem:[%s1 + $0x98] sm:$0xff]
  %808 = vrot.lane.b32.xlu0 %v785, 64
  %v809 = vpop.permute.xlu0 %808
  %v810 = vsel %vm175, %v809, 0
  %812 = vmatprep.subr.mxu0 %v788
  %813 = vmatpush1.msra.mxu0 %v787
  %814 = vmatprep.subr.mxu0 %v793
  %815 = vmatpush1.msra.mxu0 %v792
  %816 = vmatprep.subr.mxu0 %v798
  %817 = vmatpush1.msra.mxu0 %v797
  %818 = vmatprep.subr.mxu0 %v803
  %819 = vmatpush1.msra.mxu0 %v802
  %820 = vmatprep.subr.mxu0 0.0
  %821 = vmatpush1.msra.mxu0 0.0
  %822 = vmatprep.subr.mxu0 0.0
  %823 = vmatpush1.msra.mxu0 0.0
  %824 = vmatprep.subr.mxu0 0.0
  %825 = vmatpush1.msra.mxu0 0.0
  %826 = vmatprep.subr.mxu0 0.0
  %827 = vmatpush1.msra.mxu0 0.0
  %828 = vmatprep.subr.mxu0 0.0
  %829 = vmatpush1.msra.mxu0 0.0
  %830 = vmatprep.subr.mxu0 0.0
  %831 = vmatpush1.msra.mxu0 0.0
  %832 = vmatprep.subr.mxu0 0.0
  %833 = vmatpush1.msra.mxu0 0.0
  %834 = vmatprep.subr.mxu0 0.0
  %835 = vmatpush1.msra.mxu0 0.0
  %836 = vmatprep.subr.mxu0 0.0
  %837 = vmatpush1.msra.mxu0 0.0
  %838 = vmatprep.subr.mxu0 0.0
  %839 = vmatpush1.msra.mxu0 0.0
  %840 = vmatprep.subr.mxu0 0.0
  %841 = vmatpush1.msra.mxu0 0.0
  %842 = vmatprep.subr.mxu0 0.0
  %843 = vmatpush1.msra.mxu0 0.0
  %844 = vmatprep.subr.mxu0 0.0
  %845 = vmatpush1.msra.mxu0 0.0
  %846 = vmatprep.subr.mxu0 0.0
  %847 = vmatpush1.msra.mxu0 0.0
  %848 = vmatprep.subr.mxu0 0.0
  %849 = vmatpush1.msra.mxu0 0.0
  %850 = vmatprep.subr.mxu0 0.0
  %851 = vmatpush1.msra.mxu0 0.0
  %852 = vmatprep.subr.mxu0 0.0
  %853 = vmatpush1.msra.mxu0 0.0
  %854 = vmatprep.subr.mxu0 0.0
  %855 = vmatpush1.msra.mxu0 0.0
  %856 = vmatprep.subr.mxu0 0.0
  %857 = vmatpush1.msra.mxu0 0.0
  %858 = vmatprep.subr.mxu0 0.0
  %859 = vmatpush1.msra.mxu0 0.0
  %860 = vmatprep.subr.mxu0 0.0
  %861 = vmatpush1.msra.mxu0 0.0
  %862 = vmatprep.subr.mxu0 0.0
  %863 = vmatpush1.msra.mxu0 0.0
  %864 = vmatprep.subr.mxu0 0.0
  %865 = vmatpush1.msra.mxu0 0.0
  %866 = vmatprep.subr.mxu0 0.0
  %867 = vmatpush1.msra.mxu0 0.0
  %868 = vmatprep.subr.mxu0 0.0
  %869 = vmatpush1.msra.mxu0 0.0
  %870 = vmatprep.subr.mxu0 0.0
  %871 = vmatpush1.msra.mxu0 0.0
  %872 = vmatprep.subr.mxu0 0.0
  %873 = vmatpush1.msra.mxu0 0.0
  %874 = vmatprep.subr.mxu0 0.0
  %875 = vmatpush1.msra.mxu0 0.0
  %876 = vmatprep.mubr.f32.mxu0 0.0
  %877 = vmatmul.mubr.f32.gmra.mrb[0].mxu0 %v810
  %v878 = vpop.f32.mrb[0].mxu0
  %v879 = vadd.f32 0.0, %v878
  %v880 = vpop.f32.mrb[0].mxu0
  %v881 = vadd.f32 0.0, %v880
  %882 = vdwg.mxu0
  %883 = vmatprep.subr.mxu0 %v790
  %884 = vmatpush1.msra.mxu0 %v789
  %885 = vmatprep.subr.mxu0 %v795
  %886 = vmatpush1.msra.mxu0 %v794
  %887 = vmatprep.subr.mxu0 %v800
  %888 = vmatpush1.msra.mxu0 %v799
  %889 = vmatprep.subr.mxu0 %v805
  %890 = vmatpush1.msra.mxu0 %v804
  %891 = vmatprep.subr.mxu0 0.0
  %892 = vmatpush1.msra.mxu0 0.0
  %893 = vmatprep.subr.mxu0 0.0
  %894 = vmatpush1.msra.mxu0 0.0
  %895 = vmatprep.subr.mxu0 0.0
  %896 = vmatpush1.msra.mxu0 0.0
  %897 = vmatprep.subr.mxu0 0.0
  %898 = vmatpush1.msra.mxu0 0.0
  %899 = vmatprep.subr.mxu0 0.0
  %900 = vmatpush1.msra.mxu0 0.0
  %901 = vmatprep.subr.mxu0 0.0
  %902 = vmatpush1.msra.mxu0 0.0
  %903 = vmatprep.subr.mxu0 0.0
  %904 = vmatpush1.msra.mxu0 0.0
  %905 = vmatprep.subr.mxu0 0.0
  %906 = vmatpush1.msra.mxu0 0.0
  %907 = vmatprep.subr.mxu0 0.0
  %908 = vmatpush1.msra.mxu0 0.0
  %909 = vmatprep.subr.mxu0 0.0
  %910 = vmatpush1.msra.mxu0 0.0
  %911 = vmatprep.subr.mxu0 0.0
  %912 = vmatpush1.msra.mxu0 0.0
  %913 = vmatprep.subr.mxu0 0.0
  %914 = vmatpush1.msra.mxu0 0.0
  %915 = vmatprep.subr.mxu0 0.0
  %916 = vmatpush1.msra.mxu0 0.0
  %917 = vmatprep.subr.mxu0 0.0
  %918 = vmatpush1.msra.mxu0 0.0
  %919 = vmatprep.subr.mxu0 0.0
  %920 = vmatpush1.msra.mxu0 0.0
  %921 = vmatprep.subr.mxu0 0.0
  %922 = vmatpush1.msra.mxu0 0.0
  %923 = vmatprep.subr.mxu0 0.0
  %924 = vmatpush1.msra.mxu0 0.0
  %925 = vmatprep.subr.mxu0 0.0
  %926 = vmatpush1.msra.mxu0 0.0
  %927 = vmatprep.subr.mxu0 0.0
  %928 = vmatpush1.msra.mxu0 0.0
  %929 = vmatprep.subr.mxu0 0.0
  %930 = vmatpush1.msra.mxu0 0.0
  %931 = vmatprep.subr.mxu0 0.0
  %932 = vmatpush1.msra.mxu0 0.0
  %933 = vmatprep.subr.mxu0 0.0
  %934 = vmatpush1.msra.mxu0 0.0
  %935 = vmatprep.subr.mxu0 0.0
  %936 = vmatpush1.msra.mxu0 0.0
  %937 = vmatprep.subr.mxu0 0.0
  %938 = vmatpush1.msra.mxu0 0.0
  %939 = vmatprep.subr.mxu0 0.0
  %940 = vmatpush1.msra.mxu0 0.0
  %941 = vmatprep.subr.mxu0 0.0
  %942 = vmatpush1.msra.mxu0 0.0
  %943 = vmatprep.subr.mxu0 0.0
  %944 = vmatpush1.msra.mxu0 0.0
  %945 = vmatprep.subr.mxu0 0.0
  %946 = vmatpush1.msra.mxu0 0.0
  %947 = vmatprep.mubr.f32.mxu0 0.0
  %948 = vmatmul.mubr.f32.gmra.mrb[0].mxu0 %v810
  %v949 = vpop.f32.mrb[0].mxu0
  %v950 = vadd.f32 0.0, %v949
  %v951 = vpop.f32.mrb[0].mxu0
  %v952 = vadd.f32 0.0, %v951
  %953 = vdwg.mxu0
  %954 = vmatprep.subr.mxu0 0.0
  %955 = vmatpush1.msra.mxu0 %v791
  %956 = vmatprep.subr.mxu0 0.0
  %957 = vmatpush1.msra.mxu0 %v796
  %958 = vmatprep.subr.mxu0 0.0
  %959 = vmatpush1.msra.mxu0 %v801
  %960 = vmatprep.subr.mxu0 0.0
  %961 = vmatpush1.msra.mxu0 %v806
  %962 = vmatprep.subr.mxu0 0.0
  %963 = vmatpush1.msra.mxu0 0.0
  %964 = vmatprep.subr.mxu0 0.0
  %965 = vmatpush1.msra.mxu0 0.0
  %966 = vmatprep.subr.mxu0 0.0
  %967 = vmatpush1.msra.mxu0 0.0
  %968 = vmatprep.subr.mxu0 0.0
  %969 = vmatpush1.msra.mxu0 0.0
  %970 = vmatprep.subr.mxu0 0.0
  %971 = vmatpush1.msra.mxu0 0.0
  %972 = vmatprep.subr.mxu0 0.0
  %973 = vmatpush1.msra.mxu0 0.0
  %974 = vmatprep.subr.mxu0 0.0
  %975 = vmatpush1.msra.mxu0 0.0
  %976 = vmatprep.subr.mxu0 0.0
  %977 = vmatpush1.msra.mxu0 0.0
  %978 = vmatprep.subr.mxu0 0.0
  %979 = vmatpush1.msra.mxu0 0.0
  %980 = vmatprep.subr.mxu0 0.0
  %981 = vmatpush1.msra.mxu0 0.0
  %982 = vmatprep.subr.mxu0 0.0
  %983 = vmatpush1.msra.mxu0 0.0
  %984 = vmatprep.subr.mxu0 0.0
  %985 = vmatpush1.msra.mxu0 0.0
  %986 = vmatprep.subr.mxu0 0.0
  %987 = vmatpush1.msra.mxu0 0.0
  %988 = vmatprep.subr.mxu0 0.0
  %989 = vmatpush1.msra.mxu0 0.0
  %990 = vmatprep.subr.mxu0 0.0
  %991 = vmatpush1.msra.mxu0 0.0
  %992 = vmatprep.subr.mxu0 0.0
  %993 = vmatpush1.msra.mxu0 0.0
  %994 = vmatprep.subr.mxu0 0.0
  %995 = vmatpush1.msra.mxu0 0.0
  %996 = vmatprep.subr.mxu0 0.0
  %997 = vmatpush1.msra.mxu0 0.0
  %998 = vmatprep.subr.mxu0 0.0
  %999 = vmatpush1.msra.mxu0 0.0
  %1000 = vmatprep.subr.mxu0 0.0
  %1001 = vmatpush1.msra.mxu0 0.0
  %1002 = vmatprep.subr.mxu0 0.0
  %1003 = vmatpush1.msra.mxu0 0.0
  %1004 = vmatprep.subr.mxu0 0.0
  %1005 = vmatpush1.msra.mxu0 0.0
  %1006 = vmatprep.subr.mxu0 0.0
  %1007 = vmatpush1.msra.mxu0 0.0
  %1008 = vmatprep.subr.mxu0 0.0
  %1009 = vmatpush1.msra.mxu0 0.0
  %1010 = vmatprep.subr.mxu0 0.0
  %1011 = vmatpush1.msra.mxu0 0.0
  %1012 = vmatprep.subr.mxu0 0.0
  %1013 = vmatpush1.msra.mxu0 0.0
  %1014 = vmatprep.subr.mxu0 0.0
  %1015 = vmatpush1.msra.mxu0 0.0
  %1016 = vmatprep.subr.mxu0 0.0
  %1017 = vmatpush1.msra.mxu0 0.0
  %1018 = vmatprep.mubr.f32.mxu0 0.0
  %1019 = vmatmul.mubr.f32.gmra.mrb[0].mxu0 %v810
  %v1020 = vpop.f32.mrb[0].mxu0
  %v1021 = vadd.f32 0.0, %v1020
  %v1022 = vpop.f32.mrb[0].mxu0
  %1023 = vdwg.mxu0
  %1025 = vrot.lane.b32.xlu0 %v879, 96
  %v1026 = vpop.permute.xlu0 %1025
  %1028 = vrot.lane.b32.xlu0 %v879, 64
  %v1029 = vpop.permute.xlu0 %1028
  %1031 = vrot.lane.b32.xlu0 %v879, 32
  %v1032 = vpop.permute.xlu0 %1031
  %1035 = vrot.lane.b32.xlu0 %v881, 96
  %v1036 = vpop.permute.xlu0 %1035
  %1038 = vrot.lane.b32.xlu0 %v881, 64
  %v1039 = vpop.permute.xlu0 %1038
  %1041 = vrot.lane.b32.xlu0 %v881, 32
  %v1042 = vpop.permute.xlu0 %1041
  %1045 = vrot.lane.b32.xlu0 %v950, 96
  %v1046 = vpop.permute.xlu0 %1045
  %1048 = vrot.lane.b32.xlu0 %v950, 64
  %v1049 = vpop.permute.xlu0 %1048
  %1051 = vrot.lane.b32.xlu0 %v950, 32
  %v1052 = vpop.permute.xlu0 %1051
  %1055 = vrot.lane.b32.xlu0 %v952, 96
  %v1056 = vpop.permute.xlu0 %1055
  %1058 = vrot.lane.b32.xlu0 %v952, 64
  %v1059 = vpop.permute.xlu0 %1058
  %1061 = vrot.lane.b32.xlu0 %v952, 32
  %v1062 = vpop.permute.xlu0 %1061
  %v1064 = vld [vmem:[%s0 + $0x10] sm:$0xff]
  %1065 = vmatprep.subr.mxu0 0.0
  %1066 = vmatpush1.msra.mxu0 %v879
  %1067 = vmatprep.subr.mxu0 0.0
  %1068 = vmatpush1.msra.mxu0 %v1026
  %1069 = vmatprep.subr.mxu0 0.0
  %1070 = vmatpush1.msra.mxu0 %v1029
  %1071 = vmatprep.subr.mxu0 0.0
  %1072 = vmatpush1.msra.mxu0 %v1032
  %1073 = vmatprep.subr.mxu0 0.0
  %1074 = vmatpush1.msra.mxu0 %v881
  %1075 = vmatprep.subr.mxu0 0.0
  %1076 = vmatpush1.msra.mxu0 %v1036
  %1077 = vmatprep.subr.mxu0 0.0
  %1078 = vmatpush1.msra.mxu0 %v1039
  %1079 = vmatprep.subr.mxu0 0.0
  %1080 = vmatpush1.msra.mxu0 %v1042
  %1081 = vmatprep.subr.mxu0 0.0
  %1082 = vmatpush1.msra.mxu0 %v950
  %1083 = vmatprep.subr.mxu0 0.0
  %1084 = vmatpush1.msra.mxu0 %v1046
  %1085 = vmatprep.subr.mxu0 0.0
  %1086 = vmatpush1.msra.mxu0 %v1049
  %1087 = vmatprep.subr.mxu0 0.0
  %1088 = vmatpush1.msra.mxu0 %v1052
  %1089 = vmatprep.subr.mxu0 0.0
  %1090 = vmatpush1.msra.mxu0 %v952
  %1091 = vmatprep.subr.mxu0 0.0
  %1092 = vmatpush1.msra.mxu0 %v1056
  %1093 = vmatprep.subr.mxu0 0.0
  %1094 = vmatpush1.msra.mxu0 %v1059
  %1095 = vmatprep.subr.mxu0 0.0
  %1096 = vmatpush1.msra.mxu0 %v1062
  %1097 = vmatprep.subr.mxu0 0.0
  %1098 = vmatpush1.msra.mxu0 0.0
  %1099 = vmatprep.subr.mxu0 0.0
  %1100 = vmatpush1.msra.mxu0 0.0
  %1101 = vmatprep.subr.mxu0 0.0
  %1102 = vmatpush1.msra.mxu0 0.0
  %1103 = vmatprep.subr.mxu0 0.0
  %1104 = vmatpush1.msra.mxu0 0.0
  %1105 = vmatprep.subr.mxu0 0.0
  %1106 = vmatpush1.msra.mxu0 0.0
  %1107 = vmatprep.subr.mxu0 0.0
  %1108 = vmatpush1.msra.mxu0 0.0
  %1109 = vmatprep.subr.mxu0 0.0
  %1110 = vmatpush1.msra.mxu0 0.0
  %1111 = vmatprep.subr.mxu0 0.0
  %1112 = vmatpush1.msra.mxu0 0.0
  %1113 = vmatprep.subr.mxu0 0.0
  %1114 = vmatpush1.msra.mxu0 0.0
  %1115 = vmatprep.subr.mxu0 0.0
  %1116 = vmatpush1.msra.mxu0 0.0
  %1117 = vmatprep.subr.mxu0 0.0
  %1118 = vmatpush1.msra.mxu0 0.0
  %1119 = vmatprep.subr.mxu0 0.0
  %1120 = vmatpush1.msra.mxu0 0.0
  %1121 = vmatprep.subr.mxu0 0.0
  %1122 = vmatpush1.msra.mxu0 0.0
  %1123 = vmatprep.subr.mxu0 0.0
  %1124 = vmatpush1.msra.mxu0 0.0
  %1125 = vmatprep.subr.mxu0 0.0
  %1126 = vmatpush1.msra.mxu0 0.0
  %1127 = vmatprep.subr.mxu0 0.0
  %1128 = vmatpush1.msra.mxu0 0.0
  %1129 = vmatprep.mubr.f32.mxu0 0.0
  %1130 = vmatmul.mubr.f32.gmra.mrb[0].mxu0 %v1064
  %v1131 = vpop.f32.mrb[0].mxu0
  %v1132 = vadd.f32 %v18, %v1131
  %v1133 = vpop.f32.mrb[0].mxu0
  %1134 = vdwg.mxu0
  %v1135 = vmax.f32 %v1132, 0.0
  %v1136 = vld [vmem:[#allocation2 + $0x8] sm:$0xff]
  %v1137 = vadd.f32 %v1136, %v1021
  %v1138 = vld [vmem:[%s1 + $0xa0] sm:$0xff]
  %v1139 = vld [vmem:[%s1 + $0xc8] sm:$0xff]
  %v1140 = vld [vmem:[%s1 + $0xf0] sm:$0xff]
  %v1141 = vld [vmem:[%s1 + $0x118] sm:$0xff]
  %v1143 = vsel %vm175, %v1135, 0
  %1145 = vmatprep.subr.mxu0 0.0
  %1146 = vmatpush1.msra.mxu0 %v1138
  %1147 = vmatprep.subr.mxu0 0.0
  %1148 = vmatpush1.msra.mxu0 %v1139
  %1149 = vmatprep.subr.mxu0 0.0
  %1150 = vmatpush1.msra.mxu0 %v1140
  %1151 = vmatprep.subr.mxu0 0.0
  %1152 = vmatpush1.msra.mxu0 %v1141
  %1153 = vmatprep.subr.mxu0 0.0
  %1154 = vmatpush1.msra.mxu0 0.0
  %1155 = vmatprep.subr.mxu0 0.0
  %1156 = vmatpush1.msra.mxu0 0.0
  %1157 = vmatprep.subr.mxu0 0.0
  %1158 = vmatpush1.msra.mxu0 0.0
  %1159 = vmatprep.subr.mxu0 0.0
  %1160 = vmatpush1.msra.mxu0 0.0
  %1161 = vmatprep.subr.mxu0 0.0
  %1162 = vmatpush1.msra.mxu0 0.0
  %1163 = vmatprep.subr.mxu0 0.0
  %1164 = vmatpush1.msra.mxu0 0.0
  %1165 = vmatprep.subr.mxu0 0.0
  %1166 = vmatpush1.msra.mxu0 0.0
  %1167 = vmatprep.subr.mxu0 0.0
  %1168 = vmatpush1.msra.mxu0 0.0
  %1169 = vmatprep.subr.mxu0 0.0
  %1170 = vmatpush1.msra.mxu0 0.0
  %1171 = vmatprep.subr.mxu0 0.0
  %1172 = vmatpush1.msra.mxu0 0.0
  %1173 = vmatprep.subr.mxu0 0.0
  %1174 = vmatpush1.msra.mxu0 0.0
  %1175 = vmatprep.subr.mxu0 0.0
  %1176 = vmatpush1.msra.mxu0 0.0
  %1177 = vmatprep.subr.mxu0 0.0
  %1178 = vmatpush1.msra.mxu0 0.0
  %1179 = vmatprep.subr.mxu0 0.0
  %1180 = vmatpush1.msra.mxu0 0.0
  %1181 = vmatprep.subr.mxu0 0.0
  %1182 = vmatpush1.msra.mxu0 0.0
  %1183 = vmatprep.subr.mxu0 0.0
  %1184 = vmatpush1.msra.mxu0 0.0
  %1185 = vmatprep.subr.mxu0 0.0
  %1186 = vmatpush1.msra.mxu0 0.0
  %1187 = vmatprep.subr.mxu0 0.0
  %1188 = vmatpush1.msra.mxu0 0.0
  %1189 = vmatprep.subr.mxu0 0.0
  %1190 = vmatpush1.msra.mxu0 0.0
  %1191 = vmatprep.subr.mxu0 0.0
  %1192 = vmatpush1.msra.mxu0 0.0
  %1193 = vmatprep.subr.mxu0 0.0
  %1194 = vmatpush1.msra.mxu0 0.0
  %1195 = vmatprep.subr.mxu0 0.0
  %1196 = vmatpush1.msra.mxu0 0.0
  %1197 = vmatprep.subr.mxu0 0.0
  %1198 = vmatpush1.msra.mxu0 0.0
  %1199 = vmatprep.subr.mxu0 0.0
  %1200 = vmatpush1.msra.mxu0 0.0
  %1201 = vmatprep.subr.mxu0 0.0
  %1202 = vmatpush1.msra.mxu0 0.0
  %1203 = vmatprep.subr.mxu0 0.0
  %1204 = vmatpush1.msra.mxu0 0.0
  %1205 = vmatprep.subr.mxu0 0.0
  %1206 = vmatpush1.msra.mxu0 0.0
  %1207 = vmatprep.subr.mxu0 0.0
  %1208 = vmatpush1.msra.mxu0 0.0
  %1209 = vmatprep.mubr.f32.mxu0 0.0
  %1210 = vmatmul.mubr.f32.gmra.mrb[0].mxu0 %v1143
  %v1211 = vpop.f32.mrb[0].mxu0
  %v1212 = vadd.f32 0.0, %v1211
  %v1213 = vpop.f32.mrb[0].mxu0
  %1214 = vdwg.mxu0
  %v1215 = vadd.f32 %v1137, %v1212
  %v1216 = vxor.u32 %v1215, 2147483648
  %v1217 = vmul.f32 %v1216, 1.442695
  %v1218 = vpow.pop %v1217
  %v1219 = vadd.f32 %v1218, 1.0
  %v1220 = vrcp.pop %v1219
  %v1221 = vmul.f32 1.0, %v1220
  %v1222 = vtanh.pop %v1215
  %v1223 = vmul.f32 %v1221, %v786
  %1225 = vrot.lane.b32.xlu0 %v1222, 32
  %v1226 = vpop.permute.xlu0 %1225
  %v1228 = vmul.f32 %v1221, %v1226
  %1230 = vrot.lane.b32.xlu0 %v1228, 32
  %v1231 = vpop.permute.xlu0 %1230
  %v1233 = vadd.f32 %v1223, %v1231
  %v1234 = vtanh.pop %v1233
  %1236 = vrot.lane.b32.xlu0 %v1234, 32
  %v1237 = vpop.permute.xlu0 %1236
  %v1239 = vmul.f32 %v1221, %v1237
  %1241 = vrot.lane.b32.xlu0 %v1239, 64
  %v1242 = vpop.permute.xlu0 %1241
  %1244 = vst.msk [vmem:[#allocation3 + $0x8] sm:$0xff] %vm175, %v1242
  %v1245 = vld [vmem:[%s0 + $0x18] sm:$0xff]
  %vm1246 = vcmp.gt.f32.partialorder %v1245, 0.0
  %v1247 = vsel %vm1246, 1, 0
  %1248 = vset.pattern.permute.xlu0 2
  %1249 = vperm.xlu0 %1248, %v1247
  %v1250 = vpop.permute.xlu0 %1249
  %vm1251 = vcmp.eq.s32.totalorder %v1250, 1
  %v1252 = vsel %vm1251, %v1239, %v785
  %v1253 = vsel %vm1251, %v1233, %v786
  %v1254 = vld [vmem:[%s1] sm:$0xff]
  %v1255 = vld [vmem:[%s1 + $0x8] sm:$0xff]
  %v1256 = vld [vmem:[%s1 + $0x10] sm:$0xff]
  %v1257 = vld [vmem:[%s1 + $0x18] sm:$0xff]
  %v1258 = vld [vmem:[%s1 + $0x20] sm:$0xff]
  %v1259 = vld [vmem:[%s1 + $0x28] sm:$0xff]
  %v1260 = vld [vmem:[%s1 + $0x30] sm:$0xff]
  %v1261 = vld [vmem:[%s1 + $0x38] sm:$0xff]
  %v1262 = vld [vmem:[%s1 + $0x40] sm:$0xff]
  %v1263 = vld [vmem:[%s1 + $0x48] sm:$0xff]
  %v1264 = vld [vmem:[%s1 + $0x50] sm:$0xff]
  %v1265 = vld [vmem:[%s1 + $0x58] sm:$0xff]
  %v1266 = vld [vmem:[%s1 + $0x60] sm:$0xff]
  %v1267 = vld [vmem:[%s1 + $0x68] sm:$0xff]
  %v1268 = vld [vmem:[%s1 + $0x70] sm:$0xff]
  %v1269 = vld [vmem:[%s1 + $0x78] sm:$0xff]
  %v1270 = vld [vmem:[%s1 + $0x80] sm:$0xff]
  %v1271 = vld [vmem:[%s1 + $0x88] sm:$0xff]
  %v1272 = vld [vmem:[%s1 + $0x90] sm:$0xff]
  %v1273 = vld [vmem:[%s1 + $0x98] sm:$0xff]
  %1275 = vrot.lane.b32.xlu0 %v1252, 64
  %v1276 = vpop.permute.xlu0 %1275
  %v1277 = vsel %vm175, %v1276, 0
  %1279 = vmatprep.subr.mxu0 %v1255
  %1280 = vmatpush1.msra.mxu0 %v1254
  %1281 = vmatprep.subr.mxu0 %v1260
  %1282 = vmatpush1.msra.mxu0 %v1259
  %1283 = vmatprep.subr.mxu0 %v1265
  %1284 = vmatpush1.msra.mxu0 %v1264
  %1285 = vmatprep.subr.mxu0 %v1270
  %1286 = vmatpush1.msra.mxu0 %v1269
  %1287 = vmatprep.subr.mxu0 0.0
  %1288 = vmatpush1.msra.mxu0 0.0
  %1289 = vmatprep.subr.mxu0 0.0
  %1290 = vmatpush1.msra.mxu0 0.0
  %1291 = vmatprep.subr.mxu0 0.0
  %1292 = vmatpush1.msra.mxu0 0.0
  %1293 = vmatprep.subr.mxu0 0.0
  %1294 = vmatpush1.msra.mxu0 0.0
  %1295 = vmatprep.subr.mxu0 0.0
  %1296 = vmatpush1.msra.mxu0 0.0
  %1297 = vmatprep.subr.mxu0 0.0
  %1298 = vmatpush1.msra.mxu0 0.0
  %1299 = vmatprep.subr.mxu0 0.0
  %1300 = vmatpush1.msra.mxu0 0.0
  %1301 = vmatprep.subr.mxu0 0.0
  %1302 = vmatpush1.msra.mxu0 0.0
  %1303 = vmatprep.subr.mxu0 0.0
  %1304 = vmatpush1.msra.mxu0 0.0
  %1305 = vmatprep.subr.mxu0 0.0
  %1306 = vmatpush1.msra.mxu0 0.0
  %1307 = vmatprep.subr.mxu0 0.0
  %1308 = vmatpush1.msra.mxu0 0.0
  %1309 = vmatprep.subr.mxu0 0.0
  %1310 = vmatpush1.msra.mxu0 0.0
  %1311 = vmatprep.subr.mxu0 0.0
  %1312 = vmatpush1.msra.mxu0 0.0
  %1313 = vmatprep.subr.mxu0 0.0
  %1314 = vmatpush1.msra.mxu0 0.0
  %1315 = vmatprep.subr.mxu0 0.0
  %1316 = vmatpush1.msra.mxu0 0.0
  %1317 = vmatprep.subr.mxu0 0.0
  %1318 = vmatpush1.msra.mxu0 0.0
  %1319 = vmatprep.subr.mxu0 0.0
  %1320 = vmatpush1.msra.mxu0 0.0
  %1321 = vmatprep.subr.mxu0 0.0
  %1322 = vmatpush1.msra.mxu0 0.0
  %1323 = vmatprep.subr.mxu0 0.0
  %1324 = vmatpush1.msra.mxu0 0.0
  %1325 = vmatprep.subr.mxu0 0.0
  %1326 = vmatpush1.msra.mxu0 0.0
  %1327 = vmatprep.subr.mxu0 0.0
  %1328 = vmatpush1.msra.mxu0 0.0
  %1329 = vmatprep.subr.mxu0 0.0
  %1330 = vmatpush1.msra.mxu0 0.0
  %1331 = vmatprep.subr.mxu0 0.0
  %1332 = vmatpush1.msra.mxu0 0.0
  %1333 = vmatprep.subr.mxu0 0.0
  %1334 = vmatpush1.msra.mxu0 0.0
  %1335 = vmatprep.subr.mxu0 0.0
  %1336 = vmatpush1.msra.mxu0 0.0
  %1337 = vmatprep.subr.mxu0 0.0
  %1338 = vmatpush1.msra.mxu0 0.0
  %1339 = vmatprep.subr.mxu0 0.0
  %1340 = vmatpush1.msra.mxu0 0.0
  %1341 = vmatprep.subr.mxu0 0.0
  %1342 = vmatpush1.msra.mxu0 0.0
  %1343 = vmatprep.mubr.f32.mxu0 0.0
  %1344 = vmatmul.mubr.f32.gmra.mrb[0].mxu0 %v1277
  %v1345 = vpop.f32.mrb[0].mxu0
  %v1346 = vadd.f32 0.0, %v1345
  %v1347 = vpop.f32.mrb[0].mxu0
  %v1348 = vadd.f32 0.0, %v1347
  %1349 = vdwg.mxu0
  %1350 = vmatprep.subr.mxu0 %v1257
  %1351 = vmatpush1.msra.mxu0 %v1256
  %1352 = vmatprep.subr.mxu0 %v1262
  %1353 = vmatpush1.msra.mxu0 %v1261
  %1354 = vmatprep.subr.mxu0 %v1267
  %1355 = vmatpush1.msra.mxu0 %v1266
  %1356 = vmatprep.subr.mxu0 %v1272
  %1357 = vmatpush1.msra.mxu0 %v1271
  %1358 = vmatprep.subr.mxu0 0.0
  %1359 = vmatpush1.msra.mxu0 0.0
  %1360 = vmatprep.subr.mxu0 0.0
  %1361 = vmatpush1.msra.mxu0 0.0
  %1362 = vmatprep.subr.mxu0 0.0
  %1363 = vmatpush1.msra.mxu0 0.0
  %1364 = vmatprep.subr.mxu0 0.0
  %1365 = vmatpush1.msra.mxu0 0.0
  %1366 = vmatprep.subr.mxu0 0.0
  %1367 = vmatpush1.msra.mxu0 0.0
  %1368 = vmatprep.subr.mxu0 0.0
  %1369 = vmatpush1.msra.mxu0 0.0
  %1370 = vmatprep.subr.mxu0 0.0
  %1371 = vmatpush1.msra.mxu0 0.0
  %1372 = vmatprep.subr.mxu0 0.0
  %1373 = vmatpush1.msra.mxu0 0.0
  %1374 = vmatprep.subr.mxu0 0.0
  %1375 = vmatpush1.msra.mxu0 0.0
  %1376 = vmatprep.subr.mxu0 0.0
  %1377 = vmatpush1.msra.mxu0 0.0
  %1378 = vmatprep.subr.mxu0 0.0
  %1379 = vmatpush1.msra.mxu0 0.0
  %1380 = vmatprep.subr.mxu0 0.0
  %1381 = vmatpush1.msra.mxu0 0.0
  %1382 = vmatprep.subr.mxu0 0.0
  %1383 = vmatpush1.msra.mxu0 0.0
  %1384 = vmatprep.subr.mxu0 0.0
  %1385 = vmatpush1.msra.mxu0 0.0
  %1386 = vmatprep.subr.mxu0 0.0
  %1387 = vmatpush1.msra.mxu0 0.0
  %1388 = vmatprep.subr.mxu0 0.0
  %1389 = vmatpush1.msra.mxu0 0.0
  %1390 = vmatprep.subr.mxu0 0.0
  %1391 = vmatpush1.msra.mxu0 0.0
  %1392 = vmatprep.subr.mxu0 0.0
  %1393 = vmatpush1.msra.mxu0 0.0
  %1394 = vmatprep.subr.mxu0 0.0
  %1395 = vmatpush1.msra.mxu0 0.0
  %1396 = vmatprep.subr.mxu0 0.0
  %1397 = vmatpush1.msra.mxu0 0.0
  %1398 = vmatprep.subr.mxu0 0.0
  %1399 = vmatpush1.msra.mxu0 0.0
  %1400 = vmatprep.subr.mxu0 0.0
  %1401 = vmatpush1.msra.mxu0 0.0
  %1402 = vmatprep.subr.mxu0 0.0
  %1403 = vmatpush1.msra.mxu0 0.0
  %1404 = vmatprep.subr.mxu0 0.0
  %1405 = vmatpush1.msra.mxu0 0.0
  %1406 = vmatprep.subr.mxu0 0.0
  %1407 = vmatpush1.msra.mxu0 0.0
  %1408 = vmatprep.subr.mxu0 0.0
  %1409 = vmatpush1.msra.mxu0 0.0
  %1410 = vmatprep.subr.mxu0 0.0
  %1411 = vmatpush1.msra.mxu0 0.0
  %1412 = vmatprep.subr.mxu0 0.0
  %1413 = vmatpush1.msra.mxu0 0.0
  %1414 = vmatprep.mubr.f32.mxu0 0.0
  %1415 = vmatmul.mubr.f32.gmra.mrb[0].mxu0 %v1277
  %v1416 = vpop.f32.mrb[0].mxu0
  %v1417 = vadd.f32 0.0, %v1416
  %v1418 = vpop.f32.mrb[0].mxu0
  %v1419 = vadd.f32 0.0, %v1418
  %1420 = vdwg.mxu0
  %1421 = vmatprep.subr.mxu0 0.0
  %1422 = vmatpush1.msra.mxu0 %v1258
  %1423 = vmatprep.subr.mxu0 0.0
  %1424 = vmatpush1.msra.mxu0 %v1263
  %1425 = vmatprep.subr.mxu0 0.0
  %1426 = vmatpush1.msra.mxu0 %v1268
  %1427 = vmatprep.subr.mxu0 0.0
  %1428 = vmatpush1.msra.mxu0 %v1273
  %1429 = vmatprep.subr.mxu0 0.0
  %1430 = vmatpush1.msra.mxu0 0.0
  %1431 = vmatprep.subr.mxu0 0.0
  %1432 = vmatpush1.msra.mxu0 0.0
  %1433 = vmatprep.subr.mxu0 0.0
  %1434 = vmatpush1.msra.mxu0 0.0
  %1435 = vmatprep.subr.mxu0 0.0
  %1436 = vmatpush1.msra.mxu0 0.0
  %1437 = vmatprep.subr.mxu0 0.0
  %1438 = vmatpush1.msra.mxu0 0.0
  %1439 = vmatprep.subr.mxu0 0.0
  %1440 = vmatpush1.msra.mxu0 0.0
  %1441 = vmatprep.subr.mxu0 0.0
  %1442 = vmatpush1.msra.mxu0 0.0
  %1443 = vmatprep.subr.mxu0 0.0
  %1444 = vmatpush1.msra.mxu0 0.0
  %1445 = vmatprep.subr.mxu0 0.0
  %1446 = vmatpush1.msra.mxu0 0.0
  %1447 = vmatprep.subr.mxu0 0.0
  %1448 = vmatpush1.msra.mxu0 0.0
  %1449 = vmatprep.subr.mxu0 0.0
  %1450 = vmatpush1.msra.mxu0 0.0
  %1451 = vmatprep.subr.mxu0 0.0
  %1452 = vmatpush1.msra.mxu0 0.0
  %1453 = vmatprep.subr.mxu0 0.0
  %1454 = vmatpush1.msra.mxu0 0.0
  %1455 = vmatprep.subr.mxu0 0.0
  %1456 = vmatpush1.msra.mxu0 0.0
  %1457 = vmatprep.subr.mxu0 0.0
  %1458 = vmatpush1.msra.mxu0 0.0
  %1459 = vmatprep.subr.mxu0 0.0
  %1460 = vmatpush1.msra.mxu0 0.0
  %1461 = vmatprep.subr.mxu0 0.0
  %1462 = vmatpush1.msra.mxu0 0.0
  %1463 = vmatprep.subr.mxu0 0.0
  %1464 = vmatpush1.msra.mxu0 0.0
  %1465 = vmatprep.subr.mxu0 0.0
  %1466 = vmatpush1.msra.mxu0 0.0
  %1467 = vmatprep.subr.mxu0 0.0
  %1468 = vmatpush1.msra.mxu0 0.0
  %1469 = vmatprep.subr.mxu0 0.0
  %1470 = vmatpush1.msra.mxu0 0.0
  %1471 = vmatprep.subr.mxu0 0.0
  %1472 = vmatpush1.msra.mxu0 0.0
  %1473 = vmatprep.subr.mxu0 0.0
  %1474 = vmatpush1.msra.mxu0 0.0
  %1475 = vmatprep.subr.mxu0 0.0
  %1476 = vmatpush1.msra.mxu0 0.0
  %1477 = vmatprep.subr.mxu0 0.0
  %1478 = vmatpush1.msra.mxu0 0.0
  %1479 = vmatprep.subr.mxu0 0.0
  %1480 = vmatpush1.msra.mxu0 0.0
  %1481 = vmatprep.subr.mxu0 0.0
  %1482 = vmatpush1.msra.mxu0 0.0
  %1483 = vmatprep.subr.mxu0 0.0
  %1484 = vmatpush1.msra.mxu0 0.0
  %1485 = vmatprep.mubr.f32.mxu0 0.0
  %1486 = vmatmul.mubr.f32.gmra.mrb[0].mxu0 %v1277
  %v1487 = vpop.f32.mrb[0].mxu0
  %v1488 = vadd.f32 0.0, %v1487
  %v1489 = vpop.f32.mrb[0].mxu0
  %1490 = vdwg.mxu0
  %1492 = vrot.lane.b32.xlu0 %v1346, 96
  %v1493 = vpop.permute.xlu0 %1492
  %1495 = vrot.lane.b32.xlu0 %v1346, 64
  %v1496 = vpop.permute.xlu0 %1495
  %1498 = vrot.lane.b32.xlu0 %v1346, 32
  %v1499 = vpop.permute.xlu0 %1498
  %1502 = vrot.lane.b32.xlu0 %v1348, 96
  %v1503 = vpop.permute.xlu0 %1502
  %1505 = vrot.lane.b32.xlu0 %v1348, 64
  %v1506 = vpop.permute.xlu0 %1505
  %1508 = vrot.lane.b32.xlu0 %v1348, 32
  %v1509 = vpop.permute.xlu0 %1508
  %1512 = vrot.lane.b32.xlu0 %v1417, 96
  %v1513 = vpop.permute.xlu0 %1512
  %1515 = vrot.lane.b32.xlu0 %v1417, 64
  %v1516 = vpop.permute.xlu0 %1515
  %1518 = vrot.lane.b32.xlu0 %v1417, 32
  %v1519 = vpop.permute.xlu0 %1518
  %1522 = vrot.lane.b32.xlu0 %v1419, 96
  %v1523 = vpop.permute.xlu0 %1522
  %1525 = vrot.lane.b32.xlu0 %v1419, 64
  %v1526 = vpop.permute.xlu0 %1525
  %1528 = vrot.lane.b32.xlu0 %v1419, 32
  %v1529 = vpop.permute.xlu0 %1528
  %v1531 = vld [vmem:[%s0 + $0x20] sm:$0xff]
  %1532 = vmatprep.subr.mxu0 0.0
  %1533 = vmatpush1.msra.mxu0 %v1346
  %1534 = vmatprep.subr.mxu0 0.0
  %1535 = vmatpush1.msra.mxu0 %v1493
  %1536 = vmatprep.subr.mxu0 0.0
  %1537 = vmatpush1.msra.mxu0 %v1496
  %1538 = vmatprep.subr.mxu0 0.0
  %1539 = vmatpush1.msra.mxu0 %v1499
  %1540 = vmatprep.subr.mxu0 0.0
  %1541 = vmatpush1.msra.mxu0 %v1348
  %1542 = vmatprep.subr.mxu0 0.0
  %1543 = vmatpush1.msra.mxu0 %v1503
  %1544 = vmatprep.subr.mxu0 0.0
  %1545 = vmatpush1.msra.mxu0 %v1506
  %1546 = vmatprep.subr.mxu0 0.0
  %1547 = vmatpush1.msra.mxu0 %v1509
  %1548 = vmatprep.subr.mxu0 0.0
  %1549 = vmatpush1.msra.mxu0 %v1417
  %1550 = vmatprep.subr.mxu0 0.0
  %1551 = vmatpush1.msra.mxu0 %v1513
  %1552 = vmatprep.subr.mxu0 0.0
  %1553 = vmatpush1.msra.mxu0 %v1516
  %1554 = vmatprep.subr.mxu0 0.0
  %1555 = vmatpush1.msra.mxu0 %v1519
  %1556 = vmatprep.subr.mxu0 0.0
  %1557 = vmatpush1.msra.mxu0 %v1419
  %1558 = vmatprep.subr.mxu0 0.0
  %1559 = vmatpush1.msra.mxu0 %v1523
  %1560 = vmatprep.subr.mxu0 0.0
  %1561 = vmatpush1.msra.mxu0 %v1526
  %1562 = vmatprep.subr.mxu0 0.0
  %1563 = vmatpush1.msra.mxu0 %v1529
  %1564 = vmatprep.subr.mxu0 0.0
  %1565 = vmatpush1.msra.mxu0 0.0
  %1566 = vmatprep.subr.mxu0 0.0
  %1567 = vmatpush1.msra.mxu0 0.0
  %1568 = vmatprep.subr.mxu0 0.0
  %1569 = vmatpush1.msra.mxu0 0.0
  %1570 = vmatprep.subr.mxu0 0.0
  %1571 = vmatpush1.msra.mxu0 0.0
  %1572 = vmatprep.subr.mxu0 0.0
  %1573 = vmatpush1.msra.mxu0 0.0
  %1574 = vmatprep.subr.mxu0 0.0
  %1575 = vmatpush1.msra.mxu0 0.0
  %1576 = vmatprep.subr.mxu0 0.0
  %1577 = vmatpush1.msra.mxu0 0.0
  %1578 = vmatprep.subr.mxu0 0.0
  %1579 = vmatpush1.msra.mxu0 0.0
  %1580 = vmatprep.subr.mxu0 0.0
  %1581 = vmatpush1.msra.mxu0 0.0
  %1582 = vmatprep.subr.mxu0 0.0
  %1583 = vmatpush1.msra.mxu0 0.0
  %1584 = vmatprep.subr.mxu0 0.0
  %1585 = vmatpush1.msra.mxu0 0.0
  %1586 = vmatprep.subr.mxu0 0.0
  %1587 = vmatpush1.msra.mxu0 0.0
  %1588 = vmatprep.subr.mxu0 0.0
  %1589 = vmatpush1.msra.mxu0 0.0
  %1590 = vmatprep.subr.mxu0 0.0
  %1591 = vmatpush1.msra.mxu0 0.0
  %1592 = vmatprep.subr.mxu0 0.0
  %1593 = vmatpush1.msra.mxu0 0.0
  %1594 = vmatprep.subr.mxu0 0.0
  %1595 = vmatpush1.msra.mxu0 0.0
  %1596 = vmatprep.mubr.f32.mxu0 0.0
  %1597 = vmatmul.mubr.f32.gmra.mrb[0].mxu0 %v1531
  %v1598 = vpop.f32.mrb[0].mxu0
  %v1599 = vadd.f32 %v18, %v1598
  %v1600 = vpop.f32.mrb[0].mxu0
  %1601 = vdwg.mxu0
  %v1602 = vmax.f32 %v1599, 0.0
  %v1603 = vld [vmem:[#allocation2 + $0x10] sm:$0xff]
  %v1604 = vadd.f32 %v1603, %v1488
  %v1605 = vld [vmem:[%s1 + $0xa0] sm:$0xff]
  %v1606 = vld [vmem:[%s1 + $0xc8] sm:$0xff]
  %v1607 = vld [vmem:[%s1 + $0xf0] sm:$0xff]
  %v1608 = vld [vmem:[%s1 + $0x118] sm:$0xff]
  %v1610 = vsel %vm175, %v1602, 0
  %1612 = vmatprep.subr.mxu0 0.0
  %1613 = vmatpush1.msra.mxu0 %v1605
  %1614 = vmatprep.subr.mxu0 0.0
  %1615 = vmatpush1.msra.mxu0 %v1606
  %1616 = vmatprep.subr.mxu0 0.0
  %1617 = vmatpush1.msra.mxu0 %v1607
  %1618 = vmatprep.subr.mxu0 0.0
  %1619 = vmatpush1.msra.mxu0 %v1608
  %1620 = vmatprep.subr.mxu0 0.0
  %1621 = vmatpush1.msra.mxu0 0.0
  %1622 = vmatprep.subr.mxu0 0.0
  %1623 = vmatpush1.msra.mxu0 0.0
  %1624 = vmatprep.subr.mxu0 0.0
  %1625 = vmatpush1.msra.mxu0 0.0
  %1626 = vmatprep.subr.mxu0 0.0
  %1627 = vmatpush1.msra.mxu0 0.0
  %1628 = vmatprep.subr.mxu0 0.0
  %1629 = vmatpush1.msra.mxu0 0.0
  %1630 = vmatprep.subr.mxu0 0.0
  %1631 = vmatpush1.msra.mxu0 0.0
  %1632 = vmatprep.subr.mxu0 0.0
  %1633 = vmatpush1.msra.mxu0 0.0
  %1634 = vmatprep.subr.mxu0 0.0
  %1635 = vmatpush1.msra.mxu0 0.0
  %1636 = vmatprep.subr.mxu0 0.0
  %1637 = vmatpush1.msra.mxu0 0.0
  %1638 = vmatprep.subr.mxu0 0.0
  %1639 = vmatpush1.msra.mxu0 0.0
  %1640 = vmatprep.subr.mxu0 0.0
  %1641 = vmatpush1.msra.mxu0 0.0
  %1642 = vmatprep.subr.mxu0 0.0
  %1643 = vmatpush1.msra.mxu0 0.0
  %1644 = vmatprep.subr.mxu0 0.0
  %1645 = vmatpush1.msra.mxu0 0.0
  %1646 = vmatprep.subr.mxu0 0.0
  %1647 = vmatpush1.msra.mxu0 0.0
  %1648 = vmatprep.subr.mxu0 0.0
  %1649 = vmatpush1.msra.mxu0 0.0
  %1650 = vmatprep.subr.mxu0 0.0
  %1651 = vmatpush1.msra.mxu0 0.0
  %1652 = vmatprep.subr.mxu0 0.0
  %1653 = vmatpush1.msra.mxu0 0.0
  %1654 = vmatprep.subr.mxu0 0.0
  %1655 = vmatpush1.msra.mxu0 0.0
  %1656 = vmatprep.subr.mxu0 0.0
  %1657 = vmatpush1.msra.mxu0 0.0
  %1658 = vmatprep.subr.mxu0 0.0
  %1659 = vmatpush1.msra.mxu0 0.0
  %1660 = vmatprep.subr.mxu0 0.0
  %1661 = vmatpush1.msra.mxu0 0.0
  %1662 = vmatprep.subr.mxu0 0.0
  %1663 = vmatpush1.msra.mxu0 0.0
  %1664 = vmatprep.subr.mxu0 0.0
  %1665 = vmatpush1.msra.mxu0 0.0
  %1666 = vmatprep.subr.mxu0 0.0
  %1667 = vmatpush1.msra.mxu0 0.0
  %1668 = vmatprep.subr.mxu0 0.0
  %1669 = vmatpush1.msra.mxu0 0.0
  %1670 = vmatprep.subr.mxu0 0.0
  %1671 = vmatpush1.msra.mxu0 0.0
  %1672 = vmatprep.subr.mxu0 0.0
  %1673 = vmatpush1.msra.mxu0 0.0
  %1674 = vmatprep.subr.mxu0 0.0
  %1675 = vmatpush1.msra.mxu0 0.0
  %1676 = vmatprep.mubr.f32.mxu0 0.0
  %1677 = vmatmul.mubr.f32.gmra.mrb[0].mxu0 %v1610
  %v1678 = vpop.f32.mrb[0].mxu0
  %v1679 = vadd.f32 0.0, %v1678
  %v1680 = vpop.f32.mrb[0].mxu0
  %1681 = vdwg.mxu0
  %v1682 = vadd.f32 %v1604, %v1679
  %v1683 = vxor.u32 %v1682, 2147483648
  %v1684 = vmul.f32 %v1683, 1.442695
  %v1685 = vpow.pop %v1684
  %v1686 = vadd.f32 %v1685, 1.0
  %v1687 = vrcp.pop %v1686
  %v1688 = vmul.f32 1.0, %v1687
  %v1689 = vtanh.pop %v1682
  %v1690 = vmul.f32 %v1688, %v1253
  %1692 = vrot.lane.b32.xlu0 %v1689, 32
  %v1693 = vpop.permute.xlu0 %1692
  %v1695 = vmul.f32 %v1688, %v1693
  %1697 = vrot.lane.b32.xlu0 %v1695, 32
  %v1698 = vpop.permute.xlu0 %1697
  %v1700 = vadd.f32 %v1690, %v1698
  %v1701 = vtanh.pop %v1700
  %1703 = vrot.lane.b32.xlu0 %v1701, 32
  %v1704 = vpop.permute.xlu0 %1703
  %v1706 = vmul.f32 %v1688, %v1704
  %1708 = vrot.lane.b32.xlu0 %v1706, 64
  %v1709 = vpop.permute.xlu0 %1708
  %1711 = vst.msk [vmem:[#allocation3 + $0x10] sm:$0xff] %vm175, %v1709
  %v1712 = vld [vmem:[%s0 + $0x28] sm:$0xff]
  %vm1713 = vcmp.gt.f32.partialorder %v1712, 0.0
  %v1714 = vsel %vm1713, 1, 0
  %1715 = vset.pattern.permute.xlu0 2
  %1716 = vperm.xlu0 %1715, %v1714
  %v1717 = vpop.permute.xlu0 %1716
  %vm1718 = vcmp.eq.s32.totalorder %v1717, 1
  %v1719 = vsel %vm1718, %v1706, %v1252
  %v1720 = vsel %vm1718, %v1700, %v1253
  %v1721 = vld [vmem:[%s1] sm:$0xff]
  %v1722 = vld [vmem:[%s1 + $0x8] sm:$0xff]
  %v1723 = vld [vmem:[%s1 + $0x10] sm:$0xff]
  %v1724 = vld [vmem:[%s1 + $0x18] sm:$0xff]
  %v1725 = vld [vmem:[%s1 + $0x20] sm:$0xff]
  %v1726 = vld [vmem:[%s1 + $0x28] sm:$0xff]
  %v1727 = vld [vmem:[%s1 + $0x30] sm:$0xff]
  %v1728 = vld [vmem:[%s1 + $0x38] sm:$0xff]
  %v1729 = vld [vmem:[%s1 + $0x40] sm:$0xff]
  %v1730 = vld [vmem:[%s1 + $0x48] sm:$0xff]
  %v1731 = vld [vmem:[%s1 + $0x50] sm:$0xff]
  %v1732 = vld [vmem:[%s1 + $0x58] sm:$0xff]
  %v1733 = vld [vmem:[%s1 + $0x60] sm:$0xff]
  %v1734 = vld [vmem:[%s1 + $0x68] sm:$0xff]
  %v1735 = vld [vmem:[%s1 + $0x70] sm:$0xff]
  %v1736 = vld [vmem:[%s1 + $0x78] sm:$0xff]
  %v1737 = vld [vmem:[%s1 + $0x80] sm:$0xff]
  %v1738 = vld [vmem:[%s1 + $0x88] sm:$0xff]
  %v1739 = vld [vmem:[%s1 + $0x90] sm:$0xff]
  %v1740 = vld [vmem:[%s1 + $0x98] sm:$0xff]
  %1742 = vrot.lane.b32.xlu0 %v1719, 64
  %v1743 = vpop.permute.xlu0 %1742
  %v1744 = vsel %vm175, %v1743, 0
  %1746 = vmatprep.subr.mxu0 %v1722
  %1747 = vmatpush1.msra.mxu0 %v1721
  %1748 = vmatprep.subr.mxu0 %v1727
  %1749 = vmatpush1.msra.mxu0 %v1726
  %1750 = vmatprep.subr.mxu0 %v1732
  %1751 = vmatpush1.msra.mxu0 %v1731
  %1752 = vmatprep.subr.mxu0 %v1737
  %1753 = vmatpush1.msra.mxu0 %v1736
  %1754 = vmatprep.subr.mxu0 0.0
  %1755 = vmatpush1.msra.mxu0 0.0
  %1756 = vmatprep.subr.mxu0 0.0
  %1757 = vmatpush1.msra.mxu0 0.0
  %1758 = vmatprep.subr.mxu0 0.0
  %1759 = vmatpush1.msra.mxu0 0.0
  %1760 = vmatprep.subr.mxu0 0.0
  %1761 = vmatpush1.msra.mxu0 0.0
  %1762 = vmatprep.subr.mxu0 0.0
  %1763 = vmatpush1.msra.mxu0 0.0
  %1764 = vmatprep.subr.mxu0 0.0
  %1765 = vmatpush1.msra.mxu0 0.0
  %1766 = vmatprep.subr.mxu0 0.0
  %1767 = vmatpush1.msra.mxu0 0.0
  %1768 = vmatprep.subr.mxu0 0.0
  %1769 = vmatpush1.msra.mxu0 0.0
  %1770 = vmatprep.subr.mxu0 0.0
  %1771 = vmatpush1.msra.mxu0 0.0
  %1772 = vmatprep.subr.mxu0 0.0
  %1773 = vmatpush1.msra.mxu0 0.0
  %1774 = vmatprep.subr.mxu0 0.0
  %1775 = vmatpush1.msra.mxu0 0.0
  %1776 = vmatprep.subr.mxu0 0.0
  %1777 = vmatpush1.msra.mxu0 0.0
  %1778 = vmatprep.subr.mxu0 0.0
  %1779 = vmatpush1.msra.mxu0 0.0
  %1780 = vmatprep.subr.mxu0 0.0
  %1781 = vmatpush1.msra.mxu0 0.0
  %1782 = vmatprep.subr.mxu0 0.0
  %1783 = vmatpush1.msra.mxu0 0.0
  %1784 = vmatprep.subr.mxu0 0.0
  %1785 = vmatpush1.msra.mxu0 0.0
  %1786 = vmatprep.subr.mxu0 0.0
  %1787 = vmatpush1.msra.mxu0 0.0
  %1788 = vmatprep.subr.mxu0 0.0
  %1789 = vmatpush1.msra.mxu0 0.0
  %1790 = vmatprep.subr.mxu0 0.0
  %1791 = vmatpush1.msra.mxu0 0.0
  %1792 = vmatprep.subr.mxu0 0.0
  %1793 = vmatpush1.msra.mxu0 0.0
  %1794 = vmatprep.subr.mxu0 0.0
  %1795 = vmatpush1.msra.mxu0 0.0
  %1796 = vmatprep.subr.mxu0 0.0
  %1797 = vmatpush1.msra.mxu0 0.0
  %1798 = vmatprep.subr.mxu0 0.0
  %1799 = vmatpush1.msra.mxu0 0.0
  %1800 = vmatprep.subr.mxu0 0.0
  %1801 = vmatpush1.msra.mxu0 0.0
  %1802 = vmatprep.subr.mxu0 0.0
  %1803 = vmatpush1.msra.mxu0 0.0
  %1804 = vmatprep.subr.mxu0 0.0
  %1805 = vmatpush1.msra.mxu0 0.0
  %1806 = vmatprep.subr.mxu0 0.0
  %1807 = vmatpush1.msra.mxu0 0.0
  %1808 = vmatprep.subr.mxu0 0.0
  %1809 = vmatpush1.msra.mxu0 0.0
  %1810 = vmatprep.mubr.f32.mxu0 0.0
  %1811 = vmatmul.mubr.f32.gmra.mrb[0].mxu0 %v1744
  %v1812 = vpop.f32.mrb[0].mxu0
  %v1813 = vadd.f32 0.0, %v1812
  %v1814 = vpop.f32.mrb[0].mxu0
  %v1815 = vadd.f32 0.0, %v1814
  %1816 = vdwg.mxu0
  %1817 = vmatprep.subr.mxu0 %v1724
  %1818 = vmatpush1.msra.mxu0 %v1723
  %1819 = vmatprep.subr.mxu0 %v1729
  %1820 = vmatpush1.msra.mxu0 %v1728
  %1821 = vmatprep.subr.mxu0 %v1734
  %1822 = vmatpush1.msra.mxu0 %v1733
  %1823 = vmatprep.subr.mxu0 %v1739
  %1824 = vmatpush1.msra.mxu0 %v1738
  %1825 = vmatprep.subr.mxu0 0.0
  %1826 = vmatpush1.msra.mxu0 0.0
  %1827 = vmatprep.subr.mxu0 0.0
  %1828 = vmatpush1.msra.mxu0 0.0
  %1829 = vmatprep.subr.mxu0 0.0
  %1830 = vmatpush1.msra.mxu0 0.0
  %1831 = vmatprep.subr.mxu0 0.0
  %1832 = vmatpush1.msra.mxu0 0.0
  %1833 = vmatprep.subr.mxu0 0.0
  %1834 = vmatpush1.msra.mxu0 0.0
  %1835 = vmatprep.subr.mxu0 0.0
  %1836 = vmatpush1.msra.mxu0 0.0
  %1837 = vmatprep.subr.mxu0 0.0
  %1838 = vmatpush1.msra.mxu0 0.0
  %1839 = vmatprep.subr.mxu0 0.0
  %1840 = vmatpush1.msra.mxu0 0.0
  %1841 = vmatprep.subr.mxu0 0.0
  %1842 = vmatpush1.msra.mxu0 0.0
  %1843 = vmatprep.subr.mxu0 0.0
  %1844 = vmatpush1.msra.mxu0 0.0
  %1845 = vmatprep.subr.mxu0 0.0
  %1846 = vmatpush1.msra.mxu0 0.0
  %1847 = vmatprep.subr.mxu0 0.0
  %1848 = vmatpush1.msra.mxu0 0.0
  %1849 = vmatprep.subr.mxu0 0.0
  %1850 = vmatpush1.msra.mxu0 0.0
  %1851 = vmatprep.subr.mxu0 0.0
  %1852 = vmatpush1.msra.mxu0 0.0
  %1853 = vmatprep.subr.mxu0 0.0
  %1854 = vmatpush1.msra.mxu0 0.0
  %1855 = vmatprep.subr.mxu0 0.0
  %1856 = vmatpush1.msra.mxu0 0.0
  %1857 = vmatprep.subr.mxu0 0.0
  %1858 = vmatpush1.msra.mxu0 0.0
  %1859 = vmatprep.subr.mxu0 0.0
  %1860 = vmatpush1.msra.mxu0 0.0
  %1861 = vmatprep.subr.mxu0 0.0
  %1862 = vmatpush1.msra.mxu0 0.0
  %1863 = vmatprep.subr.mxu0 0.0
  %1864 = vmatpush1.msra.mxu0 0.0
  %1865 = vmatprep.subr.mxu0 0.0
  %1866 = vmatpush1.msra.mxu0 0.0
  %1867 = vmatprep.subr.mxu0 0.0
  %1868 = vmatpush1.msra.mxu0 0.0
  %1869 = vmatprep.subr.mxu0 0.0
  %1870 = vmatpush1.msra.mxu0 0.0
  %1871 = vmatprep.subr.mxu0 0.0
  %1872 = vmatpush1.msra.mxu0 0.0
  %1873 = vmatprep.subr.mxu0 0.0
  %1874 = vmatpush1.msra.mxu0 0.0
  %1875 = vmatprep.subr.mxu0 0.0
  %1876 = vmatpush1.msra.mxu0 0.0
  %1877 = vmatprep.subr.mxu0 0.0
  %1878 = vmatpush1.msra.mxu0 0.0
  %1879 = vmatprep.subr.mxu0 0.0
  %1880 = vmatpush1.msra.mxu0 0.0
  %1881 = vmatprep.mubr.f32.mxu0 0.0
  %1882 = vmatmul.mubr.f32.gmra.mrb[0].mxu0 %v1744
  %v1883 = vpop.f32.mrb[0].mxu0
  %v1884 = vadd.f32 0.0, %v1883
  %v1885 = vpop.f32.mrb[0].mxu0
  %v1886 = vadd.f32 0.0, %v1885
  %1887 = vdwg.mxu0
  %1888 = vmatprep.subr.mxu0 0.0
  %1889 = vmatpush1.msra.mxu0 %v1725
  %1890 = vmatprep.subr.mxu0 0.0
  %1891 = vmatpush1.msra.mxu0 %v1730
  %1892 = vmatprep.subr.mxu0 0.0
  %1893 = vmatpush1.msra.mxu0 %v1735
  %1894 = vmatprep.subr.mxu0 0.0
  %1895 = vmatpush1.msra.mxu0 %v1740
  %1896 = vmatprep.subr.mxu0 0.0
  %1897 = vmatpush1.msra.mxu0 0.0
  %1898 = vmatprep.subr.mxu0 0.0
  %1899 = vmatpush1.msra.mxu0 0.0
  %1900 = vmatprep.subr.mxu0 0.0
  %1901 = vmatpush1.msra.mxu0 0.0
  %1902 = vmatprep.subr.mxu0 0.0
  %1903 = vmatpush1.msra.mxu0 0.0
  %1904 = vmatprep.subr.mxu0 0.0
  %1905 = vmatpush1.msra.mxu0 0.0
  %1906 = vmatprep.subr.mxu0 0.0
  %1907 = vmatpush1.msra.mxu0 0.0
  %1908 = vmatprep.subr.mxu0 0.0
  %1909 = vmatpush1.msra.mxu0 0.0
  %1910 = vmatprep.subr.mxu0 0.0
  %1911 = vmatpush1.msra.mxu0 0.0
  %1912 = vmatprep.subr.mxu0 0.0
  %1913 = vmatpush1.msra.mxu0 0.0
  %1914 = vmatprep.subr.mxu0 0.0
  %1915 = vmatpush1.msra.mxu0 0.0
  %1916 = vmatprep.subr.mxu0 0.0
  %1917 = vmatpush1.msra.mxu0 0.0
  %1918 = vmatprep.subr.mxu0 0.0
  %1919 = vmatpush1.msra.mxu0 0.0
  %1920 = vmatprep.subr.mxu0 0.0
  %1921 = vmatpush1.msra.mxu0 0.0
  %1922 = vmatprep.subr.mxu0 0.0
  %1923 = vmatpush1.msra.mxu0 0.0
  %1924 = vmatprep.subr.mxu0 0.0
  %1925 = vmatpush1.msra.mxu0 0.0
  %1926 = vmatprep.subr.mxu0 0.0
  %1927 = vmatpush1.msra.mxu0 0.0
  %1928 = vmatprep.subr.mxu0 0.0
  %1929 = vmatpush1.msra.mxu0 0.0
  %1930 = vmatprep.subr.mxu0 0.0
  %1931 = vmatpush1.msra.mxu0 0.0
  %1932 = vmatprep.subr.mxu0 0.0
  %1933 = vmatpush1.msra.mxu0 0.0
  %1934 = vmatprep.subr.mxu0 0.0
  %1935 = vmatpush1.msra.mxu0 0.0
  %1936 = vmatprep.subr.mxu0 0.0
  %1937 = vmatpush1.msra.mxu0 0.0
  %1938 = vmatprep.subr.mxu0 0.0
  %1939 = vmatpush1.msra.mxu0 0.0
  %1940 = vmatprep.subr.mxu0 0.0
  %1941 = vmatpush1.msra.mxu0 0.0
  %1942 = vmatprep.subr.mxu0 0.0
  %1943 = vmatpush1.msra.mxu0 0.0
  %1944 = vmatprep.subr.mxu0 0.0
  %1945 = vmatpush1.msra.mxu0 0.0
  %1946 = vmatprep.subr.mxu0 0.0
  %1947 = vmatpush1.msra.mxu0 0.0
  %1948 = vmatprep.subr.mxu0 0.0
  %1949 = vmatpush1.msra.mxu0 0.0
  %1950 = vmatprep.subr.mxu0 0.0
  %1951 = vmatpush1.msra.mxu0 0.0
  %1952 = vmatprep.mubr.f32.mxu0 0.0
  %1953 = vmatmul.mubr.f32.gmra.mrb[0].mxu0 %v1744
  %v1954 = vpop.f32.mrb[0].mxu0
  %v1955 = vadd.f32 0.0, %v1954
  %v1956 = vpop.f32.mrb[0].mxu0
  %1957 = vdwg.mxu0
  %1959 = vrot.lane.b32.xlu0 %v1813, 96
  %v1960 = vpop.permute.xlu0 %1959
  %1962 = vrot.lane.b32.xlu0 %v1813, 64
  %v1963 = vpop.permute.xlu0 %1962
  %1965 = vrot.lane.b32.xlu0 %v1813, 32
  %v1966 = vpop.permute.xlu0 %1965
  %1969 = vrot.lane.b32.xlu0 %v1815, 96
  %v1970 = vpop.permute.xlu0 %1969
  %1972 = vrot.lane.b32.xlu0 %v1815, 64
  %v1973 = vpop.permute.xlu0 %1972
  %1975 = vrot.lane.b32.xlu0 %v1815, 32
  %v1976 = vpop.permute.xlu0 %1975
  %1979 = vrot.lane.b32.xlu0 %v1884, 96
  %v1980 = vpop.permute.xlu0 %1979
  %1982 = vrot.lane.b32.xlu0 %v1884, 64
  %v1983 = vpop.permute.xlu0 %1982
  %1985 = vrot.lane.b32.xlu0 %v1884, 32
  %v1986 = vpop.permute.xlu0 %1985
  %1989 = vrot.lane.b32.xlu0 %v1886, 96
  %v1990 = vpop.permute.xlu0 %1989
  %1992 = vrot.lane.b32.xlu0 %v1886, 64
  %v1993 = vpop.permute.xlu0 %1992
  %1995 = vrot.lane.b32.xlu0 %v1886, 32
  %v1996 = vpop.permute.xlu0 %1995
  %v1998 = vld [vmem:[%s0 + $0x30] sm:$0xff]
  %1999 = vmatprep.subr.mxu0 0.0
  %2000 = vmatpush1.msra.mxu0 %v1813
  %2001 = vmatprep.subr.mxu0 0.0
  %2002 = vmatpush1.msra.mxu0 %v1960
  %2003 = vmatprep.subr.mxu0 0.0
  %2004 = vmatpush1.msra.mxu0 %v1963
  %2005 = vmatprep.subr.mxu0 0.0
  %2006 = vmatpush1.msra.mxu0 %v1966
  %2007 = vmatprep.subr.mxu0 0.0
  %2008 = vmatpush1.msra.mxu0 %v1815
  %2009 = vmatprep.subr.mxu0 0.0
  %2010 = vmatpush1.msra.mxu0 %v1970
  %2011 = vmatprep.subr.mxu0 0.0
  %2012 = vmatpush1.msra.mxu0 %v1973
  %2013 = vmatprep.subr.mxu0 0.0
  %2014 = vmatpush1.msra.mxu0 %v1976
  %2015 = vmatprep.subr.mxu0 0.0
  %2016 = vmatpush1.msra.mxu0 %v1884
  %2017 = vmatprep.subr.mxu0 0.0
  %2018 = vmatpush1.msra.mxu0 %v1980
  %2019 = vmatprep.subr.mxu0 0.0
  %2020 = vmatpush1.msra.mxu0 %v1983
  %2021 = vmatprep.subr.mxu0 0.0
  %2022 = vmatpush1.msra.mxu0 %v1986
  %2023 = vmatprep.subr.mxu0 0.0
  %2024 = vmatpush1.msra.mxu0 %v1886
  %2025 = vmatprep.subr.mxu0 0.0
  %2026 = vmatpush1.msra.mxu0 %v1990
  %2027 = vmatprep.subr.mxu0 0.0
  %2028 = vmatpush1.msra.mxu0 %v1993
  %2029 = vmatprep.subr.mxu0 0.0
  %2030 = vmatpush1.msra.mxu0 %v1996
  %2031 = vmatprep.subr.mxu0 0.0
  %2032 = vmatpush1.msra.mxu0 0.0
  %2033 = vmatprep.subr.mxu0 0.0
  %2034 = vmatpush1.msra.mxu0 0.0
  %2035 = vmatprep.subr.mxu0 0.0
  %2036 = vmatpush1.msra.mxu0 0.0
  %2037 = vmatprep.subr.mxu0 0.0
  %2038 = vmatpush1.msra.mxu0 0.0
  %2039 = vmatprep.subr.mxu0 0.0
  %2040 = vmatpush1.msra.mxu0 0.0
  %2041 = vmatprep.subr.mxu0 0.0
  %2042 = vmatpush1.msra.mxu0 0.0
  %2043 = vmatprep.subr.mxu0 0.0
  %2044 = vmatpush1.msra.mxu0 0.0
  %2045 = vmatprep.subr.mxu0 0.0
  %2046 = vmatpush1.msra.mxu0 0.0
  %2047 = vmatprep.subr.mxu0 0.0
  %2048 = vmatpush1.msra.mxu0 0.0
  %2049 = vmatprep.subr.mxu0 0.0
  %2050 = vmatpush1.msra.mxu0 0.0
  %2051 = vmatprep.subr.mxu0 0.0
  %2052 = vmatpush1.msra.mxu0 0.0
  %2053 = vmatprep.subr.mxu0 0.0
  %2054 = vmatpush1.msra.mxu0 0.0
  %2055 = vmatprep.subr.mxu0 0.0
  %2056 = vmatpush1.msra.mxu0 0.0
  %2057 = vmatprep.subr.mxu0 0.0
  %2058 = vmatpush1.msra.mxu0 0.0
  %2059 = vmatprep.subr.mxu0 0.0
  %2060 = vmatpush1.msra.mxu0 0.0
  %2061 = vmatprep.subr.mxu0 0.0
  %2062 = vmatpush1.msra.mxu0 0.0
  %2063 = vmatprep.mubr.f32.mxu0 0.0
  %2064 = vmatmul.mubr.f32.gmra.mrb[0].mxu0 %v1998
  %v2065 = vpop.f32.mrb[0].mxu0
  %v2066 = vadd.f32 %v18, %v2065
  %v2067 = vpop.f32.mrb[0].mxu0
  %2068 = vdwg.mxu0
  %v2069 = vmax.f32 %v2066, 0.0
  %v2070 = vld [vmem:[#allocation2 + $0x18] sm:$0xff]
  %v2071 = vadd.f32 %v2070, %v1955
  %v2072 = vld [vmem:[%s1 + $0xa0] sm:$0xff]
  %v2073 = vld [vmem:[%s1 + $0xc8] sm:$0xff]
  %v2074 = vld [vmem:[%s1 + $0xf0] sm:$0xff]
  %v2075 = vld [vmem:[%s1 + $0x118] sm:$0xff]
  %v2077 = vsel %vm175, %v2069, 0
  %2079 = vmatprep.subr.mxu0 0.0
  %2080 = vmatpush1.msra.mxu0 %v2072
  %2081 = vmatprep.subr.mxu0 0.0
  %2082 = vmatpush1.msra.mxu0 %v2073
  %2083 = vmatprep.subr.mxu0 0.0
  %2084 = vmatpush1.msra.mxu0 %v2074
  %2085 = vmatprep.subr.mxu0 0.0
  %2086 = vmatpush1.msra.mxu0 %v2075
  %2087 = vmatprep.subr.mxu0 0.0
  %2088 = vmatpush1.msra.mxu0 0.0
  %2089 = vmatprep.subr.mxu0 0.0
  %2090 = vmatpush1.msra.mxu0 0.0
  %2091 = vmatprep.subr.mxu0 0.0
  %2092 = vmatpush1.msra.mxu0 0.0
  %2093 = vmatprep.subr.mxu0 0.0
  %2094 = vmatpush1.msra.mxu0 0.0
  %2095 = vmatprep.subr.mxu0 0.0
  %2096 = vmatpush1.msra.mxu0 0.0
  %2097 = vmatprep.subr.mxu0 0.0
  %2098 = vmatpush1.msra.mxu0 0.0
  %2099 = vmatprep.subr.mxu0 0.0
  %2100 = vmatpush1.msra.mxu0 0.0
  %2101 = vmatprep.subr.mxu0 0.0
  %2102 = vmatpush1.msra.mxu0 0.0
  %2103 = vmatprep.subr.mxu0 0.0
  %2104 = vmatpush1.msra.mxu0 0.0
  %2105 = vmatprep.subr.mxu0 0.0
  %2106 = vmatpush1.msra.mxu0 0.0
  %2107 = vmatprep.subr.mxu0 0.0
  %2108 = vmatpush1.msra.mxu0 0.0
  %2109 = vmatprep.subr.mxu0 0.0
  %2110 = vmatpush1.msra.mxu0 0.0
  %2111 = vmatprep.subr.mxu0 0.0
  %2112 = vmatpush1.msra.mxu0 0.0
  %2113 = vmatprep.subr.mxu0 0.0
  %2114 = vmatpush1.msra.mxu0 0.0
  %2115 = vmatprep.subr.mxu0 0.0
  %2116 = vmatpush1.msra.mxu0 0.0
  %2117 = vmatprep.subr.mxu0 0.0
  %2118 = vmatpush1.msra.mxu0 0.0
  %2119 = vmatprep.subr.mxu0 0.0
  %2120 = vmatpush1.msra.mxu0 0.0
  %2121 = vmatprep.subr.mxu0 0.0
  %2122 = vmatpush1.msra.mxu0 0.0
  %2123 = vmatprep.subr.mxu0 0.0
  %2124 = vmatpush1.msra.mxu0 0.0
  %2125 = vmatprep.subr.mxu0 0.0
  %2126 = vmatpush1.msra.mxu0 0.0
  %2127 = vmatprep.subr.mxu0 0.0
  %2128 = vmatpush1.msra.mxu0 0.0
  %2129 = vmatprep.subr.mxu0 0.0
  %2130 = vmatpush1.msra.mxu0 0.0
  %2131 = vmatprep.subr.mxu0 0.0
  %2132 = vmatpush1.msra.mxu0 0.0
  %2133 = vmatprep.subr.mxu0 0.0
  %2134 = vmatpush1.msra.mxu0 0.0
  %2135 = vmatprep.subr.mxu0 0.0
  %2136 = vmatpush1.msra.mxu0 0.0
  %2137 = vmatprep.subr.mxu0 0.0
  %2138 = vmatpush1.msra.mxu0 0.0
  %2139 = vmatprep.subr.mxu0 0.0
  %2140 = vmatpush1.msra.mxu0 0.0
  %2141 = vmatprep.subr.mxu0 0.0
  %2142 = vmatpush1.msra.mxu0 0.0
  %2143 = vmatprep.mubr.f32.mxu0 0.0
  %2144 = vmatmul.mubr.f32.gmra.mrb[0].mxu0 %v2077
  %v2145 = vpop.f32.mrb[0].mxu0
  %v2146 = vadd.f32 0.0, %v2145
  %v2147 = vpop.f32.mrb[0].mxu0
  %2148 = vdwg.mxu0
  %v2149 = vadd.f32 %v2071, %v2146
  %v2150 = vxor.u32 %v2149, 2147483648
  %v2151 = vmul.f32 %v2150, 1.442695
  %v2152 = vpow.pop %v2151
  %v2153 = vadd.f32 %v2152, 1.0
  %v2154 = vrcp.pop %v2153
  %v2155 = vmul.f32 1.0, %v2154
  %v2156 = vtanh.pop %v2149
  %v2157 = vmul.f32 %v2155, %v1720
  %2159 = vrot.lane.b32.xlu0 %v2156, 32
  %v2160 = vpop.permute.xlu0 %2159
  %v2162 = vmul.f32 %v2155, %v2160
  %2164 = vrot.lane.b32.xlu0 %v2162, 32
  %v2165 = vpop.permute.xlu0 %2164
  %v2167 = vadd.f32 %v2157, %v2165
  %v2168 = vtanh.pop %v2167
  %2170 = vrot.lane.b32.xlu0 %v2168, 32
  %v2171 = vpop.permute.xlu0 %2170
  %v2173 = vmul.f32 %v2155, %v2171
  %2175 = vrot.lane.b32.xlu0 %v2173, 64
  %v2176 = vpop.permute.xlu0 %2175
  %2178 = vst.msk [vmem:[#allocation3 + $0x18] sm:$0xff] %vm175, %v2176
  %v2179 = vld [vmem:[%s0 + $0x38] sm:$0xff]
  %vm2180 = vcmp.gt.f32.partialorder %v2179, 0.0
  %v2181 = vsel %vm2180, 1, 0
  %2182 = vset.pattern.permute.xlu0 2
  %2183 = vperm.xlu0 %2182, %v2181
  %v2184 = vpop.permute.xlu0 %2183
  %vm2185 = vcmp.eq.s32.totalorder %v2184, 1
  %v2186 = vsel %vm2185, %v2173, %v1719
  %v2187 = vsel %vm2185, %v2167, %v1720
  %v2188 = vld [vmem:[%s1] sm:$0xff]
  %v2189 = vld [vmem:[%s1 + $0x8] sm:$0xff]
  %v2190 = vld [vmem:[%s1 + $0x10] sm:$0xff]
  %v2191 = vld [vmem:[%s1 + $0x18] sm:$0xff]
  %v2192 = vld [vmem:[%s1 + $0x20] sm:$0xff]
  %v2193 = vld [vmem:[%s1 + $0x28] sm:$0xff]
  %v2194 = vld [vmem:[%s1 + $0x30] sm:$0xff]
  %v2195 = vld [vmem:[%s1 + $0x38] sm:$0xff]
  %v2196 = vld [vmem:[%s1 + $0x40] sm:$0xff]
  %v2197 = vld [vmem:[%s1 + $0x48] sm:$0xff]
  %v2198 = vld [vmem:[%s1 + $0x50] sm:$0xff]
  %v2199 = vld [vmem:[%s1 + $0x58] sm:$0xff]
  %v2200 = vld [vmem:[%s1 + $0x60] sm:$0xff]
  %v2201 = vld [vmem:[%s1 + $0x68] sm:$0xff]
  %v2202 = vld [vmem:[%s1 + $0x70] sm:$0xff]
  %v2203 = vld [vmem:[%s1 + $0x78] sm:$0xff]
  %v2204 = vld [vmem:[%s1 + $0x80] sm:$0xff]
  %v2205 = vld [vmem:[%s1 + $0x88] sm:$0xff]
  %v2206 = vld [vmem:[%s1 + $0x90] sm:$0xff]
  %v2207 = vld [vmem:[%s1 + $0x98] sm:$0xff]
  %2209 = vrot.lane.b32.xlu0 %v2186, 64
  %v2210 = vpop.permute.xlu0 %2209
  %v2211 = vsel %vm175, %v2210, 0
  %2213 = vmatprep.subr.mxu0 %v2189
  %2214 = vmatpush1.msra.mxu0 %v2188
  %2215 = vmatprep.subr.mxu0 %v2194
  %2216 = vmatpush1.msra.mxu0 %v2193
  %2217 = vmatprep.subr.mxu0 %v2199
  %2218 = vmatpush1.msra.mxu0 %v2198
  %2219 = vmatprep.subr.mxu0 %v2204
  %2220 = vmatpush1.msra.mxu0 %v2203
  %2221 = vmatprep.subr.mxu0 0.0
  %2222 = vmatpush1.msra.mxu0 0.0
  %2223 = vmatprep.subr.mxu0 0.0
  %2224 = vmatpush1.msra.mxu0 0.0
  %2225 = vmatprep.subr.mxu0 0.0
  %2226 = vmatpush1.msra.mxu0 0.0
  %2227 = vmatprep.subr.mxu0 0.0
  %2228 = vmatpush1.msra.mxu0 0.0
  %2229 = vmatprep.subr.mxu0 0.0
  %2230 = vmatpush1.msra.mxu0 0.0
  %2231 = vmatprep.subr.mxu0 0.0
  %2232 = vmatpush1.msra.mxu0 0.0
  %2233 = vmatprep.subr.mxu0 0.0
  %2234 = vmatpush1.msra.mxu0 0.0
  %2235 = vmatprep.subr.mxu0 0.0
  %2236 = vmatpush1.msra.mxu0 0.0
  %2237 = vmatprep.subr.mxu0 0.0
  %2238 = vmatpush1.msra.mxu0 0.0
  %2239 = vmatprep.subr.mxu0 0.0
  %2240 = vmatpush1.msra.mxu0 0.0
  %2241 = vmatprep.subr.mxu0 0.0
  %2242 = vmatpush1.msra.mxu0 0.0
  %2243 = vmatprep.subr.mxu0 0.0
  %2244 = vmatpush1.msra.mxu0 0.0
  %2245 = vmatprep.subr.mxu0 0.0
  %2246 = vmatpush1.msra.mxu0 0.0
  %2247 = vmatprep.subr.mxu0 0.0
  %2248 = vmatpush1.msra.mxu0 0.0
  %2249 = vmatprep.subr.mxu0 0.0
  %2250 = vmatpush1.msra.mxu0 0.0
  %2251 = vmatprep.subr.mxu0 0.0
  %2252 = vmatpush1.msra.mxu0 0.0
  %2253 = vmatprep.subr.mxu0 0.0
  %2254 = vmatpush1.msra.mxu0 0.0
  %2255 = vmatprep.subr.mxu0 0.0
  %2256 = vmatpush1.msra.mxu0 0.0
  %2257 = vmatprep.subr.mxu0 0.0
  %2258 = vmatpush1.msra.mxu0 0.0
  %2259 = vmatprep.subr.mxu0 0.0
  %2260 = vmatpush1.msra.mxu0 0.0
  %2261 = vmatprep.subr.mxu0 0.0
  %2262 = vmatpush1.msra.mxu0 0.0
  %2263 = vmatprep.subr.mxu0 0.0
  %2264 = vmatpush1.msra.mxu0 0.0
  %2265 = vmatprep.subr.mxu0 0.0
  %2266 = vmatpush1.msra.mxu0 0.0
  %2267 = vmatprep.subr.mxu0 0.0
  %2268 = vmatpush1.msra.mxu0 0.0
  %2269 = vmatprep.subr.mxu0 0.0
  %2270 = vmatpush1.msra.mxu0 0.0
  %2271 = vmatprep.subr.mxu0 0.0
  %2272 = vmatpush1.msra.mxu0 0.0
  %2273 = vmatprep.subr.mxu0 0.0
  %2274 = vmatpush1.msra.mxu0 0.0
  %2275 = vmatprep.subr.mxu0 0.0
  %2276 = vmatpush1.msra.mxu0 0.0
  %2277 = vmatprep.mubr.f32.mxu0 0.0
  %2278 = vmatmul.mubr.f32.gmra.mrb[0].mxu0 %v2211
  %v2279 = vpop.f32.mrb[0].mxu0
  %v2280 = vadd.f32 0.0, %v2279
  %v2281 = vpop.f32.mrb[0].mxu0
  %v2282 = vadd.f32 0.0, %v2281
  %2283 = vdwg.mxu0
  %2284 = vmatprep.subr.mxu0 %v2191
  %2285 = vmatpush1.msra.mxu0 %v2190
  %2286 = vmatprep.subr.mxu0 %v2196
  %2287 = vmatpush1.msra.mxu0 %v2195
  %2288 = vmatprep.subr.mxu0 %v2201
  %2289 = vmatpush1.msra.mxu0 %v2200
  %2290 = vmatprep.subr.mxu0 %v2206
  %2291 = vmatpush1.msra.mxu0 %v2205
  %2292 = vmatprep.subr.mxu0 0.0
  %2293 = vmatpush1.msra.mxu0 0.0
  %2294 = vmatprep.subr.mxu0 0.0
  %2295 = vmatpush1.msra.mxu0 0.0
  %2296 = vmatprep.subr.mxu0 0.0
  %2297 = vmatpush1.msra.mxu0 0.0
  %2298 = vmatprep.subr.mxu0 0.0
  %2299 = vmatpush1.msra.mxu0 0.0
  %2300 = vmatprep.subr.mxu0 0.0
  %2301 = vmatpush1.msra.mxu0 0.0
  %2302 = vmatprep.subr.mxu0 0.0
  %2303 = vmatpush1.msra.mxu0 0.0
  %2304 = vmatprep.subr.mxu0 0.0
  %2305 = vmatpush1.msra.mxu0 0.0
  %2306 = vmatprep.subr.mxu0 0.0
  %2307 = vmatpush1.msra.mxu0 0.0
  %2308 = vmatprep.subr.mxu0 0.0
  %2309 = vmatpush1.msra.mxu0 0.0
  %2310 = vmatprep.subr.mxu0 0.0
  %2311 = vmatpush1.msra.mxu0 0.0
  %2312 = vmatprep.subr.mxu0 0.0
  %2313 = vmatpush1.msra.mxu0 0.0
  %2314 = vmatprep.subr.mxu0 0.0
  %2315 = vmatpush1.msra.mxu0 0.0
  %2316 = vmatprep.subr.mxu0 0.0
  %2317 = vmatpush1.msra.mxu0 0.0
  %2318 = vmatprep.subr.mxu0 0.0
  %2319 = vmatpush1.msra.mxu0 0.0
  %2320 = vmatprep.subr.mxu0 0.0
  %2321 = vmatpush1.msra.mxu0 0.0
  %2322 = vmatprep.subr.mxu0 0.0
  %2323 = vmatpush1.msra.mxu0 0.0
  %2324 = vmatprep.subr.mxu0 0.0
  %2325 = vmatpush1.msra.mxu0 0.0
  %2326 = vmatprep.subr.mxu0 0.0
  %2327 = vmatpush1.msra.mxu0 0.0
  %2328 = vmatprep.subr.mxu0 0.0
  %2329 = vmatpush1.msra.mxu0 0.0
  %2330 = vmatprep.subr.mxu0 0.0
  %2331 = vmatpush1.msra.mxu0 0.0
  %2332 = vmatprep.subr.mxu0 0.0
  %2333 = vmatpush1.msra.mxu0 0.0
  %2334 = vmatprep.subr.mxu0 0.0
  %2335 = vmatpush1.msra.mxu0 0.0
  %2336 = vmatprep.subr.mxu0 0.0
  %2337 = vmatpush1.msra.mxu0 0.0
  %2338 = vmatprep.subr.mxu0 0.0
  %2339 = vmatpush1.msra.mxu0 0.0
  %2340 = vmatprep.subr.mxu0 0.0
  %2341 = vmatpush1.msra.mxu0 0.0
  %2342 = vmatprep.subr.mxu0 0.0
  %2343 = vmatpush1.msra.mxu0 0.0
  %2344 = vmatprep.subr.mxu0 0.0
  %2345 = vmatpush1.msra.mxu0 0.0
  %2346 = vmatprep.subr.mxu0 0.0
  %2347 = vmatpush1.msra.mxu0 0.0
  %2348 = vmatprep.mubr.f32.mxu0 0.0
  %2349 = vmatmul.mubr.f32.gmra.mrb[0].mxu0 %v2211
  %v2350 = vpop.f32.mrb[0].mxu0
  %v2351 = vadd.f32 0.0, %v2350
  %v2352 = vpop.f32.mrb[0].mxu0
  %v2353 = vadd.f32 0.0, %v2352
  %2354 = vdwg.mxu0
  %2355 = vmatprep.subr.mxu0 0.0
  %2356 = vmatpush1.msra.mxu0 %v2192
  %2357 = vmatprep.subr.mxu0 0.0
  %2358 = vmatpush1.msra.mxu0 %v2197
  %2359 = vmatprep.subr.mxu0 0.0
  %2360 = vmatpush1.msra.mxu0 %v2202
  %2361 = vmatprep.subr.mxu0 0.0
  %2362 = vmatpush1.msra.mxu0 %v2207
  %2363 = vmatprep.subr.mxu0 0.0
  %2364 = vmatpush1.msra.mxu0 0.0
  %2365 = vmatprep.subr.mxu0 0.0
  %2366 = vmatpush1.msra.mxu0 0.0
  %2367 = vmatprep.subr.mxu0 0.0
  %2368 = vmatpush1.msra.mxu0 0.0
  %2369 = vmatprep.subr.mxu0 0.0
  %2370 = vmatpush1.msra.mxu0 0.0
  %2371 = vmatprep.subr.mxu0 0.0
  %2372 = vmatpush1.msra.mxu0 0.0
  %2373 = vmatprep.subr.mxu0 0.0
  %2374 = vmatpush1.msra.mxu0 0.0
  %2375 = vmatprep.subr.mxu0 0.0
  %2376 = vmatpush1.msra.mxu0 0.0
  %2377 = vmatprep.subr.mxu0 0.0
  %2378 = vmatpush1.msra.mxu0 0.0
  %2379 = vmatprep.subr.mxu0 0.0
  %2380 = vmatpush1.msra.mxu0 0.0
  %2381 = vmatprep.subr.mxu0 0.0
  %2382 = vmatpush1.msra.mxu0 0.0
  %2383 = vmatprep.subr.mxu0 0.0
  %2384 = vmatpush1.msra.mxu0 0.0
  %2385 = vmatprep.subr.mxu0 0.0
  %2386 = vmatpush1.msra.mxu0 0.0
  %2387 = vmatprep.subr.mxu0 0.0
  %2388 = vmatpush1.msra.mxu0 0.0
  %2389 = vmatprep.subr.mxu0 0.0
  %2390 = vmatpush1.msra.mxu0 0.0
  %2391 = vmatprep.subr.mxu0 0.0
  %2392 = vmatpush1.msra.mxu0 0.0
  %2393 = vmatprep.subr.mxu0 0.0
  %2394 = vmatpush1.msra.mxu0 0.0
  %2395 = vmatprep.subr.mxu0 0.0
  %2396 = vmatpush1.msra.mxu0 0.0
  %2397 = vmatprep.subr.mxu0 0.0
  %2398 = vmatpush1.msra.mxu0 0.0
  %2399 = vmatprep.subr.mxu0 0.0
  %2400 = vmatpush1.msra.mxu0 0.0
  %2401 = vmatprep.subr.mxu0 0.0
  %2402 = vmatpush1.msra.mxu0 0.0
  %2403 = vmatprep.subr.mxu0 0.0
  %2404 = vmatpush1.msra.mxu0 0.0
  %2405 = vmatprep.subr.mxu0 0.0
  %2406 = vmatpush1.msra.mxu0 0.0
  %2407 = vmatprep.subr.mxu0 0.0
  %2408 = vmatpush1.msra.mxu0 0.0
  %2409 = vmatprep.subr.mxu0 0.0
  %2410 = vmatpush1.msra.mxu0 0.0
  %2411 = vmatprep.subr.mxu0 0.0
  %2412 = vmatpush1.msra.mxu0 0.0
  %2413 = vmatprep.subr.mxu0 0.0
  %2414 = vmatpush1.msra.mxu0 0.0
  %2415 = vmatprep.subr.mxu0 0.0
  %2416 = vmatpush1.msra.mxu0 0.0
  %2417 = vmatprep.subr.mxu0 0.0
  %2418 = vmatpush1.msra.mxu0 0.0
  %2419 = vmatprep.mubr.f32.mxu0 0.0
  %2420 = vmatmul.mubr.f32.gmra.mrb[0].mxu0 %v2211
  %v2421 = vpop.f32.mrb[0].mxu0
  %v2422 = vadd.f32 0.0, %v2421
  %v2423 = vpop.f32.mrb[0].mxu0
  %2424 = vdwg.mxu0
  %2426 = vrot.lane.b32.xlu0 %v2280, 96
  %v2427 = vpop.permute.xlu0 %2426
  %2429 = vrot.lane.b32.xlu0 %v2280, 64
  %v2430 = vpop.permute.xlu0 %2429
  %2432 = vrot.lane.b32.xlu0 %v2280, 32
  %v2433 = vpop.permute.xlu0 %2432
  %2436 = vrot.lane.b32.xlu0 %v2282, 96
  %v2437 = vpop.permute.xlu0 %2436
  %2439 = vrot.lane.b32.xlu0 %v2282, 64
  %v2440 = vpop.permute.xlu0 %2439
  %2442 = vrot.lane.b32.xlu0 %v2282, 32
  %v2443 = vpop.permute.xlu0 %2442
  %2446 = vrot.lane.b32.xlu0 %v2351, 96
  %v2447 = vpop.permute.xlu0 %2446
  %2449 = vrot.lane.b32.xlu0 %v2351, 64
  %v2450 = vpop.permute.xlu0 %2449
  %2452 = vrot.lane.b32.xlu0 %v2351, 32
  %v2453 = vpop.permute.xlu0 %2452
  %2456 = vrot.lane.b32.xlu0 %v2353, 96
  %v2457 = vpop.permute.xlu0 %2456
  %2459 = vrot.lane.b32.xlu0 %v2353, 64
  %v2460 = vpop.permute.xlu0 %2459
  %2462 = vrot.lane.b32.xlu0 %v2353, 32
  %v2463 = vpop.permute.xlu0 %2462
  %v2465 = vld [vmem:[%s0 + $0x40] sm:$0xff]
  %2466 = vmatprep.subr.mxu0 0.0
  %2467 = vmatpush1.msra.mxu0 %v2280
  %2468 = vmatprep.subr.mxu0 0.0
  %2469 = vmatpush1.msra.mxu0 %v2427
  %2470 = vmatprep.subr.mxu0 0.0
  %2471 = vmatpush1.msra.mxu0 %v2430
  %2472 = vmatprep.subr.mxu0 0.0
  %2473 = vmatpush1.msra.mxu0 %v2433
  %2474 = vmatprep.subr.mxu0 0.0
  %2475 = vmatpush1.msra.mxu0 %v2282
  %2476 = vmatprep.subr.mxu0 0.0
  %2477 = vmatpush1.msra.mxu0 %v2437
  %2478 = vmatprep.subr.mxu0 0.0
  %2479 = vmatpush1.msra.mxu0 %v2440
  %2480 = vmatprep.subr.mxu0 0.0
  %2481 = vmatpush1.msra.mxu0 %v2443
  %2482 = vmatprep.subr.mxu0 0.0
  %2483 = vmatpush1.msra.mxu0 %v2351
  %2484 = vmatprep.subr.mxu0 0.0
  %2485 = vmatpush1.msra.mxu0 %v2447
  %2486 = vmatprep.subr.mxu0 0.0
  %2487 = vmatpush1.msra.mxu0 %v2450
  %2488 = vmatprep.subr.mxu0 0.0
  %2489 = vmatpush1.msra.mxu0 %v2453
  %2490 = vmatprep.subr.mxu0 0.0
  %2491 = vmatpush1.msra.mxu0 %v2353
  %2492 = vmatprep.subr.mxu0 0.0
  %2493 = vmatpush1.msra.mxu0 %v2457
  %2494 = vmatprep.subr.mxu0 0.0
  %2495 = vmatpush1.msra.mxu0 %v2460
  %2496 = vmatprep.subr.mxu0 0.0
  %2497 = vmatpush1.msra.mxu0 %v2463
  %2498 = vmatprep.subr.mxu0 0.0
  %2499 = vmatpush1.msra.mxu0 0.0
  %2500 = vmatprep.subr.mxu0 0.0
  %2501 = vmatpush1.msra.mxu0 0.0
  %2502 = vmatprep.subr.mxu0 0.0
  %2503 = vmatpush1.msra.mxu0 0.0
  %2504 = vmatprep.subr.mxu0 0.0
  %2505 = vmatpush1.msra.mxu0 0.0
  %2506 = vmatprep.subr.mxu0 0.0
  %2507 = vmatpush1.msra.mxu0 0.0
  %2508 = vmatprep.subr.mxu0 0.0
  %2509 = vmatpush1.msra.mxu0 0.0
  %2510 = vmatprep.subr.mxu0 0.0
  %2511 = vmatpush1.msra.mxu0 0.0
  %2512 = vmatprep.subr.mxu0 0.0
  %2513 = vmatpush1.msra.mxu0 0.0
  %2514 = vmatprep.subr.mxu0 0.0
  %2515 = vmatpush1.msra.mxu0 0.0
  %2516 = vmatprep.subr.mxu0 0.0
  %2517 = vmatpush1.msra.mxu0 0.0
  %2518 = vmatprep.subr.mxu0 0.0
  %2519 = vmatpush1.msra.mxu0 0.0
  %2520 = vmatprep.subr.mxu0 0.0
  %2521 = vmatpush1.msra.mxu0 0.0
  %2522 = vmatprep.subr.mxu0 0.0
  %2523 = vmatpush1.msra.mxu0 0.0
  %2524 = vmatprep.subr.mxu0 0.0
  %2525 = vmatpush1.msra.mxu0 0.0
  %2526 = vmatprep.subr.mxu0 0.0
  %2527 = vmatpush1.msra.mxu0 0.0
  %2528 = vmatprep.subr.mxu0 0.0
  %2529 = vmatpush1.msra.mxu0 0.0
  %2530 = vmatprep.mubr.f32.mxu0 0.0
  %2531 = vmatmul.mubr.f32.gmra.mrb[0].mxu0 %v2465
  %v2532 = vpop.f32.mrb[0].mxu0
  %v2533 = vadd.f32 %v18, %v2532
  %v2534 = vpop.f32.mrb[0].mxu0
  %2535 = vdwg.mxu0
  %v2536 = vmax.f32 %v2533, 0.0
  %v2537 = vld [vmem:[#allocation2 + $0x20] sm:$0xff]
  %v2538 = vadd.f32 %v2537, %v2422
  %v2539 = vld [vmem:[%s1 + $0xa0] sm:$0xff]
  %v2540 = vld [vmem:[%s1 + $0xc8] sm:$0xff]
  %v2541 = vld [vmem:[%s1 + $0xf0] sm:$0xff]
  %v2542 = vld [vmem:[%s1 + $0x118] sm:$0xff]
  %v2544 = vsel %vm175, %v2536, 0
  %2546 = vmatprep.subr.mxu0 0.0
  %2547 = vmatpush1.msra.mxu0 %v2539
  %2548 = vmatprep.subr.mxu0 0.0
  %2549 = vmatpush1.msra.mxu0 %v2540
  %2550 = vmatprep.subr.mxu0 0.0
  %2551 = vmatpush1.msra.mxu0 %v2541
  %2552 = vmatprep.subr.mxu0 0.0
  %2553 = vmatpush1.msra.mxu0 %v2542
  %2554 = vmatprep.subr.mxu0 0.0
  %2555 = vmatpush1.msra.mxu0 0.0
  %2556 = vmatprep.subr.mxu0 0.0
  %2557 = vmatpush1.msra.mxu0 0.0
  %2558 = vmatprep.subr.mxu0 0.0
  %2559 = vmatpush1.msra.mxu0 0.0
  %2560 = vmatprep.subr.mxu0 0.0
  %2561 = vmatpush1.msra.mxu0 0.0
  %2562 = vmatprep.subr.mxu0 0.0
  %2563 = vmatpush1.msra.mxu0 0.0
  %2564 = vmatprep.subr.mxu0 0.0
  %2565 = vmatpush1.msra.mxu0 0.0
  %2566 = vmatprep.subr.mxu0 0.0
  %2567 = vmatpush1.msra.mxu0 0.0
  %2568 = vmatprep.subr.mxu0 0.0
  %2569 = vmatpush1.msra.mxu0 0.0
  %2570 = vmatprep.subr.mxu0 0.0
  %2571 = vmatpush1.msra.mxu0 0.0
  %2572 = vmatprep.subr.mxu0 0.0
  %2573 = vmatpush1.msra.mxu0 0.0
  %2574 = vmatprep.subr.mxu0 0.0
  %2575 = vmatpush1.msra.mxu0 0.0
  %2576 = vmatprep.subr.mxu0 0.0
  %2577 = vmatpush1.msra.mxu0 0.0
  %2578 = vmatprep.subr.mxu0 0.0
  %2579 = vmatpush1.msra.mxu0 0.0
  %2580 = vmatprep.subr.mxu0 0.0
  %2581 = vmatpush1.msra.mxu0 0.0
  %2582 = vmatprep.subr.mxu0 0.0
  %2583 = vmatpush1.msra.mxu0 0.0
  %2584 = vmatprep.subr.mxu0 0.0
  %2585 = vmatpush1.msra.mxu0 0.0
  %2586 = vmatprep.subr.mxu0 0.0
  %2587 = vmatpush1.msra.mxu0 0.0
  %2588 = vmatprep.subr.mxu0 0.0
  %2589 = vmatpush1.msra.mxu0 0.0
  %2590 = vmatprep.subr.mxu0 0.0
  %2591 = vmatpush1.msra.mxu0 0.0
  %2592 = vmatprep.subr.mxu0 0.0
  %2593 = vmatpush1.msra.mxu0 0.0
  %2594 = vmatprep.subr.mxu0 0.0
  %2595 = vmatpush1.msra.mxu0 0.0
  %2596 = vmatprep.subr.mxu0 0.0
  %2597 = vmatpush1.msra.mxu0 0.0
  %2598 = vmatprep.subr.mxu0 0.0
  %2599 = vmatpush1.msra.mxu0 0.0
  %2600 = vmatprep.subr.mxu0 0.0
  %2601 = vmatpush1.msra.mxu0 0.0
  %2602 = vmatprep.subr.mxu0 0.0
  %2603 = vmatpush1.msra.mxu0 0.0
  %2604 = vmatprep.subr.mxu0 0.0
  %2605 = vmatpush1.msra.mxu0 0.0
  %2606 = vmatprep.subr.mxu0 0.0
  %2607 = vmatpush1.msra.mxu0 0.0
  %2608 = vmatprep.subr.mxu0 0.0
  %2609 = vmatpush1.msra.mxu0 0.0
  %2610 = vmatprep.mubr.f32.mxu0 0.0
  %2611 = vmatmul.mubr.f32.gmra.mrb[0].mxu0 %v2544
  %v2612 = vpop.f32.mrb[0].mxu0
  %v2613 = vadd.f32 0.0, %v2612
  %v2614 = vpop.f32.mrb[0].mxu0
  %2615 = vdwg.mxu0
  %v2616 = vadd.f32 %v2538, %v2613
  %v2617 = vxor.u32 %v2616, 2147483648
  %v2618 = vmul.f32 %v2617, 1.442695
  %v2619 = vpow.pop %v2618
  %v2620 = vadd.f32 %v2619, 1.0
  %v2621 = vrcp.pop %v2620
  %v2622 = vmul.f32 1.0, %v2621
  %v2623 = vtanh.pop %v2616
  %v2624 = vmul.f32 %v2622, %v2187
  %2626 = vrot.lane.b32.xlu0 %v2623, 32
  %v2627 = vpop.permute.xlu0 %2626
  %v2629 = vmul.f32 %v2622, %v2627
  %2631 = vrot.lane.b32.xlu0 %v2629, 32
  %v2632 = vpop.permute.xlu0 %2631
  %v2634 = vadd.f32 %v2624, %v2632
  %v2635 = vtanh.pop %v2634
  %2637 = vrot.lane.b32.xlu0 %v2635, 32
  %v2638 = vpop.permute.xlu0 %2637
  %v2640 = vmul.f32 %v2622, %v2638
  %2642 = vrot.lane.b32.xlu0 %v2640, 64
  %v2643 = vpop.permute.xlu0 %2642
  %2645 = vst.msk [vmem:[#allocation3 + $0x20] sm:$0xff] %vm175, %v2643
  %v2646 = vld [vmem:[%s0 + $0x48] sm:$0xff]
  %vm2647 = vcmp.gt.f32.partialorder %v2646, 0.0
  %v2648 = vsel %vm2647, 1, 0
  %2649 = vset.pattern.permute.xlu0 2
  %2650 = vperm.xlu0 %2649, %v2648
  %v2651 = vpop.permute.xlu0 %2650
  %vm2652 = vcmp.eq.s32.totalorder %v2651, 1
  %v2653 = vsel %vm2652, %v2640, %v2186
  %v2654 = vsel %vm2652, %v2634, %v2187
  %v2655 = vld [vmem:[%s1] sm:$0xff]
  %v2656 = vld [vmem:[%s1 + $0x8] sm:$0xff]
  %v2657 = vld [vmem:[%s1 + $0x10] sm:$0xff]
  %v2658 = vld [vmem:[%s1 + $0x18] sm:$0xff]
  %v2659 = vld [vmem:[%s1 + $0x20] sm:$0xff]
  %v2660 = vld [vmem:[%s1 + $0x28] sm:$0xff]
  %v2661 = vld [vmem:[%s1 + $0x30] sm:$0xff]
  %v2662 = vld [vmem:[%s1 + $0x38] sm:$0xff]
  %v2663 = vld [vmem:[%s1 + $0x40] sm:$0xff]
  %v2664 = vld [vmem:[%s1 + $0x48] sm:$0xff]
  %v2665 = vld [vmem:[%s1 + $0x50] sm:$0xff]
  %v2666 = vld [vmem:[%s1 + $0x58] sm:$0xff]
  %v2667 = vld [vmem:[%s1 + $0x60] sm:$0xff]
  %v2668 = vld [vmem:[%s1 + $0x68] sm:$0xff]
  %v2669 = vld [vmem:[%s1 + $0x70] sm:$0xff]
  %v2670 = vld [vmem:[%s1 + $0x78] sm:$0xff]
  %v2671 = vld [vmem:[%s1 + $0x80] sm:$0xff]
  %v2672 = vld [vmem:[%s1 + $0x88] sm:$0xff]
  %v2673 = vld [vmem:[%s1 + $0x90] sm:$0xff]
  %v2674 = vld [vmem:[%s1 + $0x98] sm:$0xff]
  %2676 = vrot.lane.b32.xlu0 %v2653, 64
  %v2677 = vpop.permute.xlu0 %2676
  %v2678 = vsel %vm175, %v2677, 0
  %2680 = vmatprep.subr.mxu0 %v2656
  %2681 = vmatpush1.msra.mxu0 %v2655
  %2682 = vmatprep.subr.mxu0 %v2661
  %2683 = vmatpush1.msra.mxu0 %v2660
  %2684 = vmatprep.subr.mxu0 %v2666
  %2685 = vmatpush1.msra.mxu0 %v2665
  %2686 = vmatprep.subr.mxu0 %v2671
  %2687 = vmatpush1.msra.mxu0 %v2670
  %2688 = vmatprep.subr.mxu0 0.0
  %2689 = vmatpush1.msra.mxu0 0.0
  %2690 = vmatprep.subr.mxu0 0.0
  %2691 = vmatpush1.msra.mxu0 0.0
  %2692 = vmatprep.subr.mxu0 0.0
  %2693 = vmatpush1.msra.mxu0 0.0
  %2694 = vmatprep.subr.mxu0 0.0
  %2695 = vmatpush1.msra.mxu0 0.0
  %2696 = vmatprep.subr.mxu0 0.0
  %2697 = vmatpush1.msra.mxu0 0.0
  %2698 = vmatprep.subr.mxu0 0.0
  %2699 = vmatpush1.msra.mxu0 0.0
  %2700 = vmatprep.subr.mxu0 0.0
  %2701 = vmatpush1.msra.mxu0 0.0
  %2702 = vmatprep.subr.mxu0 0.0
  %2703 = vmatpush1.msra.mxu0 0.0
  %2704 = vmatprep.subr.mxu0 0.0
  %2705 = vmatpush1.msra.mxu0 0.0
  %2706 = vmatprep.subr.mxu0 0.0
  %2707 = vmatpush1.msra.mxu0 0.0
  %2708 = vmatprep.subr.mxu0 0.0
  %2709 = vmatpush1.msra.mxu0 0.0
  %2710 = vmatprep.subr.mxu0 0.0
  %2711 = vmatpush1.msra.mxu0 0.0
  %2712 = vmatprep.subr.mxu0 0.0
  %2713 = vmatpush1.msra.mxu0 0.0
  %2714 = vmatprep.subr.mxu0 0.0
  %2715 = vmatpush1.msra.mxu0 0.0
  %2716 = vmatprep.subr.mxu0 0.0
  %2717 = vmatpush1.msra.mxu0 0.0
  %2718 = vmatprep.subr.mxu0 0.0
  %2719 = vmatpush1.msra.mxu0 0.0
  %2720 = vmatprep.subr.mxu0 0.0
  %2721 = vmatpush1.msra.mxu0 0.0
  %2722 = vmatprep.subr.mxu0 0.0
  %2723 = vmatpush1.msra.mxu0 0.0
  %2724 = vmatprep.subr.mxu0 0.0
  %2725 = vmatpush1.msra.mxu0 0.0
  %2726 = vmatprep.subr.mxu0 0.0
  %2727 = vmatpush1.msra.mxu0 0.0
  %2728 = vmatprep.subr.mxu0 0.0
  %2729 = vmatpush1.msra.mxu0 0.0
  %2730 = vmatprep.subr.mxu0 0.0
  %2731 = vmatpush1.msra.mxu0 0.0
  %2732 = vmatprep.subr.mxu0 0.0
  %2733 = vmatpush1.msra.mxu0 0.0
  %2734 = vmatprep.subr.mxu0 0.0
  %2735 = vmatpush1.msra.mxu0 0.0
  %2736 = vmatprep.subr.mxu0 0.0
  %2737 = vmatpush1.msra.mxu0 0.0
  %2738 = vmatprep.subr.mxu0 0.0
  %2739 = vmatpush1.msra.mxu0 0.0
  %2740 = vmatprep.subr.mxu0 0.0
  %2741 = vmatpush1.msra.mxu0 0.0
  %2742 = vmatprep.subr.mxu0 0.0
  %2743 = vmatpush1.msra.mxu0 0.0
  %2744 = vmatprep.mubr.f32.mxu0 0.0
  %2745 = vmatmul.mubr.f32.gmra.mrb[0].mxu0 %v2678
  %v2746 = vpop.f32.mrb[0].mxu0
  %v2747 = vadd.f32 0.0, %v2746
  %v2748 = vpop.f32.mrb[0].mxu0
  %v2749 = vadd.f32 0.0, %v2748
  %2750 = vdwg.mxu0
  %2751 = vmatprep.subr.mxu0 %v2658
  %2752 = vmatpush1.msra.mxu0 %v2657
  %2753 = vmatprep.subr.mxu0 %v2663
  %2754 = vmatpush1.msra.mxu0 %v2662
  %2755 = vmatprep.subr.mxu0 %v2668
  %2756 = vmatpush1.msra.mxu0 %v2667
  %2757 = vmatprep.subr.mxu0 %v2673
  %2758 = vmatpush1.msra.mxu0 %v2672
  %2759 = vmatprep.subr.mxu0 0.0
  %2760 = vmatpush1.msra.mxu0 0.0
  %2761 = vmatprep.subr.mxu0 0.0
  %2762 = vmatpush1.msra.mxu0 0.0
  %2763 = vmatprep.subr.mxu0 0.0
  %2764 = vmatpush1.msra.mxu0 0.0
  %2765 = vmatprep.subr.mxu0 0.0
  %2766 = vmatpush1.msra.mxu0 0.0
  %2767 = vmatprep.subr.mxu0 0.0
  %2768 = vmatpush1.msra.mxu0 0.0
  %2769 = vmatprep.subr.mxu0 0.0
  %2770 = vmatpush1.msra.mxu0 0.0
  %2771 = vmatprep.subr.mxu0 0.0
  %2772 = vmatpush1.msra.mxu0 0.0
  %2773 = vmatprep.subr.mxu0 0.0
  %2774 = vmatpush1.msra.mxu0 0.0
  %2775 = vmatprep.subr.mxu0 0.0
  %2776 = vmatpush1.msra.mxu0 0.0
  %2777 = vmatprep.subr.mxu0 0.0
  %2778 = vmatpush1.msra.mxu0 0.0
  %2779 = vmatprep.subr.mxu0 0.0
  %2780 = vmatpush1.msra.mxu0 0.0
  %2781 = vmatprep.subr.mxu0 0.0
  %2782 = vmatpush1.msra.mxu0 0.0
  %2783 = vmatprep.subr.mxu0 0.0
  %2784 = vmatpush1.msra.mxu0 0.0
  %2785 = vmatprep.subr.mxu0 0.0
  %2786 = vmatpush1.msra.mxu0 0.0
  %2787 = vmatprep.subr.mxu0 0.0
  %2788 = vmatpush1.msra.mxu0 0.0
  %2789 = vmatprep.subr.mxu0 0.0
  %2790 = vmatpush1.msra.mxu0 0.0
  %2791 = vmatprep.subr.mxu0 0.0
  %2792 = vmatpush1.msra.mxu0 0.0
  %2793 = vmatprep.subr.mxu0 0.0
  %2794 = vmatpush1.msra.mxu0 0.0
  %2795 = vmatprep.subr.mxu0 0.0
  %2796 = vmatpush1.msra.mxu0 0.0
  %2797 = vmatprep.subr.mxu0 0.0
  %2798 = vmatpush1.msra.mxu0 0.0
  %2799 = vmatprep.subr.mxu0 0.0
  %2800 = vmatpush1.msra.mxu0 0.0
  %2801 = vmatprep.subr.mxu0 0.0
  %2802 = vmatpush1.msra.mxu0 0.0
  %2803 = vmatprep.subr.mxu0 0.0
  %2804 = vmatpush1.msra.mxu0 0.0
  %2805 = vmatprep.subr.mxu0 0.0
  %2806 = vmatpush1.msra.mxu0 0.0
  %2807 = vmatprep.subr.mxu0 0.0
  %2808 = vmatpush1.msra.mxu0 0.0
  %2809 = vmatprep.subr.mxu0 0.0
  %2810 = vmatpush1.msra.mxu0 0.0
  %2811 = vmatprep.subr.mxu0 0.0
  %2812 = vmatpush1.msra.mxu0 0.0
  %2813 = vmatprep.subr.mxu0 0.0
  %2814 = vmatpush1.msra.mxu0 0.0
  %2815 = vmatprep.mubr.f32.mxu0 0.0
  %2816 = vmatmul.mubr.f32.gmra.mrb[0].mxu0 %v2678
  %v2817 = vpop.f32.mrb[0].mxu0
  %v2818 = vadd.f32 0.0, %v2817
  %v2819 = vpop.f32.mrb[0].mxu0
  %v2820 = vadd.f32 0.0, %v2819
  %2821 = vdwg.mxu0
  %2822 = vmatprep.subr.mxu0 0.0
  %2823 = vmatpush1.msra.mxu0 %v2659
  %2824 = vmatprep.subr.mxu0 0.0
  %2825 = vmatpush1.msra.mxu0 %v2664
  %2826 = vmatprep.subr.mxu0 0.0
  %2827 = vmatpush1.msra.mxu0 %v2669
  %2828 = vmatprep.subr.mxu0 0.0
  %2829 = vmatpush1.msra.mxu0 %v2674
  %2830 = vmatprep.subr.mxu0 0.0
  %2831 = vmatpush1.msra.mxu0 0.0
  %2832 = vmatprep.subr.mxu0 0.0
  %2833 = vmatpush1.msra.mxu0 0.0
  %2834 = vmatprep.subr.mxu0 0.0
  %2835 = vmatpush1.msra.mxu0 0.0
  %2836 = vmatprep.subr.mxu0 0.0
  %2837 = vmatpush1.msra.mxu0 0.0
  %2838 = vmatprep.subr.mxu0 0.0
  %2839 = vmatpush1.msra.mxu0 0.0
  %2840 = vmatprep.subr.mxu0 0.0
  %2841 = vmatpush1.msra.mxu0 0.0
  %2842 = vmatprep.subr.mxu0 0.0
  %2843 = vmatpush1.msra.mxu0 0.0
  %2844 = vmatprep.subr.mxu0 0.0
  %2845 = vmatpush1.msra.mxu0 0.0
  %2846 = vmatprep.subr.mxu0 0.0
  %2847 = vmatpush1.msra.mxu0 0.0
  %2848 = vmatprep.subr.mxu0 0.0
  %2849 = vmatpush1.msra.mxu0 0.0
  %2850 = vmatprep.subr.mxu0 0.0
  %2851 = vmatpush1.msra.mxu0 0.0
  %2852 = vmatprep.subr.mxu0 0.0
  %2853 = vmatpush1.msra.mxu0 0.0
  %2854 = vmatprep.subr.mxu0 0.0
  %2855 = vmatpush1.msra.mxu0 0.0
  %2856 = vmatprep.subr.mxu0 0.0
  %2857 = vmatpush1.msra.mxu0 0.0
  %2858 = vmatprep.subr.mxu0 0.0
  %2859 = vmatpush1.msra.mxu0 0.0
  %2860 = vmatprep.subr.mxu0 0.0
  %2861 = vmatpush1.msra.mxu0 0.0
  %2862 = vmatprep.subr.mxu0 0.0
  %2863 = vmatpush1.msra.mxu0 0.0
  %2864 = vmatprep.subr.mxu0 0.0
  %2865 = vmatpush1.msra.mxu0 0.0
  %2866 = vmatprep.subr.mxu0 0.0
  %2867 = vmatpush1.msra.mxu0 0.0
  %2868 = vmatprep.subr.mxu0 0.0
  %2869 = vmatpush1.msra.mxu0 0.0
  %2870 = vmatprep.subr.mxu0 0.0
  %2871 = vmatpush1.msra.mxu0 0.0
  %2872 = vmatprep.subr.mxu0 0.0
  %2873 = vmatpush1.msra.mxu0 0.0
  %2874 = vmatprep.subr.mxu0 0.0
  %2875 = vmatpush1.msra.mxu0 0.0
  %2876 = vmatprep.subr.mxu0 0.0
  %2877 = vmatpush1.msra.mxu0 0.0
  %2878 = vmatprep.subr.mxu0 0.0
  %2879 = vmatpush1.msra.mxu0 0.0
  %2880 = vmatprep.subr.mxu0 0.0
  %2881 = vmatpush1.msra.mxu0 0.0
  %2882 = vmatprep.subr.mxu0 0.0
  %2883 = vmatpush1.msra.mxu0 0.0
  %2884 = vmatprep.subr.mxu0 0.0
  %2885 = vmatpush1.msra.mxu0 0.0
  %2886 = vmatprep.mubr.f32.mxu0 0.0
  %2887 = vmatmul.mubr.f32.gmra.mrb[0].mxu0 %v2678
  %v2888 = vpop.f32.mrb[0].mxu0
  %v2889 = vadd.f32 0.0, %v2888
  %v2890 = vpop.f32.mrb[0].mxu0
  %2891 = vdwg.mxu0
  %2893 = vrot.lane.b32.xlu0 %v2747, 96
  %v2894 = vpop.permute.xlu0 %2893
  %2896 = vrot.lane.b32.xlu0 %v2747, 64
  %v2897 = vpop.permute.xlu0 %2896
  %2899 = vrot.lane.b32.xlu0 %v2747, 32
  %v2900 = vpop.permute.xlu0 %2899
  %2903 = vrot.lane.b32.xlu0 %v2749, 96
  %v2904 = vpop.permute.xlu0 %2903
  %2906 = vrot.lane.b32.xlu0 %v2749, 64
  %v2907 = vpop.permute.xlu0 %2906
  %2909 = vrot.lane.b32.xlu0 %v2749, 32
  %v2910 = vpop.permute.xlu0 %2909
  %2913 = vrot.lane.b32.xlu0 %v2818, 96
  %v2914 = vpop.permute.xlu0 %2913
  %2916 = vrot.lane.b32.xlu0 %v2818, 64
  %v2917 = vpop.permute.xlu0 %2916
  %2919 = vrot.lane.b32.xlu0 %v2818, 32
  %v2920 = vpop.permute.xlu0 %2919
  %2923 = vrot.lane.b32.xlu0 %v2820, 96
  %v2924 = vpop.permute.xlu0 %2923
  %2926 = vrot.lane.b32.xlu0 %v2820, 64
  %v2927 = vpop.permute.xlu0 %2926
  %2929 = vrot.lane.b32.xlu0 %v2820, 32
  %v2930 = vpop.permute.xlu0 %2929
  %v2932 = vld [vmem:[%s0 + $0x50] sm:$0xff]
  %2933 = vmatprep.subr.mxu0 0.0
  %2934 = vmatpush1.msra.mxu0 %v2747
  %2935 = vmatprep.subr.mxu0 0.0
  %2936 = vmatpush1.msra.mxu0 %v2894
  %2937 = vmatprep.subr.mxu0 0.0
  %2938 = vmatpush1.msra.mxu0 %v2897
  %2939 = vmatprep.subr.mxu0 0.0
  %2940 = vmatpush1.msra.mxu0 %v2900
  %2941 = vmatprep.subr.mxu0 0.0
  %2942 = vmatpush1.msra.mxu0 %v2749
  %2943 = vmatprep.subr.mxu0 0.0
  %2944 = vmatpush1.msra.mxu0 %v2904
  %2945 = vmatprep.subr.mxu0 0.0
  %2946 = vmatpush1.msra.mxu0 %v2907
  %2947 = vmatprep.subr.mxu0 0.0
  %2948 = vmatpush1.msra.mxu0 %v2910
  %2949 = vmatprep.subr.mxu0 0.0
  %2950 = vmatpush1.msra.mxu0 %v2818
  %2951 = vmatprep.subr.mxu0 0.0
  %2952 = vmatpush1.msra.mxu0 %v2914
  %2953 = vmatprep.subr.mxu0 0.0
  %2954 = vmatpush1.msra.mxu0 %v2917
  %2955 = vmatprep.subr.mxu0 0.0
  %2956 = vmatpush1.msra.mxu0 %v2920
  %2957 = vmatprep.subr.mxu0 0.0
  %2958 = vmatpush1.msra.mxu0 %v2820
  %2959 = vmatprep.subr.mxu0 0.0
  %2960 = vmatpush1.msra.mxu0 %v2924
  %2961 = vmatprep.subr.mxu0 0.0
  %2962 = vmatpush1.msra.mxu0 %v2927
  %2963 = vmatprep.subr.mxu0 0.0
  %2964 = vmatpush1.msra.mxu0 %v2930
  %2965 = vmatprep.subr.mxu0 0.0
  %2966 = vmatpush1.msra.mxu0 0.0
  %2967 = vmatprep.subr.mxu0 0.0
  %2968 = vmatpush1.msra.mxu0 0.0
  %2969 = vmatprep.subr.mxu0 0.0
  %2970 = vmatpush1.msra.mxu0 0.0
  %2971 = vmatprep.subr.mxu0 0.0
  %2972 = vmatpush1.msra.mxu0 0.0
  %2973 = vmatprep.subr.mxu0 0.0
  %2974 = vmatpush1.msra.mxu0 0.0
  %2975 = vmatprep.subr.mxu0 0.0
  %2976 = vmatpush1.msra.mxu0 0.0
  %2977 = vmatprep.subr.mxu0 0.0
  %2978 = vmatpush1.msra.mxu0 0.0
  %2979 = vmatprep.subr.mxu0 0.0
  %2980 = vmatpush1.msra.mxu0 0.0
  %2981 = vmatprep.subr.mxu0 0.0
  %2982 = vmatpush1.msra.mxu0 0.0
  %2983 = vmatprep.subr.mxu0 0.0
  %2984 = vmatpush1.msra.mxu0 0.0
  %2985 = vmatprep.subr.mxu0 0.0
  %2986 = vmatpush1.msra.mxu0 0.0
  %2987 = vmatprep.subr.mxu0 0.0
  %2988 = vmatpush1.msra.mxu0 0.0
  %2989 = vmatprep.subr.mxu0 0.0
  %2990 = vmatpush1.msra.mxu0 0.0
  %2991 = vmatprep.subr.mxu0 0.0
  %2992 = vmatpush1.msra.mxu0 0.0
  %2993 = vmatprep.subr.mxu0 0.0
  %2994 = vmatpush1.msra.mxu0 0.0
  %2995 = vmatprep.subr.mxu0 0.0
  %2996 = vmatpush1.msra.mxu0 0.0
  %2997 = vmatprep.mubr.f32.mxu0 0.0
  %2998 = vmatmul.mubr.f32.gmra.mrb[0].mxu0 %v2932
  %v2999 = vpop.f32.mrb[0].mxu0
  %v3000 = vadd.f32 %v18, %v2999
  %v3001 = vpop.f32.mrb[0].mxu0
  %3002 = vdwg.mxu0
  %v3003 = vmax.f32 %v3000, 0.0
  %v3004 = vld [vmem:[#allocation2 + $0x28] sm:$0xff]
  %v3005 = vadd.f32 %v3004, %v2889
  %v3006 = vld [vmem:[%s1 + $0xa0] sm:$0xff]
  %v3007 = vld [vmem:[%s1 + $0xc8] sm:$0xff]
  %v3008 = vld [vmem:[%s1 + $0xf0] sm:$0xff]
  %v3009 = vld [vmem:[%s1 + $0x118] sm:$0xff]
  %v3011 = vsel %vm175, %v3003, 0
  %3013 = vmatprep.subr.mxu0 0.0
  %3014 = vmatpush1.msra.mxu0 %v3006
  %3015 = vmatprep.subr.mxu0 0.0
  %3016 = vmatpush1.msra.mxu0 %v3007
  %3017 = vmatprep.subr.mxu0 0.0
  %3018 = vmatpush1.msra.mxu0 %v3008
  %3019 = vmatprep.subr.mxu0 0.0
  %3020 = vmatpush1.msra.mxu0 %v3009
  %3021 = vmatprep.subr.mxu0 0.0
  %3022 = vmatpush1.msra.mxu0 0.0
  %3023 = vmatprep.subr.mxu0 0.0
  %3024 = vmatpush1.msra.mxu0 0.0
  %3025 = vmatprep.subr.mxu0 0.0
  %3026 = vmatpush1.msra.mxu0 0.0
  %3027 = vmatprep.subr.mxu0 0.0
  %3028 = vmatpush1.msra.mxu0 0.0
  %3029 = vmatprep.subr.mxu0 0.0
  %3030 = vmatpush1.msra.mxu0 0.0
  %3031 = vmatprep.subr.mxu0 0.0
  %3032 = vmatpush1.msra.mxu0 0.0
  %3033 = vmatprep.subr.mxu0 0.0
  %3034 = vmatpush1.msra.mxu0 0.0
  %3035 = vmatprep.subr.mxu0 0.0
  %3036 = vmatpush1.msra.mxu0 0.0
  %3037 = vmatprep.subr.mxu0 0.0
  %3038 = vmatpush1.msra.mxu0 0.0
  %3039 = vmatprep.subr.mxu0 0.0
  %3040 = vmatpush1.msra.mxu0 0.0
  %3041 = vmatprep.subr.mxu0 0.0
  %3042 = vmatpush1.msra.mxu0 0.0
  %3043 = vmatprep.subr.mxu0 0.0
  %3044 = vmatpush1.msra.mxu0 0.0
  %3045 = vmatprep.subr.mxu0 0.0
  %3046 = vmatpush1.msra.mxu0 0.0
  %3047 = vmatprep.subr.mxu0 0.0
  %3048 = vmatpush1.msra.mxu0 0.0
  %3049 = vmatprep.subr.mxu0 0.0
  %3050 = vmatpush1.msra.mxu0 0.0
  %3051 = vmatprep.subr.mxu0 0.0
  %3052 = vmatpush1.msra.mxu0 0.0
  %3053 = vmatprep.subr.mxu0 0.0
  %3054 = vmatpush1.msra.mxu0 0.0
  %3055 = vmatprep.subr.mxu0 0.0
  %3056 = vmatpush1.msra.mxu0 0.0
  %3057 = vmatprep.subr.mxu0 0.0
  %3058 = vmatpush1.msra.mxu0 0.0
  %3059 = vmatprep.subr.mxu0 0.0
  %3060 = vmatpush1.msra.mxu0 0.0
  %3061 = vmatprep.subr.mxu0 0.0
  %3062 = vmatpush1.msra.mxu0 0.0
  %3063 = vmatprep.subr.mxu0 0.0
  %3064 = vmatpush1.msra.mxu0 0.0
  %3065 = vmatprep.subr.mxu0 0.0
  %3066 = vmatpush1.msra.mxu0 0.0
  %3067 = vmatprep.subr.mxu0 0.0
  %3068 = vmatpush1.msra.mxu0 0.0
  %3069 = vmatprep.subr.mxu0 0.0
  %3070 = vmatpush1.msra.mxu0 0.0
  %3071 = vmatprep.subr.mxu0 0.0
  %3072 = vmatpush1.msra.mxu0 0.0
  %3073 = vmatprep.subr.mxu0 0.0
  %3074 = vmatpush1.msra.mxu0 0.0
  %3075 = vmatprep.subr.mxu0 0.0
  %3076 = vmatpush1.msra.mxu0 0.0
  %3077 = vmatprep.mubr.f32.mxu0 0.0
  %3078 = vmatmul.mubr.f32.gmra.mrb[0].mxu0 %v3011
  %v3079 = vpop.f32.mrb[0].mxu0
  %v3080 = vadd.f32 0.0, %v3079
  %v3081 = vpop.f32.mrb[0].mxu0
  %3082 = vdwg.mxu0
  %v3083 = vadd.f32 %v3005, %v3080
  %v3084 = vxor.u32 %v3083, 2147483648
  %v3085 = vmul.f32 %v3084, 1.442695
  %v3086 = vpow.pop %v3085
  %v3087 = vadd.f32 %v3086, 1.0
  %v3088 = vrcp.pop %v3087
  %v3089 = vmul.f32 1.0, %v3088
  %v3090 = vtanh.pop %v3083
  %v3091 = vmul.f32 %v3089, %v2654
  %3093 = vrot.lane.b32.xlu0 %v3090, 32
  %v3094 = vpop.permute.xlu0 %3093
  %v3096 = vmul.f32 %v3089, %v3094
  %3098 = vrot.lane.b32.xlu0 %v3096, 32
  %v3099 = vpop.permute.xlu0 %3098
  %v3101 = vadd.f32 %v3091, %v3099
  %v3102 = vtanh.pop %v3101
  %3104 = vrot.lane.b32.xlu0 %v3102, 32
  %v3105 = vpop.permute.xlu0 %3104
  %v3107 = vmul.f32 %v3089, %v3105
  %3109 = vrot.lane.b32.xlu0 %v3107, 64
  %v3110 = vpop.permute.xlu0 %3109
  %3112 = vst.msk [vmem:[#allocation3 + $0x28] sm:$0xff] %vm175, %v3110
  %v3113 = vld [vmem:[%s0 + $0x58] sm:$0xff]
  %vm3114 = vcmp.gt.f32.partialorder %v3113, 0.0
  %v3115 = vsel %vm3114, 1, 0
  %3116 = vset.pattern.permute.xlu0 2
  %3117 = vperm.xlu0 %3116, %v3115
  %v3118 = vpop.permute.xlu0 %3117
  %vm3119 = vcmp.eq.s32.totalorder %v3118, 1
  %v3120 = vsel %vm3119, %v3107, %v2653
  %v3121 = vsel %vm3119, %v3101, %v2654
  %v3122 = vld [vmem:[%s1] sm:$0xff]
  %v3123 = vld [vmem:[%s1 + $0x8] sm:$0xff]
  %v3124 = vld [vmem:[%s1 + $0x10] sm:$0xff]
  %v3125 = vld [vmem:[%s1 + $0x18] sm:$0xff]
  %v3126 = vld [vmem:[%s1 + $0x20] sm:$0xff]
  %v3127 = vld [vmem:[%s1 + $0x28] sm:$0xff]
  %v3128 = vld [vmem:[%s1 + $0x30] sm:$0xff]
  %v3129 = vld [vmem:[%s1 + $0x38] sm:$0xff]
  %v3130 = vld [vmem:[%s1 + $0x40] sm:$0xff]
  %v3131 = vld [vmem:[%s1 + $0x48] sm:$0xff]
  %v3132 = vld [vmem:[%s1 + $0x50] sm:$0xff]
  %v3133 = vld [vmem:[%s1 + $0x58] sm:$0xff]
  %v3134 = vld [vmem:[%s1 + $0x60] sm:$0xff]
  %v3135 = vld [vmem:[%s1 + $0x68] sm:$0xff]
  %v3136 = vld [vmem:[%s1 + $0x70] sm:$0xff]
  %v3137 = vld [vmem:[%s1 + $0x78] sm:$0xff]
  %v3138 = vld [vmem:[%s1 + $0x80] sm:$0xff]
  %v3139 = vld [vmem:[%s1 + $0x88] sm:$0xff]
  %v3140 = vld [vmem:[%s1 + $0x90] sm:$0xff]
  %v3141 = vld [vmem:[%s1 + $0x98] sm:$0xff]
  %3143 = vrot.lane.b32.xlu0 %v3120, 64
  %v3144 = vpop.permute.xlu0 %3143
  %v3145 = vsel %vm175, %v3144, 0
  %3147 = vmatprep.subr.mxu0 %v3123
  %3148 = vmatpush1.msra.mxu0 %v3122
  %3149 = vmatprep.subr.mxu0 %v3128
  %3150 = vmatpush1.msra.mxu0 %v3127
  %3151 = vmatprep.subr.mxu0 %v3133
  %3152 = vmatpush1.msra.mxu0 %v3132
  %3153 = vmatprep.subr.mxu0 %v3138
  %3154 = vmatpush1.msra.mxu0 %v3137
  %3155 = vmatprep.subr.mxu0 0.0
  %3156 = vmatpush1.msra.mxu0 0.0
  %3157 = vmatprep.subr.mxu0 0.0
  %3158 = vmatpush1.msra.mxu0 0.0
  %3159 = vmatprep.subr.mxu0 0.0
  %3160 = vmatpush1.msra.mxu0 0.0
  %3161 = vmatprep.subr.mxu0 0.0
  %3162 = vmatpush1.msra.mxu0 0.0
  %3163 = vmatprep.subr.mxu0 0.0
  %3164 = vmatpush1.msra.mxu0 0.0
  %3165 = vmatprep.subr.mxu0 0.0
  %3166 = vmatpush1.msra.mxu0 0.0
  %3167 = vmatprep.subr.mxu0 0.0
  %3168 = vmatpush1.msra.mxu0 0.0
  %3169 = vmatprep.subr.mxu0 0.0
  %3170 = vmatpush1.msra.mxu0 0.0
  %3171 = vmatprep.subr.mxu0 0.0
  %3172 = vmatpush1.msra.mxu0 0.0
  %3173 = vmatprep.subr.mxu0 0.0
  %3174 = vmatpush1.msra.mxu0 0.0
  %3175 = vmatprep.subr.mxu0 0.0
  %3176 = vmatpush1.msra.mxu0 0.0
  %3177 = vmatprep.subr.mxu0 0.0
  %3178 = vmatpush1.msra.mxu0 0.0
  %3179 = vmatprep.subr.mxu0 0.0
  %3180 = vmatpush1.msra.mxu0 0.0
  %3181 = vmatprep.subr.mxu0 0.0
  %3182 = vmatpush1.msra.mxu0 0.0
  %3183 = vmatprep.subr.mxu0 0.0
  %3184 = vmatpush1.msra.mxu0 0.0
  %3185 = vmatprep.subr.mxu0 0.0
  %3186 = vmatpush1.msra.mxu0 0.0
  %3187 = vmatprep.subr.mxu0 0.0
  %3188 = vmatpush1.msra.mxu0 0.0
  %3189 = vmatprep.subr.mxu0 0.0
  %3190 = vmatpush1.msra.mxu0 0.0
  %3191 = vmatprep.subr.mxu0 0.0
  %3192 = vmatpush1.msra.mxu0 0.0
  %3193 = vmatprep.subr.mxu0 0.0
  %3194 = vmatpush1.msra.mxu0 0.0
  %3195 = vmatprep.subr.mxu0 0.0
  %3196 = vmatpush1.msra.mxu0 0.0
  %3197 = vmatprep.subr.mxu0 0.0
  %3198 = vmatpush1.msra.mxu0 0.0
  %3199 = vmatprep.subr.mxu0 0.0
  %3200 = vmatpush1.msra.mxu0 0.0
  %3201 = vmatprep.subr.mxu0 0.0
  %3202 = vmatpush1.msra.mxu0 0.0
  %3203 = vmatprep.subr.mxu0 0.0
  %3204 = vmatpush1.msra.mxu0 0.0
  %3205 = vmatprep.subr.mxu0 0.0
  %3206 = vmatpush1.msra.mxu0 0.0
  %3207 = vmatprep.subr.mxu0 0.0
  %3208 = vmatpush1.msra.mxu0 0.0
  %3209 = vmatprep.subr.mxu0 0.0
  %3210 = vmatpush1.msra.mxu0 0.0
  %3211 = vmatprep.mubr.f32.mxu0 0.0
  %3212 = vmatmul.mubr.f32.gmra.mrb[0].mxu0 %v3145
  %v3213 = vpop.f32.mrb[0].mxu0
  %v3214 = vadd.f32 0.0, %v3213
  %v3215 = vpop.f32.mrb[0].mxu0
  %v3216 = vadd.f32 0.0, %v3215
  %3217 = vdwg.mxu0
  %3218 = vmatprep.subr.mxu0 %v3125
  %3219 = vmatpush1.msra.mxu0 %v3124
  %3220 = vmatprep.subr.mxu0 %v3130
  %3221 = vmatpush1.msra.mxu0 %v3129
  %3222 = vmatprep.subr.mxu0 %v3135
  %3223 = vmatpush1.msra.mxu0 %v3134
  %3224 = vmatprep.subr.mxu0 %v3140
  %3225 = vmatpush1.msra.mxu0 %v3139
  %3226 = vmatprep.subr.mxu0 0.0
  %3227 = vmatpush1.msra.mxu0 0.0
  %3228 = vmatprep.subr.mxu0 0.0
  %3229 = vmatpush1.msra.mxu0 0.0
  %3230 = vmatprep.subr.mxu0 0.0
  %3231 = vmatpush1.msra.mxu0 0.0
  %3232 = vmatprep.subr.mxu0 0.0
  %3233 = vmatpush1.msra.mxu0 0.0
  %3234 = vmatprep.subr.mxu0 0.0
  %3235 = vmatpush1.msra.mxu0 0.0
  %3236 = vmatprep.subr.mxu0 0.0
  %3237 = vmatpush1.msra.mxu0 0.0
  %3238 = vmatprep.subr.mxu0 0.0
  %3239 = vmatpush1.msra.mxu0 0.0
  %3240 = vmatprep.subr.mxu0 0.0
  %3241 = vmatpush1.msra.mxu0 0.0
  %3242 = vmatprep.subr.mxu0 0.0
  %3243 = vmatpush1.msra.mxu0 0.0
  %3244 = vmatprep.subr.mxu0 0.0
  %3245 = vmatpush1.msra.mxu0 0.0
  %3246 = vmatprep.subr.mxu0 0.0
  %3247 = vmatpush1.msra.mxu0 0.0
  %3248 = vmatprep.subr.mxu0 0.0
  %3249 = vmatpush1.msra.mxu0 0.0
  %3250 = vmatprep.subr.mxu0 0.0
  %3251 = vmatpush1.msra.mxu0 0.0
  %3252 = vmatprep.subr.mxu0 0.0
  %3253 = vmatpush1.msra.mxu0 0.0
  %3254 = vmatprep.subr.mxu0 0.0
  %3255 = vmatpush1.msra.mxu0 0.0
  %3256 = vmatprep.subr.mxu0 0.0
  %3257 = vmatpush1.msra.mxu0 0.0
  %3258 = vmatprep.subr.mxu0 0.0
  %3259 = vmatpush1.msra.mxu0 0.0
  %3260 = vmatprep.subr.mxu0 0.0
  %3261 = vmatpush1.msra.mxu0 0.0
  %3262 = vmatprep.subr.mxu0 0.0
  %3263 = vmatpush1.msra.mxu0 0.0
  %3264 = vmatprep.subr.mxu0 0.0
  %3265 = vmatpush1.msra.mxu0 0.0
  %3266 = vmatprep.subr.mxu0 0.0
  %3267 = vmatpush1.msra.mxu0 0.0
  %3268 = vmatprep.subr.mxu0 0.0
  %3269 = vmatpush1.msra.mxu0 0.0
  %3270 = vmatprep.subr.mxu0 0.0
  %3271 = vmatpush1.msra.mxu0 0.0
  %3272 = vmatprep.subr.mxu0 0.0
  %3273 = vmatpush1.msra.mxu0 0.0
  %3274 = vmatprep.subr.mxu0 0.0
  %3275 = vmatpush1.msra.mxu0 0.0
  %3276 = vmatprep.subr.mxu0 0.0
  %3277 = vmatpush1.msra.mxu0 0.0
  %3278 = vmatprep.subr.mxu0 0.0
  %3279 = vmatpush1.msra.mxu0 0.0
  %3280 = vmatprep.subr.mxu0 0.0
  %3281 = vmatpush1.msra.mxu0 0.0
  %3282 = vmatprep.mubr.f32.mxu0 0.0
  %3283 = vmatmul.mubr.f32.gmra.mrb[0].mxu0 %v3145
  %v3284 = vpop.f32.mrb[0].mxu0
  %v3285 = vadd.f32 0.0, %v3284
  %v3286 = vpop.f32.mrb[0].mxu0
  %v3287 = vadd.f32 0.0, %v3286
  %3288 = vdwg.mxu0
  %3289 = vmatprep.subr.mxu0 0.0
  %3290 = vmatpush1.msra.mxu0 %v3126
  %3291 = vmatprep.subr.mxu0 0.0
  %3292 = vmatpush1.msra.mxu0 %v3131
  %3293 = vmatprep.subr.mxu0 0.0
  %3294 = vmatpush1.msra.mxu0 %v3136
  %3295 = vmatprep.subr.mxu0 0.0
  %3296 = vmatpush1.msra.mxu0 %v3141
  %3297 = vmatprep.subr.mxu0 0.0
  %3298 = vmatpush1.msra.mxu0 0.0
  %3299 = vmatprep.subr.mxu0 0.0
  %3300 = vmatpush1.msra.mxu0 0.0
  %3301 = vmatprep.subr.mxu0 0.0
  %3302 = vmatpush1.msra.mxu0 0.0
  %3303 = vmatprep.subr.mxu0 0.0
  %3304 = vmatpush1.msra.mxu0 0.0
  %3305 = vmatprep.subr.mxu0 0.0
  %3306 = vmatpush1.msra.mxu0 0.0
  %3307 = vmatprep.subr.mxu0 0.0
  %3308 = vmatpush1.msra.mxu0 0.0
  %3309 = vmatprep.subr.mxu0 0.0
  %3310 = vmatpush1.msra.mxu0 0.0
  %3311 = vmatprep.subr.mxu0 0.0
  %3312 = vmatpush1.msra.mxu0 0.0
  %3313 = vmatprep.subr.mxu0 0.0
  %3314 = vmatpush1.msra.mxu0 0.0
  %3315 = vmatprep.subr.mxu0 0.0
  %3316 = vmatpush1.msra.mxu0 0.0
  %3317 = vmatprep.subr.mxu0 0.0
  %3318 = vmatpush1.msra.mxu0 0.0
  %3319 = vmatprep.subr.mxu0 0.0
  %3320 = vmatpush1.msra.mxu0 0.0
  %3321 = vmatprep.subr.mxu0 0.0
  %3322 = vmatpush1.msra.mxu0 0.0
  %3323 = vmatprep.subr.mxu0 0.0
  %3324 = vmatpush1.msra.mxu0 0.0
  %3325 = vmatprep.subr.mxu0 0.0
  %3326 = vmatpush1.msra.mxu0 0.0
  %3327 = vmatprep.subr.mxu0 0.0
  %3328 = vmatpush1.msra.mxu0 0.0
  %3329 = vmatprep.subr.mxu0 0.0
  %3330 = vmatpush1.msra.mxu0 0.0
  %3331 = vmatprep.subr.mxu0 0.0
  %3332 = vmatpush1.msra.mxu0 0.0
  %3333 = vmatprep.subr.mxu0 0.0
  %3334 = vmatpush1.msra.mxu0 0.0
  %3335 = vmatprep.subr.mxu0 0.0
  %3336 = vmatpush1.msra.mxu0 0.0
  %3337 = vmatprep.subr.mxu0 0.0
  %3338 = vmatpush1.msra.mxu0 0.0
  %3339 = vmatprep.subr.mxu0 0.0
  %3340 = vmatpush1.msra.mxu0 0.0
  %3341 = vmatprep.subr.mxu0 0.0
  %3342 = vmatpush1.msra.mxu0 0.0
  %3343 = vmatprep.subr.mxu0 0.0
  %3344 = vmatpush1.msra.mxu0 0.0
  %3345 = vmatprep.subr.mxu0 0.0
  %3346 = vmatpush1.msra.mxu0 0.0
  %3347 = vmatprep.subr.mxu0 0.0
  %3348 = vmatpush1.msra.mxu0 0.0
  %3349 = vmatprep.subr.mxu0 0.0
  %3350 = vmatpush1.msra.mxu0 0.0
  %3351 = vmatprep.subr.mxu0 0.0
  %3352 = vmatpush1.msra.mxu0 0.0
  %3353 = vmatprep.mubr.f32.mxu0 0.0
  %3354 = vmatmul.mubr.f32.gmra.mrb[0].mxu0 %v3145
  %v3355 = vpop.f32.mrb[0].mxu0
  %v3356 = vadd.f32 0.0, %v3355
  %v3357 = vpop.f32.mrb[0].mxu0
  %3358 = vdwg.mxu0
  %3360 = vrot.lane.b32.xlu0 %v3214, 96
  %v3361 = vpop.permute.xlu0 %3360
  %3363 = vrot.lane.b32.xlu0 %v3214, 64
  %v3364 = vpop.permute.xlu0 %3363
  %3366 = vrot.lane.b32.xlu0 %v3214, 32
  %v3367 = vpop.permute.xlu0 %3366
  %3370 = vrot.lane.b32.xlu0 %v3216, 96
  %v3371 = vpop.permute.xlu0 %3370
  %3373 = vrot.lane.b32.xlu0 %v3216, 64
  %v3374 = vpop.permute.xlu0 %3373
  %3376 = vrot.lane.b32.xlu0 %v3216, 32
  %v3377 = vpop.permute.xlu0 %3376
  %3380 = vrot.lane.b32.xlu0 %v3285, 96
  %v3381 = vpop.permute.xlu0 %3380
  %3383 = vrot.lane.b32.xlu0 %v3285, 64
  %v3384 = vpop.permute.xlu0 %3383
  %3386 = vrot.lane.b32.xlu0 %v3285, 32
  %v3387 = vpop.permute.xlu0 %3386
  %3390 = vrot.lane.b32.xlu0 %v3287, 96
  %v3391 = vpop.permute.xlu0 %3390
  %3393 = vrot.lane.b32.xlu0 %v3287, 64
  %v3394 = vpop.permute.xlu0 %3393
  %3396 = vrot.lane.b32.xlu0 %v3287, 32
  %v3397 = vpop.permute.xlu0 %3396
  %v3399 = vld [vmem:[%s0 + $0x60] sm:$0xff]
  %3400 = vmatprep.subr.mxu0 0.0
  %3401 = vmatpush1.msra.mxu0 %v3214
  %3402 = vmatprep.subr.mxu0 0.0
  %3403 = vmatpush1.msra.mxu0 %v3361
  %3404 = vmatprep.subr.mxu0 0.0
  %3405 = vmatpush1.msra.mxu0 %v3364
  %3406 = vmatprep.subr.mxu0 0.0
  %3407 = vmatpush1.msra.mxu0 %v3367
  %3408 = vmatprep.subr.mxu0 0.0
  %3409 = vmatpush1.msra.mxu0 %v3216
  %3410 = vmatprep.subr.mxu0 0.0
  %3411 = vmatpush1.msra.mxu0 %v3371
  %3412 = vmatprep.subr.mxu0 0.0
  %3413 = vmatpush1.msra.mxu0 %v3374
  %3414 = vmatprep.subr.mxu0 0.0
  %3415 = vmatpush1.msra.mxu0 %v3377
  %3416 = vmatprep.subr.mxu0 0.0
  %3417 = vmatpush1.msra.mxu0 %v3285
  %3418 = vmatprep.subr.mxu0 0.0
  %3419 = vmatpush1.msra.mxu0 %v3381
  %3420 = vmatprep.subr.mxu0 0.0
  %3421 = vmatpush1.msra.mxu0 %v3384
  %3422 = vmatprep.subr.mxu0 0.0
  %3423 = vmatpush1.msra.mxu0 %v3387
  %3424 = vmatprep.subr.mxu0 0.0
  %3425 = vmatpush1.msra.mxu0 %v3287
  %3426 = vmatprep.subr.mxu0 0.0
  %3427 = vmatpush1.msra.mxu0 %v3391
  %3428 = vmatprep.subr.mxu0 0.0
  %3429 = vmatpush1.msra.mxu0 %v3394
  %3430 = vmatprep.subr.mxu0 0.0
  %3431 = vmatpush1.msra.mxu0 %v3397
  %3432 = vmatprep.subr.mxu0 0.0
  %3433 = vmatpush1.msra.mxu0 0.0
  %3434 = vmatprep.subr.mxu0 0.0
  %3435 = vmatpush1.msra.mxu0 0.0
  %3436 = vmatprep.subr.mxu0 0.0
  %3437 = vmatpush1.msra.mxu0 0.0
  %3438 = vmatprep.subr.mxu0 0.0
  %3439 = vmatpush1.msra.mxu0 0.0
  %3440 = vmatprep.subr.mxu0 0.0
  %3441 = vmatpush1.msra.mxu0 0.0
  %3442 = vmatprep.subr.mxu0 0.0
  %3443 = vmatpush1.msra.mxu0 0.0
  %3444 = vmatprep.subr.mxu0 0.0
  %3445 = vmatpush1.msra.mxu0 0.0
  %3446 = vmatprep.subr.mxu0 0.0
  %3447 = vmatpush1.msra.mxu0 0.0
  %3448 = vmatprep.subr.mxu0 0.0
  %3449 = vmatpush1.msra.mxu0 0.0
  %3450 = vmatprep.subr.mxu0 0.0
  %3451 = vmatpush1.msra.mxu0 0.0
  %3452 = vmatprep.subr.mxu0 0.0
  %3453 = vmatpush1.msra.mxu0 0.0
  %3454 = vmatprep.subr.mxu0 0.0
  %3455 = vmatpush1.msra.mxu0 0.0
  %3456 = vmatprep.subr.mxu0 0.0
  %3457 = vmatpush1.msra.mxu0 0.0
  %3458 = vmatprep.subr.mxu0 0.0
  %3459 = vmatpush1.msra.mxu0 0.0
  %3460 = vmatprep.subr.mxu0 0.0
  %3461 = vmatpush1.msra.mxu0 0.0
  %3462 = vmatprep.subr.mxu0 0.0
  %3463 = vmatpush1.msra.mxu0 0.0
  %3464 = vmatprep.mubr.f32.mxu0 0.0
  %3465 = vmatmul.mubr.f32.gmra.mrb[0].mxu0 %v3399
  %v3466 = vpop.f32.mrb[0].mxu0
  %v3467 = vadd.f32 %v18, %v3466
  %v3468 = vpop.f32.mrb[0].mxu0
  %3469 = vdwg.mxu0
  %v3470 = vmax.f32 %v3467, 0.0
  %v3471 = vld [vmem:[#allocation2 + $0x30] sm:$0xff]
  %v3472 = vadd.f32 %v3471, %v3356
  %v3473 = vld [vmem:[%s1 + $0xa0] sm:$0xff]
  %v3474 = vld [vmem:[%s1 + $0xc8] sm:$0xff]
  %v3475 = vld [vmem:[%s1 + $0xf0] sm:$0xff]
  %v3476 = vld [vmem:[%s1 + $0x118] sm:$0xff]
  %v3478 = vsel %vm175, %v3470, 0
  %3480 = vmatprep.subr.mxu0 0.0
  %3481 = vmatpush1.msra.mxu0 %v3473
  %3482 = vmatprep.subr.mxu0 0.0
  %3483 = vmatpush1.msra.mxu0 %v3474
  %3484 = vmatprep.subr.mxu0 0.0
  %3485 = vmatpush1.msra.mxu0 %v3475
  %3486 = vmatprep.subr.mxu0 0.0
  %3487 = vmatpush1.msra.mxu0 %v3476
  %3488 = vmatprep.subr.mxu0 0.0
  %3489 = vmatpush1.msra.mxu0 0.0
  %3490 = vmatprep.subr.mxu0 0.0
  %3491 = vmatpush1.msra.mxu0 0.0
  %3492 = vmatprep.subr.mxu0 0.0
  %3493 = vmatpush1.msra.mxu0 0.0
  %3494 = vmatprep.subr.mxu0 0.0
  %3495 = vmatpush1.msra.mxu0 0.0
  %3496 = vmatprep.subr.mxu0 0.0
  %3497 = vmatpush1.msra.mxu0 0.0
  %3498 = vmatprep.subr.mxu0 0.0
  %3499 = vmatpush1.msra.mxu0 0.0
  %3500 = vmatprep.subr.mxu0 0.0
  %3501 = vmatpush1.msra.mxu0 0.0
  %3502 = vmatprep.subr.mxu0 0.0
  %3503 = vmatpush1.msra.mxu0 0.0
  %3504 = vmatprep.subr.mxu0 0.0
  %3505 = vmatpush1.msra.mxu0 0.0
  %3506 = vmatprep.subr.mxu0 0.0
  %3507 = vmatpush1.msra.mxu0 0.0
  %3508 = vmatprep.subr.mxu0 0.0
  %3509 = vmatpush1.msra.mxu0 0.0
  %3510 = vmatprep.subr.mxu0 0.0
  %3511 = vmatpush1.msra.mxu0 0.0
  %3512 = vmatprep.subr.mxu0 0.0
  %3513 = vmatpush1.msra.mxu0 0.0
  %3514 = vmatprep.subr.mxu0 0.0
  %3515 = vmatpush1.msra.mxu0 0.0
  %3516 = vmatprep.subr.mxu0 0.0
  %3517 = vmatpush1.msra.mxu0 0.0
  %3518 = vmatprep.subr.mxu0 0.0
  %3519 = vmatpush1.msra.mxu0 0.0
  %3520 = vmatprep.subr.mxu0 0.0
  %3521 = vmatpush1.msra.mxu0 0.0
  %3522 = vmatprep.subr.mxu0 0.0
  %3523 = vmatpush1.msra.mxu0 0.0
  %3524 = vmatprep.subr.mxu0 0.0
  %3525 = vmatpush1.msra.mxu0 0.0
  %3526 = vmatprep.subr.mxu0 0.0
  %3527 = vmatpush1.msra.mxu0 0.0
  %3528 = vmatprep.subr.mxu0 0.0
  %3529 = vmatpush1.msra.mxu0 0.0
  %3530 = vmatprep.subr.mxu0 0.0
  %3531 = vmatpush1.msra.mxu0 0.0
  %3532 = vmatprep.subr.mxu0 0.0
  %3533 = vmatpush1.msra.mxu0 0.0
  %3534 = vmatprep.subr.mxu0 0.0
  %3535 = vmatpush1.msra.mxu0 0.0
  %3536 = vmatprep.subr.mxu0 0.0
  %3537 = vmatpush1.msra.mxu0 0.0
  %3538 = vmatprep.subr.mxu0 0.0
  %3539 = vmatpush1.msra.mxu0 0.0
  %3540 = vmatprep.subr.mxu0 0.0
  %3541 = vmatpush1.msra.mxu0 0.0
  %3542 = vmatprep.subr.mxu0 0.0
  %3543 = vmatpush1.msra.mxu0 0.0
  %3544 = vmatprep.mubr.f32.mxu0 0.0
  %3545 = vmatmul.mubr.f32.gmra.mrb[0].mxu0 %v3478
  %v3546 = vpop.f32.mrb[0].mxu0
  %v3547 = vadd.f32 0.0, %v3546
  %v3548 = vpop.f32.mrb[0].mxu0
  %3549 = vdwg.mxu0
  %v3550 = vadd.f32 %v3472, %v3547
  %v3551 = vxor.u32 %v3550, 2147483648
  %v3552 = vmul.f32 %v3551, 1.442695
  %v3553 = vpow.pop %v3552
  %v3554 = vadd.f32 %v3553, 1.0
  %v3555 = vrcp.pop %v3554
  %v3556 = vmul.f32 1.0, %v3555
  %v3557 = vtanh.pop %v3550
  %v3558 = vmul.f32 %v3556, %v3121
  %3560 = vrot.lane.b32.xlu0 %v3557, 32
  %v3561 = vpop.permute.xlu0 %3560
  %v3563 = vmul.f32 %v3556, %v3561
  %3565 = vrot.lane.b32.xlu0 %v3563, 32
  %v3566 = vpop.permute.xlu0 %3565
  %v3568 = vadd.f32 %v3558, %v3566
  %v3569 = vtanh.pop %v3568
  %3571 = vrot.lane.b32.xlu0 %v3569, 32
  %v3572 = vpop.permute.xlu0 %3571
  %v3574 = vmul.f32 %v3556, %v3572
  %3576 = vrot.lane.b32.xlu0 %v3574, 64
  %v3577 = vpop.permute.xlu0 %3576
  %3579 = vst.msk [vmem:[#allocation3 + $0x30] sm:$0xff] %vm175, %v3577
  %v3580 = vld [vmem:[%s0 + $0x68] sm:$0xff]
  %vm3581 = vcmp.gt.f32.partialorder %v3580, 0.0
  %v3582 = vsel %vm3581, 1, 0
  %3583 = vset.pattern.permute.xlu0 2
  %3584 = vperm.xlu0 %3583, %v3582
  %v3585 = vpop.permute.xlu0 %3584
  %vm3586 = vcmp.eq.s32.totalorder %v3585, 1
  %v3587 = vsel %vm3586, %v3574, %v3120
  %v3588 = vsel %vm3586, %v3568, %v3121
  %v3589 = vld [vmem:[%s1] sm:$0xff]
  %v3590 = vld [vmem:[%s1 + $0x8] sm:$0xff]
  %v3591 = vld [vmem:[%s1 + $0x10] sm:$0xff]
  %v3592 = vld [vmem:[%s1 + $0x18] sm:$0xff]
  %v3593 = vld [vmem:[%s1 + $0x20] sm:$0xff]
  %v3594 = vld [vmem:[%s1 + $0x28] sm:$0xff]
  %v3595 = vld [vmem:[%s1 + $0x30] sm:$0xff]
  %v3596 = vld [vmem:[%s1 + $0x38] sm:$0xff]
  %v3597 = vld [vmem:[%s1 + $0x40] sm:$0xff]
  %v3598 = vld [vmem:[%s1 + $0x48] sm:$0xff]
  %v3599 = vld [vmem:[%s1 + $0x50] sm:$0xff]
  %v3600 = vld [vmem:[%s1 + $0x58] sm:$0xff]
  %v3601 = vld [vmem:[%s1 + $0x60] sm:$0xff]
  %v3602 = vld [vmem:[%s1 + $0x68] sm:$0xff]
  %v3603 = vld [vmem:[%s1 + $0x70] sm:$0xff]
  %v3604 = vld [vmem:[%s1 + $0x78] sm:$0xff]
  %v3605 = vld [vmem:[%s1 + $0x80] sm:$0xff]
  %v3606 = vld [vmem:[%s1 + $0x88] sm:$0xff]
  %v3607 = vld [vmem:[%s1 + $0x90] sm:$0xff]
  %v3608 = vld [vmem:[%s1 + $0x98] sm:$0xff]
  %3610 = vrot.lane.b32.xlu0 %v3587, 64
  %v3611 = vpop.permute.xlu0 %3610
  %v3612 = vsel %vm175, %v3611, 0
  %3614 = vmatprep.subr.mxu0 %v3590
  %3615 = vmatpush1.msra.mxu0 %v3589
  %3616 = vmatprep.subr.mxu0 %v3595
  %3617 = vmatpush1.msra.mxu0 %v3594
  %3618 = vmatprep.subr.mxu0 %v3600
  %3619 = vmatpush1.msra.mxu0 %v3599
  %3620 = vmatprep.subr.mxu0 %v3605
  %3621 = vmatpush1.msra.mxu0 %v3604
  %3622 = vmatprep.subr.mxu0 0.0
  %3623 = vmatpush1.msra.mxu0 0.0
  %3624 = vmatprep.subr.mxu0 0.0
  %3625 = vmatpush1.msra.mxu0 0.0
  %3626 = vmatprep.subr.mxu0 0.0
  %3627 = vmatpush1.msra.mxu0 0.0
  %3628 = vmatprep.subr.mxu0 0.0
  %3629 = vmatpush1.msra.mxu0 0.0
  %3630 = vmatprep.subr.mxu0 0.0
  %3631 = vmatpush1.msra.mxu0 0.0
  %3632 = vmatprep.subr.mxu0 0.0
  %3633 = vmatpush1.msra.mxu0 0.0
  %3634 = vmatprep.subr.mxu0 0.0
  %3635 = vmatpush1.msra.mxu0 0.0
  %3636 = vmatprep.subr.mxu0 0.0
  %3637 = vmatpush1.msra.mxu0 0.0
  %3638 = vmatprep.subr.mxu0 0.0
  %3639 = vmatpush1.msra.mxu0 0.0
  %3640 = vmatprep.subr.mxu0 0.0
  %3641 = vmatpush1.msra.mxu0 0.0
  %3642 = vmatprep.subr.mxu0 0.0
  %3643 = vmatpush1.msra.mxu0 0.0
  %3644 = vmatprep.subr.mxu0 0.0
  %3645 = vmatpush1.msra.mxu0 0.0
  %3646 = vmatprep.subr.mxu0 0.0
  %3647 = vmatpush1.msra.mxu0 0.0
  %3648 = vmatprep.subr.mxu0 0.0
  %3649 = vmatpush1.msra.mxu0 0.0
  %3650 = vmatprep.subr.mxu0 0.0
  %3651 = vmatpush1.msra.mxu0 0.0
  %3652 = vmatprep.subr.mxu0 0.0
  %3653 = vmatpush1.msra.mxu0 0.0
  %3654 = vmatprep.subr.mxu0 0.0
  %3655 = vmatpush1.msra.mxu0 0.0
  %3656 = vmatprep.subr.mxu0 0.0
  %3657 = vmatpush1.msra.mxu0 0.0
  %3658 = vmatprep.subr.mxu0 0.0
  %3659 = vmatpush1.msra.mxu0 0.0
  %3660 = vmatprep.subr.mxu0 0.0
  %3661 = vmatpush1.msra.mxu0 0.0
  %3662 = vmatprep.subr.mxu0 0.0
  %3663 = vmatpush1.msra.mxu0 0.0
  %3664 = vmatprep.subr.mxu0 0.0
  %3665 = vmatpush1.msra.mxu0 0.0
  %3666 = vmatprep.subr.mxu0 0.0
  %3667 = vmatpush1.msra.mxu0 0.0
  %3668 = vmatprep.subr.mxu0 0.0
  %3669 = vmatpush1.msra.mxu0 0.0
  %3670 = vmatprep.subr.mxu0 0.0
  %3671 = vmatpush1.msra.mxu0 0.0
  %3672 = vmatprep.subr.mxu0 0.0
  %3673 = vmatpush1.msra.mxu0 0.0
  %3674 = vmatprep.subr.mxu0 0.0
  %3675 = vmatpush1.msra.mxu0 0.0
  %3676 = vmatprep.subr.mxu0 0.0
  %3677 = vmatpush1.msra.mxu0 0.0
  %3678 = vmatprep.mubr.f32.mxu0 0.0
  %3679 = vmatmul.mubr.f32.gmra.mrb[0].mxu0 %v3612
  %v3680 = vpop.f32.mrb[0].mxu0
  %v3681 = vadd.f32 0.0, %v3680
  %v3682 = vpop.f32.mrb[0].mxu0
  %v3683 = vadd.f32 0.0, %v3682
  %3684 = vdwg.mxu0
  %3685 = vmatprep.subr.mxu0 %v3592
  %3686 = vmatpush1.msra.mxu0 %v3591
  %3687 = vmatprep.subr.mxu0 %v3597
  %3688 = vmatpush1.msra.mxu0 %v3596
  %3689 = vmatprep.subr.mxu0 %v3602
  %3690 = vmatpush1.msra.mxu0 %v3601
  %3691 = vmatprep.subr.mxu0 %v3607
  %3692 = vmatpush1.msra.mxu0 %v3606
  %3693 = vmatprep.subr.mxu0 0.0
  %3694 = vmatpush1.msra.mxu0 0.0
  %3695 = vmatprep.subr.mxu0 0.0
  %3696 = vmatpush1.msra.mxu0 0.0
  %3697 = vmatprep.subr.mxu0 0.0
  %3698 = vmatpush1.msra.mxu0 0.0
  %3699 = vmatprep.subr.mxu0 0.0
  %3700 = vmatpush1.msra.mxu0 0.0
  %3701 = vmatprep.subr.mxu0 0.0
  %3702 = vmatpush1.msra.mxu0 0.0
  %3703 = vmatprep.subr.mxu0 0.0
  %3704 = vmatpush1.msra.mxu0 0.0
  %3705 = vmatprep.subr.mxu0 0.0
  %3706 = vmatpush1.msra.mxu0 0.0
  %3707 = vmatprep.subr.mxu0 0.0
  %3708 = vmatpush1.msra.mxu0 0.0
  %3709 = vmatprep.subr.mxu0 0.0
  %3710 = vmatpush1.msra.mxu0 0.0
  %3711 = vmatprep.subr.mxu0 0.0
  %3712 = vmatpush1.msra.mxu0 0.0
  %3713 = vmatprep.subr.mxu0 0.0
  %3714 = vmatpush1.msra.mxu0 0.0
  %3715 = vmatprep.subr.mxu0 0.0
  %3716 = vmatpush1.msra.mxu0 0.0
  %3717 = vmatprep.subr.mxu0 0.0
  %3718 = vmatpush1.msra.mxu0 0.0
  %3719 = vmatprep.subr.mxu0 0.0
  %3720 = vmatpush1.msra.mxu0 0.0
  %3721 = vmatprep.subr.mxu0 0.0
  %3722 = vmatpush1.msra.mxu0 0.0
  %3723 = vmatprep.subr.mxu0 0.0
  %3724 = vmatpush1.msra.mxu0 0.0
  %3725 = vmatprep.subr.mxu0 0.0
  %3726 = vmatpush1.msra.mxu0 0.0
  %3727 = vmatprep.subr.mxu0 0.0
  %3728 = vmatpush1.msra.mxu0 0.0
  %3729 = vmatprep.subr.mxu0 0.0
  %3730 = vmatpush1.msra.mxu0 0.0
  %3731 = vmatprep.subr.mxu0 0.0
  %3732 = vmatpush1.msra.mxu0 0.0
  %3733 = vmatprep.subr.mxu0 0.0
  %3734 = vmatpush1.msra.mxu0 0.0
  %3735 = vmatprep.subr.mxu0 0.0
  %3736 = vmatpush1.msra.mxu0 0.0
  %3737 = vmatprep.subr.mxu0 0.0
  %3738 = vmatpush1.msra.mxu0 0.0
  %3739 = vmatprep.subr.mxu0 0.0
  %3740 = vmatpush1.msra.mxu0 0.0
  %3741 = vmatprep.subr.mxu0 0.0
  %3742 = vmatpush1.msra.mxu0 0.0
  %3743 = vmatprep.subr.mxu0 0.0
  %3744 = vmatpush1.msra.mxu0 0.0
  %3745 = vmatprep.subr.mxu0 0.0
  %3746 = vmatpush1.msra.mxu0 0.0
  %3747 = vmatprep.subr.mxu0 0.0
  %3748 = vmatpush1.msra.mxu0 0.0
  %3749 = vmatprep.mubr.f32.mxu0 0.0
  %3750 = vmatmul.mubr.f32.gmra.mrb[0].mxu0 %v3612
  %v3751 = vpop.f32.mrb[0].mxu0
  %v3752 = vadd.f32 0.0, %v3751
  %v3753 = vpop.f32.mrb[0].mxu0
  %v3754 = vadd.f32 0.0, %v3753
  %3755 = vdwg.mxu0
  %3756 = vmatprep.subr.mxu0 0.0
  %3757 = vmatpush1.msra.mxu0 %v3593
  %3758 = vmatprep.subr.mxu0 0.0
  %3759 = vmatpush1.msra.mxu0 %v3598
  %3760 = vmatprep.subr.mxu0 0.0
  %3761 = vmatpush1.msra.mxu0 %v3603
  %3762 = vmatprep.subr.mxu0 0.0
  %3763 = vmatpush1.msra.mxu0 %v3608
  %3764 = vmatprep.subr.mxu0 0.0
  %3765 = vmatpush1.msra.mxu0 0.0
  %3766 = vmatprep.subr.mxu0 0.0
  %3767 = vmatpush1.msra.mxu0 0.0
  %3768 = vmatprep.subr.mxu0 0.0
  %3769 = vmatpush1.msra.mxu0 0.0
  %3770 = vmatprep.subr.mxu0 0.0
  %3771 = vmatpush1.msra.mxu0 0.0
  %3772 = vmatprep.subr.mxu0 0.0
  %3773 = vmatpush1.msra.mxu0 0.0
  %3774 = vmatprep.subr.mxu0 0.0
  %3775 = vmatpush1.msra.mxu0 0.0
  %3776 = vmatprep.subr.mxu0 0.0
  %3777 = vmatpush1.msra.mxu0 0.0
  %3778 = vmatprep.subr.mxu0 0.0
  %3779 = vmatpush1.msra.mxu0 0.0
  %3780 = vmatprep.subr.mxu0 0.0
  %3781 = vmatpush1.msra.mxu0 0.0
  %3782 = vmatprep.subr.mxu0 0.0
  %3783 = vmatpush1.msra.mxu0 0.0
  %3784 = vmatprep.subr.mxu0 0.0
  %3785 = vmatpush1.msra.mxu0 0.0
  %3786 = vmatprep.subr.mxu0 0.0
  %3787 = vmatpush1.msra.mxu0 0.0
  %3788 = vmatprep.subr.mxu0 0.0
  %3789 = vmatpush1.msra.mxu0 0.0
  %3790 = vmatprep.subr.mxu0 0.0
  %3791 = vmatpush1.msra.mxu0 0.0
  %3792 = vmatprep.subr.mxu0 0.0
  %3793 = vmatpush1.msra.mxu0 0.0
  %3794 = vmatprep.subr.mxu0 0.0
  %3795 = vmatpush1.msra.mxu0 0.0
  %3796 = vmatprep.subr.mxu0 0.0
  %3797 = vmatpush1.msra.mxu0 0.0
  %3798 = vmatprep.subr.mxu0 0.0
  %3799 = vmatpush1.msra.mxu0 0.0
  %3800 = vmatprep.subr.mxu0 0.0
  %3801 = vmatpush1.msra.mxu0 0.0
  %3802 = vmatprep.subr.mxu0 0.0
  %3803 = vmatpush1.msra.mxu0 0.0
  %3804 = vmatprep.subr.mxu0 0.0
  %3805 = vmatpush1.msra.mxu0 0.0
  %3806 = vmatprep.subr.mxu0 0.0
  %3807 = vmatpush1.msra.mxu0 0.0
  %3808 = vmatprep.subr.mxu0 0.0
  %3809 = vmatpush1.msra.mxu0 0.0
  %3810 = vmatprep.subr.mxu0 0.0
  %3811 = vmatpush1.msra.mxu0 0.0
  %3812 = vmatprep.subr.mxu0 0.0
  %3813 = vmatpush1.msra.mxu0 0.0
  %3814 = vmatprep.subr.mxu0 0.0
  %3815 = vmatpush1.msra.mxu0 0.0
  %3816 = vmatprep.subr.mxu0 0.0
  %3817 = vmatpush1.msra.mxu0 0.0
  %3818 = vmatprep.subr.mxu0 0.0
  %3819 = vmatpush1.msra.mxu0 0.0
  %3820 = vmatprep.mubr.f32.mxu0 0.0
  %3821 = vmatmul.mubr.f32.gmra.mrb[0].mxu0 %v3612
  %v3822 = vpop.f32.mrb[0].mxu0
  %v3823 = vadd.f32 0.0, %v3822
  %v3824 = vpop.f32.mrb[0].mxu0
  %3825 = vdwg.mxu0
  %3827 = vrot.lane.b32.xlu0 %v3681, 96
  %v3828 = vpop.permute.xlu0 %3827
  %3830 = vrot.lane.b32.xlu0 %v3681, 64
  %v3831 = vpop.permute.xlu0 %3830
  %3833 = vrot.lane.b32.xlu0 %v3681, 32
  %v3834 = vpop.permute.xlu0 %3833
  %3837 = vrot.lane.b32.xlu0 %v3683, 96
  %v3838 = vpop.permute.xlu0 %3837
  %3840 = vrot.lane.b32.xlu0 %v3683, 64
  %v3841 = vpop.permute.xlu0 %3840
  %3843 = vrot.lane.b32.xlu0 %v3683, 32
  %v3844 = vpop.permute.xlu0 %3843
  %3847 = vrot.lane.b32.xlu0 %v3752, 96
  %v3848 = vpop.permute.xlu0 %3847
  %3850 = vrot.lane.b32.xlu0 %v3752, 64
  %v3851 = vpop.permute.xlu0 %3850
  %3853 = vrot.lane.b32.xlu0 %v3752, 32
  %v3854 = vpop.permute.xlu0 %3853
  %3857 = vrot.lane.b32.xlu0 %v3754, 96
  %v3858 = vpop.permute.xlu0 %3857
  %3860 = vrot.lane.b32.xlu0 %v3754, 64
  %v3861 = vpop.permute.xlu0 %3860
  %3863 = vrot.lane.b32.xlu0 %v3754, 32
  %v3864 = vpop.permute.xlu0 %3863
  %v3866 = vld [vmem:[%s0 + $0x70] sm:$0xff]
  %3867 = vmatprep.subr.mxu0 0.0
  %3868 = vmatpush1.msra.mxu0 %v3681
  %3869 = vmatprep.subr.mxu0 0.0
  %3870 = vmatpush1.msra.mxu0 %v3828
  %3871 = vmatprep.subr.mxu0 0.0
  %3872 = vmatpush1.msra.mxu0 %v3831
  %3873 = vmatprep.subr.mxu0 0.0
  %3874 = vmatpush1.msra.mxu0 %v3834
  %3875 = vmatprep.subr.mxu0 0.0
  %3876 = vmatpush1.msra.mxu0 %v3683
  %3877 = vmatprep.subr.mxu0 0.0
  %3878 = vmatpush1.msra.mxu0 %v3838
  %3879 = vmatprep.subr.mxu0 0.0
  %3880 = vmatpush1.msra.mxu0 %v3841
  %3881 = vmatprep.subr.mxu0 0.0
  %3882 = vmatpush1.msra.mxu0 %v3844
  %3883 = vmatprep.subr.mxu0 0.0
  %3884 = vmatpush1.msra.mxu0 %v3752
  %3885 = vmatprep.subr.mxu0 0.0
  %3886 = vmatpush1.msra.mxu0 %v3848
  %3887 = vmatprep.subr.mxu0 0.0
  %3888 = vmatpush1.msra.mxu0 %v3851
  %3889 = vmatprep.subr.mxu0 0.0
  %3890 = vmatpush1.msra.mxu0 %v3854
  %3891 = vmatprep.subr.mxu0 0.0
  %3892 = vmatpush1.msra.mxu0 %v3754
  %3893 = vmatprep.subr.mxu0 0.0
  %3894 = vmatpush1.msra.mxu0 %v3858
  %3895 = vmatprep.subr.mxu0 0.0
  %3896 = vmatpush1.msra.mxu0 %v3861
  %3897 = vmatprep.subr.mxu0 0.0
  %3898 = vmatpush1.msra.mxu0 %v3864
  %3899 = vmatprep.subr.mxu0 0.0
  %3900 = vmatpush1.msra.mxu0 0.0
  %3901 = vmatprep.subr.mxu0 0.0
  %3902 = vmatpush1.msra.mxu0 0.0
  %3903 = vmatprep.subr.mxu0 0.0
  %3904 = vmatpush1.msra.mxu0 0.0
  %3905 = vmatprep.subr.mxu0 0.0
  %3906 = vmatpush1.msra.mxu0 0.0
  %3907 = vmatprep.subr.mxu0 0.0
  %3908 = vmatpush1.msra.mxu0 0.0
  %3909 = vmatprep.subr.mxu0 0.0
  %3910 = vmatpush1.msra.mxu0 0.0
  %3911 = vmatprep.subr.mxu0 0.0
  %3912 = vmatpush1.msra.mxu0 0.0
  %3913 = vmatprep.subr.mxu0 0.0
  %3914 = vmatpush1.msra.mxu0 0.0
  %3915 = vmatprep.subr.mxu0 0.0
  %3916 = vmatpush1.msra.mxu0 0.0
  %3917 = vmatprep.subr.mxu0 0.0
  %3918 = vmatpush1.msra.mxu0 0.0
  %3919 = vmatprep.subr.mxu0 0.0
  %3920 = vmatpush1.msra.mxu0 0.0
  %3921 = vmatprep.subr.mxu0 0.0
  %3922 = vmatpush1.msra.mxu0 0.0
  %3923 = vmatprep.subr.mxu0 0.0
  %3924 = vmatpush1.msra.mxu0 0.0
  %3925 = vmatprep.subr.mxu0 0.0
  %3926 = vmatpush1.msra.mxu0 0.0
  %3927 = vmatprep.subr.mxu0 0.0
  %3928 = vmatpush1.msra.mxu0 0.0
  %3929 = vmatprep.subr.mxu0 0.0
  %3930 = vmatpush1.msra.mxu0 0.0
  %3931 = vmatprep.mubr.f32.mxu0 0.0
  %3932 = vmatmul.mubr.f32.gmra.mrb[0].mxu0 %v3866
  %v3933 = vpop.f32.mrb[0].mxu0
  %v3934 = vadd.f32 %v18, %v3933
  %v3935 = vpop.f32.mrb[0].mxu0
  %3936 = vdwg.mxu0
  %v3937 = vmax.f32 %v3934, 0.0
  %v3938 = vld [vmem:[#allocation2 + $0x38] sm:$0xff]
  %v3939 = vadd.f32 %v3938, %v3823
  %v3940 = vld [vmem:[%s1 + $0xa0] sm:$0xff]
  %v3941 = vld [vmem:[%s1 + $0xc8] sm:$0xff]
  %v3942 = vld [vmem:[%s1 + $0xf0] sm:$0xff]
  %v3943 = vld [vmem:[%s1 + $0x118] sm:$0xff]
  %v3945 = vsel %vm175, %v3937, 0
  %3947 = vmatprep.subr.mxu0 0.0
  %3948 = vmatpush1.msra.mxu0 %v3940
  %3949 = vmatprep.subr.mxu0 0.0
  %3950 = vmatpush1.msra.mxu0 %v3941
  %3951 = vmatprep.subr.mxu0 0.0
  %3952 = vmatpush1.msra.mxu0 %v3942
  %3953 = vmatprep.subr.mxu0 0.0
  %3954 = vmatpush1.msra.mxu0 %v3943
  %3955 = vmatprep.subr.mxu0 0.0
  %3956 = vmatpush1.msra.mxu0 0.0
  %3957 = vmatprep.subr.mxu0 0.0
  %3958 = vmatpush1.msra.mxu0 0.0
  %3959 = vmatprep.subr.mxu0 0.0
  %3960 = vmatpush1.msra.mxu0 0.0
  %3961 = vmatprep.subr.mxu0 0.0
  %3962 = vmatpush1.msra.mxu0 0.0
  %3963 = vmatprep.subr.mxu0 0.0
  %3964 = vmatpush1.msra.mxu0 0.0
  %3965 = vmatprep.subr.mxu0 0.0
  %3966 = vmatpush1.msra.mxu0 0.0
  %3967 = vmatprep.subr.mxu0 0.0
  %3968 = vmatpush1.msra.mxu0 0.0
  %3969 = vmatprep.subr.mxu0 0.0
  %3970 = vmatpush1.msra.mxu0 0.0
  %3971 = vmatprep.subr.mxu0 0.0
  %3972 = vmatpush1.msra.mxu0 0.0
  %3973 = vmatprep.subr.mxu0 0.0
  %3974 = vmatpush1.msra.mxu0 0.0
  %3975 = vmatprep.subr.mxu0 0.0
  %3976 = vmatpush1.msra.mxu0 0.0
  %3977 = vmatprep.subr.mxu0 0.0
  %3978 = vmatpush1.msra.mxu0 0.0
  %3979 = vmatprep.subr.mxu0 0.0
  %3980 = vmatpush1.msra.mxu0 0.0
  %3981 = vmatprep.subr.mxu0 0.0
  %3982 = vmatpush1.msra.mxu0 0.0
  %3983 = vmatprep.subr.mxu0 0.0
  %3984 = vmatpush1.msra.mxu0 0.0
  %3985 = vmatprep.subr.mxu0 0.0
  %3986 = vmatpush1.msra.mxu0 0.0
  %3987 = vmatprep.subr.mxu0 0.0
  %3988 = vmatpush1.msra.mxu0 0.0
  %3989 = vmatprep.subr.mxu0 0.0
  %3990 = vmatpush1.msra.mxu0 0.0
  %3991 = vmatprep.subr.mxu0 0.0
  %3992 = vmatpush1.msra.mxu0 0.0
  %3993 = vmatprep.subr.mxu0 0.0
  %3994 = vmatpush1.msra.mxu0 0.0
  %3995 = vmatprep.subr.mxu0 0.0
  %3996 = vmatpush1.msra.mxu0 0.0
  %3997 = vmatprep.subr.mxu0 0.0
  %3998 = vmatpush1.msra.mxu0 0.0
  %3999 = vmatprep.subr.mxu0 0.0
  %4000 = vmatpush1.msra.mxu0 0.0
  %4001 = vmatprep.subr.mxu0 0.0
  %4002 = vmatpush1.msra.mxu0 0.0
  %4003 = vmatprep.subr.mxu0 0.0
  %4004 = vmatpush1.msra.mxu0 0.0
  %4005 = vmatprep.subr.mxu0 0.0
  %4006 = vmatpush1.msra.mxu0 0.0
  %4007 = vmatprep.subr.mxu0 0.0
  %4008 = vmatpush1.msra.mxu0 0.0
  %4009 = vmatprep.subr.mxu0 0.0
  %4010 = vmatpush1.msra.mxu0 0.0
  %4011 = vmatprep.mubr.f32.mxu0 0.0
  %4012 = vmatmul.mubr.f32.gmra.mrb[0].mxu0 %v3945
  %v4013 = vpop.f32.mrb[0].mxu0
  %v4014 = vadd.f32 0.0, %v4013
  %v4015 = vpop.f32.mrb[0].mxu0
  %4016 = vdwg.mxu0
  %v4017 = vadd.f32 %v3939, %v4014
  %v4018 = vxor.u32 %v4017, 2147483648
  %v4019 = vmul.f32 %v4018, 1.442695
  %v4020 = vpow.pop %v4019
  %v4021 = vadd.f32 %v4020, 1.0
  %v4022 = vrcp.pop %v4021
  %v4023 = vmul.f32 1.0, %v4022
  %v4024 = vtanh.pop %v4017
  %v4025 = vmul.f32 %v4023, %v3588
  %4027 = vrot.lane.b32.xlu0 %v4024, 32
  %v4028 = vpop.permute.xlu0 %4027
  %v4030 = vmul.f32 %v4023, %v4028
  %4032 = vrot.lane.b32.xlu0 %v4030, 32
  %v4033 = vpop.permute.xlu0 %4032
  %v4035 = vadd.f32 %v4025, %v4033
  %v4036 = vtanh.pop %v4035
  %4038 = vrot.lane.b32.xlu0 %v4036, 32
  %v4039 = vpop.permute.xlu0 %4038
  %v4041 = vmul.f32 %v4023, %v4039
  %4043 = vrot.lane.b32.xlu0 %v4041, 64
  %v4044 = vpop.permute.xlu0 %4043
  %4046 = vst.msk [vmem:[#allocation3 + $0x38] sm:$0xff] %vm175, %v4044
  %v4047 = vld [vmem:[%s0 + $0x78] sm:$0xff]
  %vm4048 = vcmp.gt.f32.partialorder %v4047, 0.0
  %v4049 = vsel %vm4048, 1, 0
  %4050 = vset.pattern.permute.xlu0 2
  %4051 = vperm.xlu0 %4050, %v4049
  %v4052 = vpop.permute.xlu0 %4051
  %vm4053 = vcmp.eq.s32.totalorder %v4052, 1
  %v4054 = vsel %vm4053, %v4041, %v3587
  %v4055 = vsel %vm4053, %v4035, %v3588
  %v4056 = vld [vmem:[%s1 + $0xb0] sm:$0xff]
  %v4057 = vld [vmem:[%s1 + $0xd8] sm:$0xff]
  %v4058 = vld [vmem:[%s1 + $0x100] sm:$0xff]
  %v4059 = vld [vmem:[%s1 + $0x128] sm:$0xff]
  %v4060 = vld [vmem:[%s1 + $0x141] ss:$0 sm:$0xff]
  %v4061 = vld [vmem:[#allocation3] sm:$0xff]
  %v4062 = vld [vmem:[#allocation3 + $0x8] sm:$0xff]
  %v4063 = vld [vmem:[#allocation3 + $0x10] sm:$0xff]
  %v4064 = vld [vmem:[#allocation3 + $0x18] sm:$0xff]
  %v4065 = vld [vmem:[#allocation3 + $0x20] sm:$0xff]
  %v4066 = vld [vmem:[#allocation3 + $0x28] sm:$0xff]
  %v4067 = vld [vmem:[#allocation3 + $0x30] sm:$0xff]
  %v4068 = vld [vmem:[#allocation3 + $0x38] sm:$0xff]
  %v4070 = vsel %vm175, %v4061, 0
  %v4073 = vsel %vm175, %v4062, 0
  %v4076 = vsel %vm175, %v4063, 0
  %v4079 = vsel %vm175, %v4064, 0
  %v4082 = vsel %vm175, %v4065, 0
  %v4085 = vsel %vm175, %v4066, 0
  %v4088 = vsel %vm175, %v4067, 0
  %v4091 = vsel %vm175, %v4068, 0
  %4093 = vmatprep.subr.mxu0 0.0
  %4094 = vmatpush1.msra.mxu0 %v4056
  %4095 = vmatprep.subr.mxu0 0.0
  %4096 = vmatpush1.msra.mxu0 %v4057
  %4097 = vmatprep.subr.mxu0 0.0
  %4098 = vmatpush1.msra.mxu0 %v4058
  %4099 = vmatprep.subr.mxu0 0.0
  %4100 = vmatpush1.msra.mxu0 %v4059
  %4101 = vmatprep.subr.mxu0 0.0
  %4102 = vmatpush1.msra.mxu0 0.0
  %4103 = vmatprep.subr.mxu0 0.0
  %4104 = vmatpush1.msra.mxu0 0.0
  %4105 = vmatprep.subr.mxu0 0.0
  %4106 = vmatpush1.msra.mxu0 0.0
  %4107 = vmatprep.subr.mxu0 0.0
  %4108 = vmatpush1.msra.mxu0 0.0
  %4109 = vmatprep.subr.mxu0 0.0
  %4110 = vmatpush1.msra.mxu0 0.0
  %4111 = vmatprep.subr.mxu0 0.0
  %4112 = vmatpush1.msra.mxu0 0.0
  %4113 = vmatprep.subr.mxu0 0.0
  %4114 = vmatpush1.msra.mxu0 0.0
  %4115 = vmatprep.subr.mxu0 0.0
  %4116 = vmatpush1.msra.mxu0 0.0
  %4117 = vmatprep.subr.mxu0 0.0
  %4118 = vmatpush1.msra.mxu0 0.0
  %4119 = vmatprep.subr.mxu0 0.0
  %4120 = vmatpush1.msra.mxu0 0.0
  %4121 = vmatprep.subr.mxu0 0.0
  %4122 = vmatpush1.msra.mxu0 0.0
  %4123 = vmatprep.subr.mxu0 0.0
  %4124 = vmatpush1.msra.mxu0 0.0
  %4125 = vmatprep.subr.mxu0 0.0
  %4126 = vmatpush1.msra.mxu0 0.0
  %4127 = vmatprep.subr.mxu0 0.0
  %4128 = vmatpush1.msra.mxu0 0.0
  %4129 = vmatprep.subr.mxu0 0.0
  %4130 = vmatpush1.msra.mxu0 0.0
  %4131 = vmatprep.subr.mxu0 0.0
  %4132 = vmatpush1.msra.mxu0 0.0
  %4133 = vmatprep.subr.mxu0 0.0
  %4134 = vmatpush1.msra.mxu0 0.0
  %4135 = vmatprep.subr.mxu0 0.0
  %4136 = vmatpush1.msra.mxu0 0.0
  %4137 = vmatprep.subr.mxu0 0.0
  %4138 = vmatpush1.msra.mxu0 0.0
  %4139 = vmatprep.subr.mxu0 0.0
  %4140 = vmatpush1.msra.mxu0 0.0
  %4141 = vmatprep.subr.mxu0 0.0
  %4142 = vmatpush1.msra.mxu0 0.0
  %4143 = vmatprep.subr.mxu0 0.0
  %4144 = vmatpush1.msra.mxu0 0.0
  %4145 = vmatprep.subr.mxu0 0.0
  %4146 = vmatpush1.msra.mxu0 0.0
  %4147 = vmatprep.subr.mxu0 0.0
  %4148 = vmatpush1.msra.mxu0 0.0
  %4149 = vmatprep.subr.mxu0 0.0
  %4150 = vmatpush1.msra.mxu0 0.0
  %4151 = vmatprep.subr.mxu0 0.0
  %4152 = vmatpush1.msra.mxu0 0.0
  %4153 = vmatprep.subr.mxu0 0.0
  %4154 = vmatpush1.msra.mxu0 0.0
  %4155 = vmatprep.subr.mxu0 0.0
  %4156 = vmatpush1.msra.mxu0 0.0
  %4157 = vmatprep.mubr.f32.mxu0 0.0
  %4158 = vmatmul.mubr.f32.gmra.mrb[0].mxu0 %v4070
  %v4159 = vpop.f32.mrb[0].mxu0
  %v4160 = vadd.f32 %v4060, %v4159
  %v4161 = vpop.f32.mrb[0].mxu0
  %4162 = vmatprep.mubr.f32.mxu0 0.0
  %4163 = vmatmul.mubr.f32.gmra.mrb[0].mxu0 %v4073
  %v4164 = vpop.f32.mrb[0].mxu0
  %v4165 = vadd.f32 %v4060, %v4164
  %v4166 = vpop.f32.mrb[0].mxu0
  %4167 = vmatprep.mubr.f32.mxu0 0.0
  %4168 = vmatmul.mubr.f32.gmra.mrb[0].mxu0 %v4076
  %v4169 = vpop.f32.mrb[0].mxu0
  %v4170 = vadd.f32 %v4060, %v4169
  %v4171 = vpop.f32.mrb[0].mxu0
  %4172 = vmatprep.mubr.f32.mxu0 0.0
  %4173 = vmatmul.mubr.f32.gmra.mrb[0].mxu0 %v4079
  %v4174 = vpop.f32.mrb[0].mxu0
  %v4175 = vadd.f32 %v4060, %v4174
  %v4176 = vpop.f32.mrb[0].mxu0
  %4177 = vmatprep.mubr.f32.mxu0 0.0
  %4178 = vmatmul.mubr.f32.gmra.mrb[0].mxu0 %v4082
  %v4179 = vpop.f32.mrb[0].mxu0
  %v4180 = vadd.f32 %v4060, %v4179
  %v4181 = vpop.f32.mrb[0].mxu0
  %4182 = vmatprep.mubr.f32.mxu0 0.0
  %4183 = vmatmul.mubr.f32.gmra.mrb[0].mxu0 %v4085
  %v4184 = vpop.f32.mrb[0].mxu0
  %v4185 = vadd.f32 %v4060, %v4184
  %v4186 = vpop.f32.mrb[0].mxu0
  %4187 = vmatprep.mubr.f32.mxu0 0.0
  %4188 = vmatmul.mubr.f32.gmra.mrb[0].mxu0 %v4088
  %v4189 = vpop.f32.mrb[0].mxu0
  %v4190 = vadd.f32 %v4060, %v4189
  %v4191 = vpop.f32.mrb[0].mxu0
  %4192 = vmatprep.mubr.f32.mxu0 0.0
  %4193 = vmatmul.mubr.f32.gmra.mrb[0].mxu0 %v4091
  %v4194 = vpop.f32.mrb[0].mxu0
  %v4195 = vadd.f32 %v4060, %v4194
  %v4196 = vpop.f32.mrb[0].mxu0
  %4197 = vdwg.mxu0
  %v4198 = vld [vmem:[%s0 + $0x8] sm:$0xff]
  %v4199 = vld [vmem:[%s0 + $0x18] sm:$0xff]
  %v4200 = vld [vmem:[%s0 + $0x28] sm:$0xff]
  %v4201 = vld [vmem:[%s0 + $0x38] sm:$0xff]
  %v4202 = vld [vmem:[%s0 + $0x48] sm:$0xff]
  %v4203 = vld [vmem:[%s0 + $0x58] sm:$0xff]
  %v4204 = vld [vmem:[%s0 + $0x68] sm:$0xff]
  %vm4205 = vcmp.gt.f32.partialorder %v4198, 0.0
  %vm4206 = vcmp.gt.f32.partialorder %v4199, 0.0
  %vm4207 = vcmp.gt.f32.partialorder %v4200, 0.0
  %vm4208 = vcmp.gt.f32.partialorder %v4201, 0.0
  %vm4209 = vcmp.gt.f32.partialorder %v4202, 0.0
  %vm4210 = vcmp.gt.f32.partialorder %v4203, 0.0
  %vm4211 = vcmp.gt.f32.partialorder %v4204, 0.0
  %v4212 = vsel %vm4205, 1, 0
  %v4213 = vsel %vm4206, 1, 0
  %v4214 = vsel %vm4207, 1, 0
  %v4215 = vsel %vm4208, 1, 0
  %v4216 = vsel %vm4209, 1, 0
  %v4217 = vsel %vm4210, 1, 0
  %v4218 = vsel %vm4211, 1, 0
  %4219 = vset.pattern.permute.xlu0 2
  %4220 = vperm.xlu0 %4219, %v4212
  %v4221 = vpop.permute.xlu0 %4220
  %4222 = vset.pattern.permute.xlu0 2
  %4223 = vperm.xlu0 %4222, %v4213
  %v4224 = vpop.permute.xlu0 %4223
  %4225 = vset.pattern.permute.xlu0 2
  %4226 = vperm.xlu0 %4225, %v4214
  %v4227 = vpop.permute.xlu0 %4226
  %4228 = vset.pattern.permute.xlu0 2
  %4229 = vperm.xlu0 %4228, %v4215
  %v4230 = vpop.permute.xlu0 %4229
  %4231 = vset.pattern.permute.xlu0 2
  %4232 = vperm.xlu0 %4231, %v4216
  %v4233 = vpop.permute.xlu0 %4232
  %4234 = vset.pattern.permute.xlu0 2
  %4235 = vperm.xlu0 %4234, %v4217
  %v4236 = vpop.permute.xlu0 %4235
  %4237 = vset.pattern.permute.xlu0 2
  %4238 = vperm.xlu0 %4237, %v4218
  %v4239 = vpop.permute.xlu0 %4238
  %vm4240 = vcmp.eq.s32.totalorder %v4221, 1
  %vm4241 = vcmp.eq.s32.totalorder %v4224, 1
  %vm4242 = vcmp.eq.s32.totalorder %v4227, 1
  %vm4243 = vcmp.eq.s32.totalorder %v4230, 1
  %vm4244 = vcmp.eq.s32.totalorder %v4233, 1
  %vm4245 = vcmp.eq.s32.totalorder %v4236, 1
  %vm4246 = vcmp.eq.s32.totalorder %v4239, 1
  %v4247 = vsel %vm4240, %v4160, 0.0
  %v4248 = vsel %vm4241, %v4165, 0.0
  %v4249 = vsel %vm4242, %v4170, 0.0
  %v4250 = vsel %vm4243, %v4175, 0.0
  %v4251 = vsel %vm4244, %v4180, 0.0
  %v4252 = vsel %vm4245, %v4185, 0.0
  %v4253 = vsel %vm4246, %v4190, 0.0
  %v4254 = vsel %vm4053, %v4195, 0.0
  %4255 = vst [vmem:[%s3] sm:$0xff] %v4247
  %4256 = vst [vmem:[%s3 + $0x8] sm:$0xff] %v4248
  %4257 = vst [vmem:[%s3 + $0x10] sm:$0xff] %v4249
  %4258 = vst [vmem:[%s3 + $0x18] sm:$0xff] %v4250
  %4259 = vst [vmem:[%s3 + $0x20] sm:$0xff] %v4251
  %4260 = vst [vmem:[%s3 + $0x28] sm:$0xff] %v4252
  %4261 = vst [vmem:[%s3 + $0x30] sm:$0xff] %v4253
  %4262 = vst [vmem:[%s3 + $0x38] sm:$0xff] %v4254
  %4264 = vrot.lane.b32.xlu0 %v4054, 64
  %v4265 = vpop.permute.xlu0 %4264
  %4267 = vst.msk [vmem:[%s4] sm:$0xff] %vm175, %v4265
  %4269 = vrot.lane.b32.xlu0 %v4055, 96
  %v4270 = vpop.permute.xlu0 %4269
  %4272 = vst.msk [vmem:[%s4 + $0x8] sm:$0xff] %vm175, %v4270
  // Predicated region
  $region14: #{social_model_forward.1} parent=0 // pred_check
    _
  $region15: #{social_model_forward.1} parent=0 // pred_check_branch
    %4274 = sbr.rel (0) target = $region17
  $region16: #{social_model_forward.1} parent=0 // pred_region
    _
  $region17: #{social_model_forward.1} parent=0 // pred_fallthru
    _
  // Predicated region
  $region18: #{social_model_forward.1} parent=0 // pred_check
    _
  $region19: #{social_model_forward.1} parent=0 // pred_check_branch
    %4276 = sbr.rel (0) target = $region21
  $region20: #{social_model_forward.1} parent=0 // pred_region
    _
  $region21: #{social_model_forward.1} parent=0 // pred_fallthru
    _
  // Predicated region
  $region22: #{social_model_forward.1} parent=0 // pred_check
    _
  $region23: #{social_model_forward.1} parent=0 // pred_check_branch
    %4278 = sbr.rel (0) target = $region25
  $region24: #{social_model_forward.1} parent=0 // pred_region
    _
  $region25: #{social_model_forward.1} parent=0 // pred_fallthru
    _
  // Predicated region
  $region26: #{social_model_forward.1} parent=0 // pred_check
    _
  $region27: #{social_model_forward.1} parent=0 // pred_check_branch
    %4280 = sbr.rel (0) target = $region29
  $region28: #{social_model_forward.1} parent=0 // pred_region
    _
  $region29: #{social_model_forward.1} parent=0 // pred_fallthru
    _

</llo_original>
